<compile_context>
chip_gen: v7x
topology: tpu7x:2x2x1
jax: 0.10.0
libtpu: 0.0.40
codegen_flags: <defaults>
</compile_context>

<pallas_src>
import functools
import math

import jax
import jax.numpy as jnp
from jax import lax
from jax.experimental import pallas as pl
from jax.experimental.pallas import tpu as pltpu

_LN_EPS = 1e-5  # PyTorch nn.LayerNorm default


def _layer_norm(x, gamma, beta):
    mu = jnp.mean(x, axis=-1, keepdims=True)
    var = jnp.mean(jnp.square(x - mu), axis=-1, keepdims=True)  # biased, like PyTorch
    return (x - mu) * lax.rsqrt(var + _LN_EPS) * gamma + beta


def _encoder_layer_kernel(x_ref,
                          wqkv_ref, bqkv_ref, wo_ref, bo_ref,
                          g1_ref, be1_ref,
                          w1_ref, b1_ref, w2_ref, b2_ref,
                          g2_ref, be2_ref,
                          o_ref, *, num_heads, d_head, approx_softmax):
    Bt, S, D = x_ref.shape
    H, dh = num_heads, d_head
    Hd = H * dh
    M = Bt * S

    # Fold batch into the M (sublane) axis for all dense layers.
    x = x_ref[...].reshape(M, D)                      # f32 residual path
    xb = x.astype(jnp.bfloat16)

    # --- Fused QKV projection: one lane-dense N = 3*Hd MXU push (bf16 in, f32 accum). ---
    # 1/sqrt(d_head) is already folded into Wq / bq by the wrapper.
    qkv = jnp.dot(xb, wqkv_ref[...], preferred_element_type=jnp.float32) + bqkv_ref[...]
    qkv_b = qkv.astype(jnp.bfloat16)

    def to_heads(z):
        # (M, Hd) lane-major heads -> (H*Bt, S, dh) head-major batch (major-axis concat only).
        return jnp.concatenate(
            [z[:, h * dh:(h + 1) * dh].reshape(Bt, S, dh) for h in range(H)], axis=0)

    qh = to_heads(qkv_b[:, 0:Hd])          # 128-lane-aligned slices of qkv
    kh = to_heads(qkv_b[:, Hd:2 * Hd])
    vh = to_heads(qkv_b[:, 2 * Hd:3 * Hd])

    # --- Attention: one batched dot_general over all (head, batch) pairs. ---
    s = lax.dot_general(qh, kh, (((2,), (2,)), ((0,), (0,))),
                        preferred_element_type=jnp.float32)          # (H*Bt, S, S)

    # Softmax entirely in f32 (v5e has no bf16 VPU/EUP path).
    m = jnp.max(s, axis=-1, keepdims=True)
    p = jnp.exp(s - m)
    denom = jnp.sum(p, axis=-1, keepdims=True)
    if approx_softmax:
        p = p * pl.reciprocal(denom, approx=True)                    # EUP slot, ~free
    else:
        p = p / denom

    o = lax.dot_general(p.astype(jnp.bfloat16), vh, (((2,), (1,)), ((0,), (0,))),
                        preferred_element_type=jnp.float32)          # (H*Bt, S, dh)

    # --- Output projection, head-batched (no lane-axis concatenate): mha = sum_h o_h @ Wo_h ---
    o3 = o.reshape(H, M, dh).astype(jnp.bfloat16)                    # head-major, same row order
    proj = lax.dot_general(o3, wo_ref[...], (((2,), (1,)), ((0,), (0,))),
                           preferred_element_type=jnp.float32)       # (H, M, D)
    mha = jnp.sum(proj, axis=0) + bo_ref[...]                        # (M, D)

    # --- Residual + LayerNorm 1 (f32). ---
    x1 = _layer_norm(x + mha, g1_ref[...], be1_ref[...])

    # --- Feed-forward: Linear -> ReLU -> Linear (bf16 operands, f32 accum). ---
    f1 = jnp.maximum(
        jnp.dot(x1.astype(jnp.bfloat16), w1_ref[...],
                preferred_element_type=jnp.float32) + b1_ref[...], 0.0)       # (M, F)
    f2 = jnp.dot(f1.astype(jnp.bfloat16), w2_ref[...],
                 preferred_element_type=jnp.float32) + b2_ref[...]            # (M, D)

    # --- Residual + LayerNorm 2 (f32). ---
    y = _layer_norm(x1 + f2, g2_ref[...], be2_ref[...])
    o_ref[...] = y.reshape(Bt, S, D).astype(o_ref.dtype)


def transformer_encoder_layer(src, params, *, batch_block=None, approx_softmax=True):
    """src: (B, S, dim_model) float32. Returns (B, S, dim_model).

    batch_block=None -> one grid step over the full batch (best for 1-TC v5e/v6e and for small
    problems on v7x). Pass a divisor of B to split across grid steps ("parallel" axis)."""
    B, S, D = src.shape
    H = params["num_heads"]
    dh = params["d_head"]
    Hd = H * dh
    F = params["w_ff1"].shape[1]
    Bt = B if batch_block is None else batch_block
    assert B % Bt == 0, "B must be divisible by batch_block"

    inv_scale = 1.0 / math.sqrt(dh)

    # Host-side, one-time packing: fold the softmax scale into Wq/bq, fuse QKV column-wise,
    # reshape Wo to per-head (H, dh, D), and pre-cast all weight matrices to bf16.
    w_qkv = jnp.concatenate(
        [params["wq"] * inv_scale, params["wk"], params["wv"]], axis=1).astype(jnp.bfloat16)
    b_qkv = jnp.concatenate(
        [params["bq"] * inv_scale, params["bk"], params["bv"]]).reshape(1, 3 * Hd)
    wo_h = params["wo"].reshape(H, dh, D).astype(jnp.bfloat16)
    w1 = params["w_ff1"].astype(jnp.bfloat16)
    w2 = params["w_ff2"].astype(jnp.bfloat16)

    def row(v):  # 1-D params as (1, N) rows for clean 2-D VMEM layout
        return v.reshape(1, -1)

    # --- Cost estimate (advisory, lets XLA schedule around the fused call). ---
    flops = (2 * B * S * D * 3 * Hd            # fused QKV projection
             + 2 * B * H * S * S * dh * 2      # scores + P.V
             + 2 * B * S * Hd * D              # output projection
             + 2 * B * S * D * F * 2)          # FFN
    weight_bytes = 2 * (D * 3 * Hd + Hd * D + D * F + F * D)          # bf16 weights
    small_bytes = 4 * (3 * Hd + 5 * D + F)                            # f32 biases + LN params
    io_bytes = 4 * B * S * D * 2                                      # f32 in + out
    cost = pl.CostEstimate(flops=flops, transcendentals=B * H * S * S,
                           bytes_accessed=io_bytes + weight_bytes + small_bytes)

    # --- VMEM budget from actual (double-buffered) block sizes + intermediate estimate. ---
    M = Bt * S
    block_bytes = 2 * (2 * Bt * S * D * 4 + weight_bytes + small_bytes)
    interm_bytes = 4 * M * (3 * Hd + F + 4 * D) + 4 * H * Bt * S * S * 2 + 4 * H * M * D
    vmem_limit = int(min(64 * 1024 * 1024, max(32 * 1024 * 1024, 4 * (block_bytes + interm_bytes))))

    kernel = functools.partial(_encoder_layer_kernel, num_heads=H, d_head=dh,
                               approx_softmax=approx_softmax)
    full2 = lambda b: (0, 0)
    full3 = lambda b: (0, 0, 0)

    return pl.pallas_call(
        kernel,
        out_shape=jax.ShapeDtypeStruct((B, S, D), src.dtype),
        grid_spec=pltpu.PrefetchScalarGridSpec(
            num_scalar_prefetch=0,
            grid=(B // Bt,),
            in_specs=[
                pl.BlockSpec((Bt, S, D), lambda b: (b, 0, 0)),               # src
                pl.BlockSpec((D, 3 * Hd), full2), pl.BlockSpec((1, 3 * Hd), full2),  # Wqkv, bqkv
                pl.BlockSpec((H, dh, D), full3), pl.BlockSpec((1, D), full2),        # Wo(h,d,D), bo
                pl.BlockSpec((1, D), full2), pl.BlockSpec((1, D), full2),            # LN1 g, b
                pl.BlockSpec((D, F), full2), pl.BlockSpec((1, F), full2),            # FFN W1, b1
                pl.BlockSpec((F, D), full2), pl.BlockSpec((1, D), full2),            # FFN W2, b2
                pl.BlockSpec((1, D), full2), pl.BlockSpec((1, D), full2),            # LN2 g, b
            ],
            out_specs=pl.BlockSpec((Bt, S, D), lambda b: (b, 0, 0)),
        ),
        compiler_params=pltpu.CompilerParams(
            dimension_semantics=("parallel",),
            vmem_limit_bytes=vmem_limit),
        cost_estimate=cost,
    )(src,
      w_qkv, b_qkv, wo_h, row(params["bo"]),
      row(params["ln1_g"]), row(params["ln1_b"]),
      w1, row(params["b_ff1"]), w2, row(params["b_ff2"]),
      row(params["ln2_g"]), row(params["ln2_b"]))


def init_params(key, dim_model, num_heads, dim_feedforward):
    """Deterministic init mirroring nn.Linear shapes; weights stored as (in, out).
    Per-head q/k/v weights are packed column-wise into (dim_model, num_heads*d_head)."""
    d_head = max(dim_model // num_heads, 1)
    Hd = num_heads * d_head
    ks = jax.random.split(key, 6)

    def lin(k, din, dout):
        k1, k2 = jax.random.split(k)
        bound = 1.0 / math.sqrt(din)
        w = jax.random.uniform(k1, (din, dout), jnp.float32, -bound, bound)
        b = jax.random.uniform(k2, (dout,), jnp.float32, -bound, bound)
        return w, b

    wq, bq = lin(ks[0], dim_model, Hd)
    wk, bk = lin(ks[1], dim_model, Hd)
    wv, bv = lin(ks[2], dim_model, Hd)
    wo, bo = lin(ks[3], Hd, dim_model)
    w1, b1 = lin(ks[4], dim_model, dim_feedforward)
    w2, b2 = lin(ks[5], dim_feedforward, dim_model)
    return dict(num_heads=num_heads, d_head=d_head,
                wq=wq, bq=bq, wk=wk, bk=bk, wv=wv, bv=bv, wo=wo, bo=bo,
                ln1_g=jnp.ones((dim_model,), jnp.float32),
                ln1_b=jnp.zeros((dim_model,), jnp.float32),
                w_ff1=w1, b_ff1=b1, w_ff2=w2, b_ff2=b2,
                ln2_g=jnp.ones((dim_model,), jnp.float32),
                ln2_b=jnp.zeros((dim_model,), jnp.float32))


def transformer_encoder_layer_ref(src, params):
    """Pure-JAX f32 reference matching the PyTorch module (dropout = identity)."""
    H, d = params["num_heads"], params["d_head"]
    B, S, D = src.shape
    q = (src @ params["wq"] + params["bq"]).reshape(B, S, H, d)
    k = (src @ params["wk"] + params["bk"]).reshape(B, S, H, d)
    v = (src @ params["wv"] + params["bv"]).reshape(B, S, H, d)
    scores = jnp.einsum("bqhd,bkhd->bhqk", q, k) / math.sqrt(d)
    p = jax.nn.softmax(scores, axis=-1)
    attn = jnp.einsum("bhqk,bkhd->bqhd", p, v).reshape(B, S, H * d)
    mha = attn @ params["wo"] + params["bo"]
    x1 = _layer_norm(src + mha, params["ln1_g"], params["ln1_b"])
    ff = jax.nn.relu(x1 @ params["w_ff1"] + params["b_ff1"]) @ params["w_ff2"] + params["b_ff2"]
    return _layer_norm(x1 + ff, params["ln2_g"], params["ln2_b"])


if __name__ == "__main__":
    B, S = 4, 16
    dim_model, num_heads, dim_feedforward = 128, 4, 256  # n_heads*d_head = 128 (lane-dense)

    root = jax.random.PRNGKey(0)
    kx, kp = jax.random.split(root)
    src = jax.random.normal(kx, (B, S, dim_model), jnp.float32)
    params = init_params(kp, dim_model, num_heads, dim_feedforward)

    out = transformer_encoder_layer(src, params)      # one grid step: M = B*S = 64 rows
    out = jax.block_until_ready(out)

    ref = transformer_encoder_layer_ref(src, params)
    assert out.shape == (B, S, dim_model)
    # bf16 MXU operands (f32 accumulation) + approx softmax reciprocal -> bf16-level tolerance.
    assert jnp.allclose(out, ref, atol=3e-2, rtol=3e-2), float(jnp.max(jnp.abs(out - ref)))

    print("KERNEL_OK")
</pallas_src>

<mosaic_0001>
module attributes {stable_mosaic.version = 11 : i64} {
  func.func @_encoder_layer_kernel(%arg0: i32, %arg1: memref<4x16x128xf32, #tpu.memory_space<vmem>>, %arg2: memref<128x384xbf16, #tpu.memory_space<vmem>>, %arg3: memref<1x384xf32, #tpu.memory_space<vmem>>, %arg4: memref<4x32x128xbf16, #tpu.memory_space<vmem>>, %arg5: memref<1x128xf32, #tpu.memory_space<vmem>>, %arg6: memref<1x128xf32, #tpu.memory_space<vmem>>, %arg7: memref<1x128xf32, #tpu.memory_space<vmem>>, %arg8: memref<128x256xbf16, #tpu.memory_space<vmem>>, %arg9: memref<1x256xf32, #tpu.memory_space<vmem>>, %arg10: memref<256x128xbf16, #tpu.memory_space<vmem>>, %arg11: memref<1x128xf32, #tpu.memory_space<vmem>>, %arg12: memref<1x128xf32, #tpu.memory_space<vmem>>, %arg13: memref<1x128xf32, #tpu.memory_space<vmem>>, %arg14: memref<4x16x128xf32, #tpu.memory_space<vmem>>) attributes {dimension_semantics = [#tpu.dimension_semantics<parallel>], iteration_bounds = array<i64: 1>, scalar_prefetch = 0 : i64, scratch_operands = 0 : i64, tpu.core_type = #tpu.core_type<tc>, window_params = [{transform_indices = @transform_0, window_bounds = array<i64: 4, 16, 128>}, {pipeline_mode = #tpu.pipeline_mode<synchronous>, transform_indices = @transform_1, window_bounds = array<i64: 128, 384>}, {pipeline_mode = #tpu.pipeline_mode<synchronous>, transform_indices = @transform_2, window_bounds = array<i64: 1, 384>}, {pipeline_mode = #tpu.pipeline_mode<synchronous>, transform_indices = @transform_3, window_bounds = array<i64: 4, 32, 128>}, {pipeline_mode = #tpu.pipeline_mode<synchronous>, transform_indices = @transform_4, window_bounds = array<i64: 1, 128>}, {pipeline_mode = #tpu.pipeline_mode<synchronous>, transform_indices = @transform_5, window_bounds = array<i64: 1, 128>}, {pipeline_mode = #tpu.pipeline_mode<synchronous>, transform_indices = @transform_6, window_bounds = array<i64: 1, 128>}, {pipeline_mode = #tpu.pipeline_mode<synchronous>, transform_indices = @transform_7, window_bounds = array<i64: 128, 256>}, {pipeline_mode = #tpu.pipeline_mode<synchronous>, transform_indices = @transform_8, window_bounds = array<i64: 1, 256>}, {pipeline_mode = #tpu.pipeline_mode<synchronous>, transform_indices = @transform_9, window_bounds = array<i64: 256, 128>}, {pipeline_mode = #tpu.pipeline_mode<synchronous>, transform_indices = @transform_10, window_bounds = array<i64: 1, 128>}, {pipeline_mode = #tpu.pipeline_mode<synchronous>, transform_indices = @transform_11, window_bounds = array<i64: 1, 128>}, {pipeline_mode = #tpu.pipeline_mode<synchronous>, transform_indices = @transform_12, window_bounds = array<i64: 1, 128>}, {transform_indices = @transform_13, window_bounds = array<i64: 4, 16, 128>}]} {
    %c0 = arith.constant 0 : index
    %c0_0 = arith.constant 0 : index
    %c0_1 = arith.constant 0 : index
    %0 = vector.load %arg1[%c0, %c0_0, %c0_1] : memref<4x16x128xf32, #tpu.memory_space<vmem>>, vector<4x16x128xf32>
    %1 = vector.shape_cast %0 : vector<4x16x128xf32> to vector<64x128xf32>
    %2 = arith.truncf %1 : vector<64x128xf32> to vector<64x128xbf16>
    %c0_2 = arith.constant 0 : index
    %c0_3 = arith.constant 0 : index
    %3 = vector.load %arg2[%c0_2, %c0_3] : memref<128x384xbf16, #tpu.memory_space<vmem>>, vector<128x384xbf16>
    %cst = arith.constant dense<0.000000e+00> : vector<64x384xf32>
    %4 = tpu.matmul %2, %3, %cst {dimension_numbers = #tpu.dot_dimension_numbers<[1], [0], [0], [1], [0, 0, 1, 1], [], []>} : vector<64x128xbf16>, vector<128x384xbf16>, vector<64x384xf32> -> vector<64x384xf32>
    %c0_4 = arith.constant 0 : index
    %c0_5 = arith.constant 0 : index
    %5 = vector.load %arg3[%c0_4, %c0_5] : memref<1x384xf32, #tpu.memory_space<vmem>>, vector<1x384xf32>
    %6 = vector.broadcast %5 : vector<1x384xf32> to vector<64x384xf32>
    %7 = arith.addf %4, %6 : vector<64x384xf32>
    %8 = arith.truncf %7 : vector<64x384xf32> to vector<64x384xbf16>
    %9 = vector.extract_strided_slice %8 {offsets = [0, 0], sizes = [64, 128], strides = [1, 1]} : vector<64x384xbf16> to vector<64x128xbf16>
    %10 = vector.extract_strided_slice %9 {offsets = [0, 0], sizes = [64, 32], strides = [1, 1]} : vector<64x128xbf16> to vector<64x32xbf16>
    %11 = vector.shape_cast %10 : vector<64x32xbf16> to vector<4x16x32xbf16>
    %12 = vector.extract_strided_slice %9 {offsets = [0, 32], sizes = [64, 32], strides = [1, 1]} : vector<64x128xbf16> to vector<64x32xbf16>
    %13 = vector.shape_cast %12 : vector<64x32xbf16> to vector<4x16x32xbf16>
    %14 = vector.extract_strided_slice %9 {offsets = [0, 64], sizes = [64, 32], strides = [1, 1]} : vector<64x128xbf16> to vector<64x32xbf16>
    %15 = vector.shape_cast %14 : vector<64x32xbf16> to vector<4x16x32xbf16>
    %16 = vector.extract_strided_slice %9 {offsets = [0, 96], sizes = [64, 32], strides = [1, 1]} : vector<64x128xbf16> to vector<64x32xbf16>
    %17 = vector.shape_cast %16 : vector<64x32xbf16> to vector<4x16x32xbf16>
    %18 = tpu.concatenate %11, %13, %15, %17 in 0 : vector<4x16x32xbf16>, vector<4x16x32xbf16>, vector<4x16x32xbf16>, vector<4x16x32xbf16> -> vector<16x16x32xbf16>
    %19 = vector.extract_strided_slice %8 {offsets = [0, 128], sizes = [64, 128], strides = [1, 1]} : vector<64x384xbf16> to vector<64x128xbf16>
    %20 = vector.extract_strided_slice %19 {offsets = [0, 0], sizes = [64, 32], strides = [1, 1]} : vector<64x128xbf16> to vector<64x32xbf16>
    %21 = vector.shape_cast %20 : vector<64x32xbf16> to vector<4x16x32xbf16>
    %22 = vector.extract_strided_slice %19 {offsets = [0, 32], sizes = [64, 32], strides = [1, 1]} : vector<64x128xbf16> to vector<64x32xbf16>
    %23 = vector.shape_cast %22 : vector<64x32xbf16> to vector<4x16x32xbf16>
    %24 = vector.extract_strided_slice %19 {offsets = [0, 64], sizes = [64, 32], strides = [1, 1]} : vector<64x128xbf16> to vector<64x32xbf16>
    %25 = vector.shape_cast %24 : vector<64x32xbf16> to vector<4x16x32xbf16>
    %26 = vector.extract_strided_slice %19 {offsets = [0, 96], sizes = [64, 32], strides = [1, 1]} : vector<64x128xbf16> to vector<64x32xbf16>
    %27 = vector.shape_cast %26 : vector<64x32xbf16> to vector<4x16x32xbf16>
    %28 = tpu.concatenate %21, %23, %25, %27 in 0 : vector<4x16x32xbf16>, vector<4x16x32xbf16>, vector<4x16x32xbf16>, vector<4x16x32xbf16> -> vector<16x16x32xbf16>
    %29 = vector.extract_strided_slice %8 {offsets = [0, 256], sizes = [64, 128], strides = [1, 1]} : vector<64x384xbf16> to vector<64x128xbf16>
    %30 = vector.extract_strided_slice %29 {offsets = [0, 0], sizes = [64, 32], strides = [1, 1]} : vector<64x128xbf16> to vector<64x32xbf16>
    %31 = vector.shape_cast %30 : vector<64x32xbf16> to vector<4x16x32xbf16>
    %32 = vector.extract_strided_slice %29 {offsets = [0, 32], sizes = [64, 32], strides = [1, 1]} : vector<64x128xbf16> to vector<64x32xbf16>
    %33 = vector.shape_cast %32 : vector<64x32xbf16> to vector<4x16x32xbf16>
    %34 = vector.extract_strided_slice %29 {offsets = [0, 64], sizes = [64, 32], strides = [1, 1]} : vector<64x128xbf16> to vector<64x32xbf16>
    %35 = vector.shape_cast %34 : vector<64x32xbf16> to vector<4x16x32xbf16>
    %36 = vector.extract_strided_slice %29 {offsets = [0, 96], sizes = [64, 32], strides = [1, 1]} : vector<64x128xbf16> to vector<64x32xbf16>
    %37 = vector.shape_cast %36 : vector<64x32xbf16> to vector<4x16x32xbf16>
    %38 = tpu.concatenate %31, %33, %35, %37 in 0 : vector<4x16x32xbf16>, vector<4x16x32xbf16>, vector<4x16x32xbf16>, vector<4x16x32xbf16> -> vector<16x16x32xbf16>
    %cst_6 = arith.constant dense<0.000000e+00> : vector<16x16x16xf32>
    %39 = tpu.matmul %18, %28, %cst_6 {dimension_numbers = #tpu.dot_dimension_numbers<[2], [2], [1], [1], [0, 0, 0, 1, 1, 1], [0], [0]>} : vector<16x16x32xbf16>, vector<16x16x32xbf16>, vector<16x16x16xf32> -> vector<16x16x16xf32>
    %cst_7 = arith.constant dense<0xFF800000> : vector<16x16xf32>
    %40 = vector.multi_reduction <maximumf>, %39, %cst_7 [2] : vector<16x16x16xf32> to vector<16x16xf32>
    %41 = vector.shape_cast %40 : vector<16x16xf32> to vector<16x16x1xf32>
    %42 = vector.broadcast %41 : vector<16x16x1xf32> to vector<16x16x16xf32>
    %43 = arith.subf %39, %42 : vector<16x16x16xf32>
    %44 = math.exp %43 : vector<16x16x16xf32>
    %cst_8 = arith.constant dense<0.000000e+00> : vector<16x16xf32>
    %45 = vector.multi_reduction <add>, %44, %cst_8 [2] : vector<16x16x16xf32> to vector<16x16xf32>
    %46 = vector.shape_cast %45 : vector<16x16xf32> to vector<16x16x1xf32>
    %47 = tpu.reciprocal %46 {approx = true} : vector<16x16x1xf32> -> vector<16x16x1xf32>
    %48 = vector.broadcast %47 : vector<16x16x1xf32> to vector<16x16x16xf32>
    %49 = arith.mulf %44, %48 : vector<16x16x16xf32>
    %50 = arith.truncf %49 : vector<16x16x16xf32> to vector<16x16x16xbf16>
    %cst_9 = arith.constant dense<0.000000e+00> : vector<16x16x32xf32>
    %51 = tpu.matmul %50, %38, %cst_9 {dimension_numbers = #tpu.dot_dimension_numbers<[2], [1], [1], [2], [0, 0, 0, 1, 1, 2], [0], [0]>} : vector<16x16x16xbf16>, vector<16x16x32xbf16>, vector<16x16x32xf32> -> vector<16x16x32xf32>
    %52 = vector.shape_cast %51 : vector<16x16x32xf32> to vector<4x64x32xf32>
    %53 = arith.truncf %52 : vector<4x64x32xf32> to vector<4x64x32xbf16>
    %c0_10 = arith.constant 0 : index
    %c0_11 = arith.constant 0 : index
    %c0_12 = arith.constant 0 : index
    %54 = vector.load %arg4[%c0_10, %c0_11, %c0_12] : memref<4x32x128xbf16, #tpu.memory_space<vmem>>, vector<4x32x128xbf16>
    %cst_13 = arith.constant dense<0.000000e+00> : vector<4x64x128xf32>
    %55 = tpu.matmul %53, %54, %cst_13 {dimension_numbers = #tpu.dot_dimension_numbers<[2], [1], [1], [2], [0, 0, 0, 1, 1, 2], [0], [0]>} : vector<4x64x32xbf16>, vector<4x32x128xbf16>, vector<4x64x128xf32> -> vector<4x64x128xf32>
    %cst_14 = arith.constant dense<0.000000e+00> : vector<64x128xf32>
    %56 = vector.multi_reduction <add>, %55, %cst_14 [0] : vector<4x64x128xf32> to vector<64x128xf32>
    %c0_15 = arith.constant 0 : index
    %c0_16 = arith.constant 0 : index
    %57 = vector.load %arg5[%c0_15, %c0_16] : memref<1x128xf32, #tpu.memory_space<vmem>>, vector<1x128xf32>
    %58 = vector.broadcast %57 : vector<1x128xf32> to vector<64x128xf32>
    %59 = arith.addf %56, %58 : vector<64x128xf32>
    %60 = arith.addf %1, %59 : vector<64x128xf32>
    %c0_17 = arith.constant 0 : index
    %c0_18 = arith.constant 0 : index
    %61 = vector.load %arg6[%c0_17, %c0_18] : memref<1x128xf32, #tpu.memory_space<vmem>>, vector<1x128xf32>
    %c0_19 = arith.constant 0 : index
    %c0_20 = arith.constant 0 : index
    %62 = vector.load %arg7[%c0_19, %c0_20] : memref<1x128xf32, #tpu.memory_space<vmem>>, vector<1x128xf32>
    %cst_21 = arith.constant dense<0.000000e+00> : vector<64xf32>
    %63 = vector.multi_reduction <add>, %60, %cst_21 [1] : vector<64x128xf32> to vector<64xf32>
    %64 = vector.shape_cast %63 : vector<64xf32> to vector<64x1xf32>
    %cst_22 = arith.constant 1.280000e+02 : f32
    %65 = vector.broadcast %cst_22 : f32 to vector<64x1xf32>
    %66 = arith.divf %64, %65 : vector<64x1xf32>
    %67 = vector.broadcast %66 : vector<64x1xf32> to vector<64x128xf32>
    %68 = arith.subf %60, %67 : vector<64x128xf32>
    %69 = arith.mulf %68, %68 : vector<64x128xf32>
    %cst_23 = arith.constant dense<0.000000e+00> : vector<64xf32>
    %70 = vector.multi_reduction <add>, %69, %cst_23 [1] : vector<64x128xf32> to vector<64xf32>
    %71 = vector.shape_cast %70 : vector<64xf32> to vector<64x1xf32>
    %cst_24 = arith.constant 1.280000e+02 : f32
    %72 = vector.broadcast %cst_24 : f32 to vector<64x1xf32>
    %73 = arith.divf %71, %72 : vector<64x1xf32>
    %74 = vector.broadcast %66 : vector<64x1xf32> to vector<64x128xf32>
    %75 = arith.subf %60, %74 : vector<64x128xf32>
    %cst_25 = arith.constant 9.99999974E-6 : f32
    %76 = vector.broadcast %cst_25 : f32 to vector<64x1xf32>
    %77 = arith.addf %73, %76 : vector<64x1xf32>
    %78 = math.rsqrt %77 : vector<64x1xf32>
    %79 = vector.broadcast %78 : vector<64x1xf32> to vector<64x128xf32>
    %80 = arith.mulf %75, %79 : vector<64x128xf32>
    %81 = vector.broadcast %61 : vector<1x128xf32> to vector<64x128xf32>
    %82 = arith.mulf %80, %81 : vector<64x128xf32>
    %83 = vector.broadcast %62 : vector<1x128xf32> to vector<64x128xf32>
    %84 = arith.addf %82, %83 : vector<64x128xf32>
    %85 = arith.truncf %84 : vector<64x128xf32> to vector<64x128xbf16>
    %c0_26 = arith.constant 0 : index
    %c0_27 = arith.constant 0 : index
    %86 = vector.load %arg8[%c0_26, %c0_27] : memref<128x256xbf16, #tpu.memory_space<vmem>>, vector<128x256xbf16>
    %cst_28 = arith.constant dense<0.000000e+00> : vector<64x256xf32>
    %87 = tpu.matmul %85, %86, %cst_28 {dimension_numbers = #tpu.dot_dimension_numbers<[1], [0], [0], [1], [0, 0, 1, 1], [], []>} : vector<64x128xbf16>, vector<128x256xbf16>, vector<64x256xf32> -> vector<64x256xf32>
    %c0_29 = arith.constant 0 : index
    %c0_30 = arith.constant 0 : index
    %88 = vector.load %arg9[%c0_29, %c0_30] : memref<1x256xf32, #tpu.memory_space<vmem>>, vector<1x256xf32>
    %89 = vector.broadcast %88 : vector<1x256xf32> to vector<64x256xf32>
    %90 = arith.addf %87, %89 : vector<64x256xf32>
    %cst_31 = arith.constant 0.000000e+00 : f32
    %91 = vector.broadcast %cst_31 : f32 to vector<64x256xf32>
    %92 = arith.maximumf %90, %91 : vector<64x256xf32>
    %93 = arith.truncf %92 : vector<64x256xf32> to vector<64x256xbf16>
    %c0_32 = arith.constant 0 : index
    %c0_33 = arith.constant 0 : index
    %94 = vector.load %arg10[%c0_32, %c0_33] : memref<256x128xbf16, #tpu.memory_space<vmem>>, vector<256x128xbf16>
    %cst_34 = arith.constant dense<0.000000e+00> : vector<64x128xf32>
    %95 = tpu.matmul %93, %94, %cst_34 {dimension_numbers = #tpu.dot_dimension_numbers<[1], [0], [0], [1], [0, 0, 1, 1], [], []>} : vector<64x256xbf16>, vector<256x128xbf16>, vector<64x128xf32> -> vector<64x128xf32>
    %c0_35 = arith.constant 0 : index
    %c0_36 = arith.constant 0 : index
    %96 = vector.load %arg11[%c0_35, %c0_36] : memref<1x128xf32, #tpu.memory_space<vmem>>, vector<1x128xf32>
    %97 = vector.broadcast %96 : vector<1x128xf32> to vector<64x128xf32>
    %98 = arith.addf %95, %97 : vector<64x128xf32>
    %99 = arith.addf %84, %98 : vector<64x128xf32>
    %c0_37 = arith.constant 0 : index
    %c0_38 = arith.constant 0 : index
    %100 = vector.load %arg12[%c0_37, %c0_38] : memref<1x128xf32, #tpu.memory_space<vmem>>, vector<1x128xf32>
    %c0_39 = arith.constant 0 : index
    %c0_40 = arith.constant 0 : index
    %101 = vector.load %arg13[%c0_39, %c0_40] : memref<1x128xf32, #tpu.memory_space<vmem>>, vector<1x128xf32>
    %cst_41 = arith.constant dense<0.000000e+00> : vector<64xf32>
    %102 = vector.multi_reduction <add>, %99, %cst_41 [1] : vector<64x128xf32> to vector<64xf32>
    %103 = vector.shape_cast %102 : vector<64xf32> to vector<64x1xf32>
    %cst_42 = arith.constant 1.280000e+02 : f32
    %104 = vector.broadcast %cst_42 : f32 to vector<64x1xf32>
    %105 = arith.divf %103, %104 : vector<64x1xf32>
    %106 = vector.broadcast %105 : vector<64x1xf32> to vector<64x128xf32>
    %107 = arith.subf %99, %106 : vector<64x128xf32>
    %108 = arith.mulf %107, %107 : vector<64x128xf32>
    %cst_43 = arith.constant dense<0.000000e+00> : vector<64xf32>
    %109 = vector.multi_reduction <add>, %108, %cst_43 [1] : vector<64x128xf32> to vector<64xf32>
    %110 = vector.shape_cast %109 : vector<64xf32> to vector<64x1xf32>
    %cst_44 = arith.constant 1.280000e+02 : f32
    %111 = vector.broadcast %cst_44 : f32 to vector<64x1xf32>
    %112 = arith.divf %110, %111 : vector<64x1xf32>
    %113 = vector.broadcast %105 : vector<64x1xf32> to vector<64x128xf32>
    %114 = arith.subf %99, %113 : vector<64x128xf32>
    %cst_45 = arith.constant 9.99999974E-6 : f32
    %115 = vector.broadcast %cst_45 : f32 to vector<64x1xf32>
    %116 = arith.addf %112, %115 : vector<64x1xf32>
    %117 = math.rsqrt %116 : vector<64x1xf32>
    %118 = vector.broadcast %117 : vector<64x1xf32> to vector<64x128xf32>
    %119 = arith.mulf %114, %118 : vector<64x128xf32>
    %120 = vector.broadcast %100 : vector<1x128xf32> to vector<64x128xf32>
    %121 = arith.mulf %119, %120 : vector<64x128xf32>
    %122 = vector.broadcast %101 : vector<1x128xf32> to vector<64x128xf32>
    %123 = arith.addf %121, %122 : vector<64x128xf32>
    %124 = vector.shape_cast %123 : vector<64x128xf32> to vector<4x16x128xf32>
    %c0_46 = arith.constant 0 : index
    %c0_47 = arith.constant 0 : index
    %c0_48 = arith.constant 0 : index
    %125 = vector.load %arg14[%c0_46, %c0_47, %c0_48] : memref<4x16x128xf32, #tpu.memory_space<vmem>>, vector<4x16x128xf32>
    tpu.vector_store %arg14[%c0_46, %c0_47, %c0_48], %124 {strides = array<i32>} : memref<4x16x128xf32, #tpu.memory_space<vmem>>, vector<4x16x128xf32>,
    return
  }
  func.func @transform_0(%arg0: i32) -> (i32, i32, i32) {
    %c0_i32 = arith.constant 0 : i32
    %c0_i32_0 = arith.constant 0 : i32
    %c0_i32_1 = arith.constant 0 : i32
    return %arg0, %c0_i32, %c0_i32_0 : i32, i32, i32
  }
  func.func @transform_1(%arg0: i32) -> (i32, i32) {
    %c0_i32 = arith.constant 0 : i32
    %c0_i32_0 = arith.constant 0 : i32
    %c0_i32_1 = arith.constant 0 : i32
    return %c0_i32, %c0_i32_0 : i32, i32
  }
  func.func @transform_2(%arg0: i32) -> (i32, i32) {
    %c0_i32 = arith.constant 0 : i32
    %c0_i32_0 = arith.constant 0 : i32
    %c0_i32_1 = arith.constant 0 : i32
    return %c0_i32, %c0_i32_0 : i32, i32
  }
  func.func @transform_3(%arg0: i32) -> (i32, i32, i32) {
    %c0_i32 = arith.constant 0 : i32
    %c0_i32_0 = arith.constant 0 : i32
    %c0_i32_1 = arith.constant 0 : i32
    %c0_i32_2 = arith.constant 0 : i32
    return %c0_i32, %c0_i32_0, %c0_i32_1 : i32, i32, i32
  }
  func.func @transform_4(%arg0: i32) -> (i32, i32) {
    %c0_i32 = arith.constant 0 : i32
    %c0_i32_0 = arith.constant 0 : i32
    %c0_i32_1 = arith.constant 0 : i32
    return %c0_i32, %c0_i32_0 : i32, i32
  }
  func.func @transform_5(%arg0: i32) -> (i32, i32) {
    %c0_i32 = arith.constant 0 : i32
    %c0_i32_0 = arith.constant 0 : i32
    %c0_i32_1 = arith.constant 0 : i32
    return %c0_i32, %c0_i32_0 : i32, i32
  }
  func.func @transform_6(%arg0: i32) -> (i32, i32) {
    %c0_i32 = arith.constant 0 : i32
    %c0_i32_0 = arith.constant 0 : i32
    %c0_i32_1 = arith.constant 0 : i32
    return %c0_i32, %c0_i32_0 : i32, i32
  }
  func.func @transform_7(%arg0: i32) -> (i32, i32) {
    %c0_i32 = arith.constant 0 : i32
    %c0_i32_0 = arith.constant 0 : i32
    %c0_i32_1 = arith.constant 0 : i32
    return %c0_i32, %c0_i32_0 : i32, i32
  }
  func.func @transform_8(%arg0: i32) -> (i32, i32) {
    %c0_i32 = arith.constant 0 : i32
    %c0_i32_0 = arith.constant 0 : i32
    %c0_i32_1 = arith.constant 0 : i32
    return %c0_i32, %c0_i32_0 : i32, i32
  }
  func.func @transform_9(%arg0: i32) -> (i32, i32) {
    %c0_i32 = arith.constant 0 : i32
    %c0_i32_0 = arith.constant 0 : i32
    %c0_i32_1 = arith.constant 0 : i32
    return %c0_i32, %c0_i32_0 : i32, i32
  }
  func.func @transform_10(%arg0: i32) -> (i32, i32) {
    %c0_i32 = arith.constant 0 : i32
    %c0_i32_0 = arith.constant 0 : i32
    %c0_i32_1 = arith.constant 0 : i32
    return %c0_i32, %c0_i32_0 : i32, i32
  }
  func.func @transform_11(%arg0: i32) -> (i32, i32) {
    %c0_i32 = arith.constant 0 : i32
    %c0_i32_0 = arith.constant 0 : i32
    %c0_i32_1 = arith.constant 0 : i32
    return %c0_i32, %c0_i32_0 : i32, i32
  }
  func.func @transform_12(%arg0: i32) -> (i32, i32) {
    %c0_i32 = arith.constant 0 : i32
    %c0_i32_0 = arith.constant 0 : i32
    %c0_i32_1 = arith.constant 0 : i32
    return %c0_i32, %c0_i32_0 : i32, i32
  }
  func.func @transform_13(%arg0: i32) -> (i32, i32, i32) {
    %c0_i32 = arith.constant 0 : i32
    %c0_i32_0 = arith.constant 0 : i32
    %c0_i32_1 = arith.constant 0 : i32
    return %arg0, %c0_i32, %c0_i32_0 : i32, i32, i32
  }
}

</mosaic_0001>

<llo_original>
// kernel: tpu_custom_call.1
$region0: #{tpu_custom_call.1}
  #allocation0 [shape = 'u32[]', space=smem, size = 0x4, offset = 0x4, fixed_abs, tag = 'smem constant byte address 0x4 - core index']
  #allocation1 [shape = 'u32[144,128]{1,0:T(1,128)}', space=vmem, size = 0x12000, scoped, tag = 'internal scratch']
  %s0 = inlined_call_operand.hbm [shape: f32[4,16,128], index: 0, kind: input, shape index: {}]
  %s1 = inlined_call_operand.hbm [shape: bf16[128,384], index: 1, kind: input, shape index: {}]
  %s2 = inlined_call_operand.vmem [shape: f32[1,384], index: 2, kind: input, shape index: {}]
  %s3 = inlined_call_operand.hbm [shape: bf16[4,32,128], index: 3, kind: input, shape index: {}]
  %s4 = inlined_call_operand.vmem [shape: f32[1,128], index: 4, kind: input, shape index: {}]
  %s5 = inlined_call_operand.vmem [shape: f32[1,128], index: 5, kind: input, shape index: {}]
  %s6 = inlined_call_operand.vmem [shape: f32[1,128], index: 6, kind: input, shape index: {}]
  %s7 = inlined_call_operand.hbm [shape: bf16[128,256], index: 7, kind: input, shape index: {}]
  %s8 = inlined_call_operand.vmem [shape: f32[1,256], index: 8, kind: input, shape index: {}]
  %s9 = inlined_call_operand.hbm [shape: bf16[256,128], index: 9, kind: input, shape index: {}]
  %s10 = inlined_call_operand.vmem [shape: f32[1,128], index: 10, kind: input, shape index: {}]
  %s11 = inlined_call_operand.vmem [shape: f32[1,128], index: 11, kind: input, shape index: {}]
  %s12 = inlined_call_operand.vmem [shape: f32[1,128], index: 12, kind: input, shape index: {}]
  %s13 = inlined_call_operand.hbm [shape: f32[4,16,128], index: 13, kind: output, shape index: {}]
  %s14 = sld [smem:[#allocation0]]
  $region82: #{tpu_custom_call.1} parent=0
    _
  %s16 = ssub.s32 1, %s14
  %s17 = scalar_select 0, %s16, %s14
  $region1: #{tpu_custom_call.1} parent=0
    #allocation2 [shape = 'u8[32768]{0}', space=vmem, size = 0x8000, scoped, tag = 'input window, operand 0, single buffered']
    #allocation3 [shape = 's32[1]{0}', space=sflag, size = 0x4, scoped, tag = 'scoped memory for tpu_custom_call.1']
    #allocation4 [shape = 's32[1]{0}', space=sflag, size = 0x4, scoped, tag = 'scoped memory for tpu_custom_call.1']
    #allocation5 [shape = 'u8[98304]{0}', space=vmem, size = 0x18000, scoped, tag = 'input window, operand 1, single buffered']
    #allocation6 [shape = 's32[1]{0}', space=sflag, size = 0x4, scoped, tag = 'scoped memory for tpu_custom_call.1']
    #allocation7 [shape = 'u8[32768]{0}', space=vmem, size = 0x8000, scoped, tag = 'input window, operand 3, single buffered']
    #allocation8 [shape = 'u8[65536]{0}', space=vmem, size = 0x10000, scoped, tag = 'input window, operand 7, single buffered']
    #allocation9 [shape = 's32[1]{0}', space=sflag, size = 0x4, scoped, tag = 'scoped memory for tpu_custom_call.1']
    #allocation10 [shape = 'u8[65536]{0}', space=vmem, size = 0x10000, scoped, tag = 'input window, operand 9, single buffered']
    #allocation11 [shape = 'u8[32768]{0}', space=vmem, size = 0x8000, scoped, tag = 'output window, operand 0, single buffered']
    %18 = vsyncpa [#allocation3], 0
    %19 = vsyncpa [#allocation6], 0
    %20 = vsyncpa [#allocation9], 0
    %21 = vsyncpa [#allocation4], 0
    // Predicated region
    $region2: #{tpu_custom_call.1} parent=1 // pred_check
      _
    $region3: #{tpu_custom_call.1} parent=1 // pred_check_branch
      %23 = sbr.rel (0) target = $region5
    $region4: #{tpu_custom_call.1} parent=1 // pred_region
      %s25 = ssub.s32 1024, 1024
      %26 = vsyncadd [#allocation3], %s25
      %s27 = sshll.u32 [#allocation2], 4
      %s28 = int_to_ptr.vmem [resolvable:$true] %s27
      %33 = dma.hbm_to_vmem [thread:$0]  %s0, 1024, %s28, [#allocation3], 128, 128, 8
    $region5: #{tpu_custom_call.1} parent=1 // pred_fallthru
      _
    // Predicated region
    $region6: #{tpu_custom_call.1} parent=1 // pred_check
      _
    $region7: #{tpu_custom_call.1} parent=1 // pred_check_branch
      %35 = sbr.rel (0) target = $region9
    $region8: #{tpu_custom_call.1} parent=1 // pred_region
      %s37 = ssub.s32 3072, 3072
      %38 = vsyncadd [#allocation6], %s37
      %s39 = sshll.u32 [#allocation5], 4
      %s40 = int_to_ptr.vmem [resolvable:$true] %s39
      %45 = dma.hbm_to_vmem [thread:$0]  %s1, 3072, %s40, [#allocation6], 192, 192, 12
    $region9: #{tpu_custom_call.1} parent=1 // pred_fallthru
      _
    // Predicated region
    $region10: #{tpu_custom_call.1} parent=1 // pred_check
      _
    $region11: #{tpu_custom_call.1} parent=1 // pred_check_branch
      %47 = sbr.rel (0) target = $region13
    $region12: #{tpu_custom_call.1} parent=1 // pred_region
      _
    $region13: #{tpu_custom_call.1} parent=1 // pred_fallthru
      _
    // Predicated region
    $region14: #{tpu_custom_call.1} parent=1 // pred_check
      _
    $region15: #{tpu_custom_call.1} parent=1 // pred_check_branch
      %49 = sbr.rel (0) target = $region17
    $region16: #{tpu_custom_call.1} parent=1 // pred_region
      %s51 = ssub.s32 1024, 1024
      %52 = vsyncadd [#allocation6], %s51
      %s53 = sshll.u32 [#allocation7], 4
      %s54 = int_to_ptr.vmem [resolvable:$true] %s53
      %59 = dma.hbm_to_vmem [thread:$0]  %s3, 1024, %s54, [#allocation6], 64, 64, 4
    $region17: #{tpu_custom_call.1} parent=1 // pred_fallthru
      _
    // Predicated region
    $region18: #{tpu_custom_call.1} parent=1 // pred_check
      _
    $region19: #{tpu_custom_call.1} parent=1 // pred_check_branch
      %61 = sbr.rel (0) target = $region21
    $region20: #{tpu_custom_call.1} parent=1 // pred_region
      _
    $region21: #{tpu_custom_call.1} parent=1 // pred_fallthru
      _
    // Predicated region
    $region22: #{tpu_custom_call.1} parent=1 // pred_check
      _
    $region23: #{tpu_custom_call.1} parent=1 // pred_check_branch
      %63 = sbr.rel (0) target = $region25
    $region24: #{tpu_custom_call.1} parent=1 // pred_region
      _
    $region25: #{tpu_custom_call.1} parent=1 // pred_fallthru
      _
    // Predicated region
    $region26: #{tpu_custom_call.1} parent=1 // pred_check
      _
    $region27: #{tpu_custom_call.1} parent=1 // pred_check_branch
      %65 = sbr.rel (0) target = $region29
    $region28: #{tpu_custom_call.1} parent=1 // pred_region
      _
    $region29: #{tpu_custom_call.1} parent=1 // pred_fallthru
      _
    // Predicated region
    $region30: #{tpu_custom_call.1} parent=1 // pred_check
      _
    $region31: #{tpu_custom_call.1} parent=1 // pred_check_branch
      %67 = sbr.rel (0) target = $region33
    $region32: #{tpu_custom_call.1} parent=1 // pred_region
      %s69 = ssub.s32 2048, 2048
      %70 = vsyncadd [#allocation9], %s69
      %s71 = sshll.u32 [#allocation8], 4
      %s72 = int_to_ptr.vmem [resolvable:$true] %s71
      %77 = dma.hbm_to_vmem [thread:$0]  %s7, 2048, %s72, [#allocation9], 128, 128, 8
    $region33: #{tpu_custom_call.1} parent=1 // pred_fallthru
      _
    // Predicated region
    $region34: #{tpu_custom_call.1} parent=1 // pred_check
      _
    $region35: #{tpu_custom_call.1} parent=1 // pred_check_branch
      %79 = sbr.rel (0) target = $region37
    $region36: #{tpu_custom_call.1} parent=1 // pred_region
      _
    $region37: #{tpu_custom_call.1} parent=1 // pred_fallthru
      _
    // Predicated region
    $region38: #{tpu_custom_call.1} parent=1 // pred_check
      _
    $region39: #{tpu_custom_call.1} parent=1 // pred_check_branch
      %81 = sbr.rel (0) target = $region41
    $region40: #{tpu_custom_call.1} parent=1 // pred_region
      %s83 = ssub.s32 2048, 2048
      %84 = vsyncadd [#allocation9], %s83
      %s85 = sshll.u32 [#allocation10], 4
      %s86 = int_to_ptr.vmem [resolvable:$true] %s85
      %91 = dma.hbm_to_vmem [thread:$0]  %s9, 2048, %s86, [#allocation9], 64, 64, 4
    $region41: #{tpu_custom_call.1} parent=1 // pred_fallthru
      _
    // Predicated region
    $region42: #{tpu_custom_call.1} parent=1 // pred_check
      _
    $region43: #{tpu_custom_call.1} parent=1 // pred_check_branch
      %93 = sbr.rel (0) target = $region45
    $region44: #{tpu_custom_call.1} parent=1 // pred_region
      _
    $region45: #{tpu_custom_call.1} parent=1 // pred_fallthru
      _
    // Predicated region
    $region46: #{tpu_custom_call.1} parent=1 // pred_check
      _
    $region47: #{tpu_custom_call.1} parent=1 // pred_check_branch
      %95 = sbr.rel (0) target = $region49
    $region48: #{tpu_custom_call.1} parent=1 // pred_region
      _
    $region49: #{tpu_custom_call.1} parent=1 // pred_fallthru
      _
    // Predicated region
    $region50: #{tpu_custom_call.1} parent=1 // pred_check
      _
    $region51: #{tpu_custom_call.1} parent=1 // pred_check_branch
      %97 = sbr.rel (0) target = $region53
    $region52: #{tpu_custom_call.1} parent=1 // pred_region
      _
    $region53: #{tpu_custom_call.1} parent=1 // pred_fallthru
      _
    // Predicated region
    $region54: #{tpu_custom_call.1} parent=1 // pred_check
      _
    $region55: #{tpu_custom_call.1} parent=1 // pred_check_branch
      %99 = sbr.rel (0) target = $region57
    $region56: #{tpu_custom_call.1} parent=1 // pred_region
      %100 = dma.done [#allocation3], 1024
    $region57: #{tpu_custom_call.1} parent=1 // pred_fallthru
      _
    // Predicated region
    $region58: #{tpu_custom_call.1} parent=1 // pred_check
      _
    $region59: #{tpu_custom_call.1} parent=1 // pred_check_branch
      %102 = sbr.rel (0) target = $region61
    $region60: #{tpu_custom_call.1} parent=1 // pred_region
      %103 = dma.done [#allocation6], 3072
    $region61: #{tpu_custom_call.1} parent=1 // pred_fallthru
      _
    // Predicated region
    $region62: #{tpu_custom_call.1} parent=1 // pred_check
      _
    $region63: #{tpu_custom_call.1} parent=1 // pred_check_branch
      %105 = sbr.rel (0) target = $region65
    $region64: #{tpu_custom_call.1} parent=1 // pred_region
      %106 = dma.done [#allocation6], 1024
    $region65: #{tpu_custom_call.1} parent=1 // pred_fallthru
      _
    // Predicated region
    $region66: #{tpu_custom_call.1} parent=1 // pred_check
      _
    $region67: #{tpu_custom_call.1} parent=1 // pred_check_branch
      %108 = sbr.rel (0) target = $region69
    $region68: #{tpu_custom_call.1} parent=1 // pred_region
      %109 = dma.done [#allocation9], 2048
    $region69: #{tpu_custom_call.1} parent=1 // pred_fallthru
      _
    // Predicated region
    $region70: #{tpu_custom_call.1} parent=1 // pred_check
      _
    $region71: #{tpu_custom_call.1} parent=1 // pred_check_branch
      %111 = sbr.rel (0) target = $region73
    $region72: #{tpu_custom_call.1} parent=1 // pred_region
      %112 = dma.done [#allocation9], 2048
    $region73: #{tpu_custom_call.1} parent=1 // pred_fallthru
      _
    %v114 = vld [vmem:[#allocation2] sm:$0xff]
    %v115 = vld [vmem:[#allocation2 + $0x8] sm:$0xff]
    %v116 = vld [vmem:[#allocation2 + $0x10] sm:$0xff]
    %v117 = vld [vmem:[#allocation2 + $0x18] sm:$0xff]
    %v118 = vld [vmem:[#allocation2 + $0x20] sm:$0xff]
    %v119 = vld [vmem:[#allocation2 + $0x28] sm:$0xff]
    %v120 = vld [vmem:[#allocation2 + $0x30] sm:$0xff]
    %v121 = vld [vmem:[#allocation2 + $0x38] sm:$0xff]
    %v122 = vpack.c.bf16 %v115, %v114
    %v123 = vpack.c.bf16 %v117, %v116
    %v124 = vpack.c.bf16 %v119, %v118
    %v125 = vpack.c.bf16 %v121, %v120
    %v126 = vld [vmem:[#allocation5] sm:$0xff]
    %v127 = vld [vmem:[#allocation5 + $0x8] sm:$0xf]
    %v128 = vld [vmem:[#allocation5 + $0xc] sm:$0xff]
    %v129 = vld [vmem:[#allocation5 + $0x14] sm:$0xf]
    %v130 = vld [vmem:[#allocation5 + $0x18] sm:$0xff]
    %v131 = vld [vmem:[#allocation5 + $0x20] sm:$0xf]
    %v132 = vld [vmem:[#allocation5 + $0x24] sm:$0xff]
    %v133 = vld [vmem:[#allocation5 + $0x2c] sm:$0xf]
    %v134 = vld [vmem:[#allocation5 + $0x30] sm:$0xff]
    %v135 = vld [vmem:[#allocation5 + $0x38] sm:$0xf]
    %v136 = vld [vmem:[#allocation5 + $0x3c] sm:$0xff]
    %v137 = vld [vmem:[#allocation5 + $0x44] sm:$0xf]
    %v138 = vld [vmem:[#allocation5 + $0x48] sm:$0xff]
    %v139 = vld [vmem:[#allocation5 + $0x50] sm:$0xf]
    %v140 = vld [vmem:[#allocation5 + $0x54] sm:$0xff]
    %v141 = vld [vmem:[#allocation5 + $0x5c] sm:$0xf]
    %v142 = vld [vmem:[#allocation5 + $0x60] sm:$0xff]
    %v143 = vld [vmem:[#allocation5 + $0x68] sm:$0xf]
    %v144 = vld [vmem:[#allocation5 + $0x6c] sm:$0xff]
    %v145 = vld [vmem:[#allocation5 + $0x74] sm:$0xf]
    %v146 = vld [vmem:[#allocation5 + $0x78] sm:$0xff]
    %v147 = vld [vmem:[#allocation5 + $0x80] sm:$0xf]
    %v148 = vld [vmem:[#allocation5 + $0x84] sm:$0xff]
    %v149 = vld [vmem:[#allocation5 + $0x8c] sm:$0xf]
    %v150 = vld [vmem:[#allocation5 + $0x90] sm:$0xff]
    %v151 = vld [vmem:[#allocation5 + $0x98] sm:$0xf]
    %v152 = vld [vmem:[#allocation5 + $0x9c] sm:$0xff]
    %v153 = vld [vmem:[#allocation5 + $0xa4] sm:$0xf]
    %v154 = vld [vmem:[#allocation5 + $0xa8] sm:$0xff]
    %v155 = vld [vmem:[#allocation5 + $0xb0] sm:$0xf]
    %v156 = vld [vmem:[#allocation5 + $0xb4] sm:$0xff]
    %v157 = vld [vmem:[#allocation5 + $0xbc] sm:$0xf]
    %v158 = vld [vmem:[%s2] sm:$0x7]
    %v160 = vlaneseq
    %v161 = vshrl.u32 %v160, 7
    %v162 = vsub.s32 0, %v161
    %v163 = vrot.slane %v158, %v162
    %v164 = vlaneseq
    %v165 = vshrl.u32 %v164, 7
    %v166 = vsub.s32 1, %v165
    %v167 = vrot.slane %v158, %v166
    %v168 = vlaneseq
    %v169 = vshrl.u32 %v168, 7
    %v170 = vsub.s32 2, %v169
    %v171 = vrot.slane %v158, %v170
    %v207 = vunpack.c.l.b16 %v126
    %v208 = vunpack.c.h.b16 %v126
    %v209 = vunpack.c.l.b16 %v127
    %v210 = vunpack.c.l.b16 %v128
    %v211 = vunpack.c.h.b16 %v128
    %v212 = vunpack.c.l.b16 %v129
    %v213 = vunpack.c.l.b16 %v130
    %v214 = vunpack.c.h.b16 %v130
    %v215 = vunpack.c.l.b16 %v131
    %v216 = vunpack.c.l.b16 %v132
    %v217 = vunpack.c.h.b16 %v132
    %v218 = vunpack.c.l.b16 %v133
    %v219 = vunpack.c.l.b16 %v134
    %v220 = vunpack.c.h.b16 %v134
    %v221 = vunpack.c.l.b16 %v135
    %v222 = vunpack.c.l.b16 %v136
    %v223 = vunpack.c.h.b16 %v136
    %v224 = vunpack.c.l.b16 %v137
    %v225 = vunpack.c.l.b16 %v138
    %v226 = vunpack.c.h.b16 %v138
    %v227 = vunpack.c.l.b16 %v139
    %v228 = vunpack.c.l.b16 %v140
    %v229 = vunpack.c.h.b16 %v140
    %v230 = vunpack.c.l.b16 %v141
    %v231 = vunpack.c.l.b16 %v142
    %v232 = vunpack.c.h.b16 %v142
    %v233 = vunpack.c.l.b16 %v143
    %v234 = vunpack.c.l.b16 %v144
    %v235 = vunpack.c.h.b16 %v144
    %v236 = vunpack.c.l.b16 %v145
    %v237 = vunpack.c.l.b16 %v146
    %v238 = vunpack.c.h.b16 %v146
    %v239 = vunpack.c.l.b16 %v147
    %v240 = vunpack.c.l.b16 %v148
    %v241 = vunpack.c.h.b16 %v148
    %v242 = vunpack.c.l.b16 %v149
    %v243 = vunpack.c.l.b16 %v150
    %v244 = vunpack.c.h.b16 %v150
    %v245 = vunpack.c.l.b16 %v151
    %v246 = vunpack.c.l.b16 %v152
    %v247 = vunpack.c.h.b16 %v152
    %v248 = vunpack.c.l.b16 %v153
    %v249 = vunpack.c.l.b16 %v154
    %v250 = vunpack.c.h.b16 %v154
    %v251 = vunpack.c.l.b16 %v155
    %v252 = vunpack.c.l.b16 %v156
    %v253 = vunpack.c.h.b16 %v156
    %v254 = vunpack.c.l.b16 %v157
    %v255 = vpack.c.b16 %v210, %v207
    %v256 = vpack.c.b16 %v211, %v208
    %v257 = vpack.c.b16 %v212, %v209
    %v258 = vpack.c.b16 %v216, %v213
    %v259 = vpack.c.b16 %v217, %v214
    %v260 = vpack.c.b16 %v218, %v215
    %v261 = vpack.c.b16 %v222, %v219
    %v262 = vpack.c.b16 %v223, %v220
    %v263 = vpack.c.b16 %v224, %v221
    %v264 = vpack.c.b16 %v228, %v225
    %v265 = vpack.c.b16 %v229, %v226
    %v266 = vpack.c.b16 %v230, %v227
    %v267 = vpack.c.b16 %v234, %v231
    %v268 = vpack.c.b16 %v235, %v232
    %v269 = vpack.c.b16 %v236, %v233
    %v270 = vpack.c.b16 %v240, %v237
    %v271 = vpack.c.b16 %v241, %v238
    %v272 = vpack.c.b16 %v242, %v239
    %v273 = vpack.c.b16 %v246, %v243
    %v274 = vpack.c.b16 %v247, %v244
    %v275 = vpack.c.b16 %v248, %v245
    %v276 = vpack.c.b16 %v252, %v249
    %v277 = vpack.c.b16 %v253, %v250
    %v278 = vpack.c.b16 %v254, %v251
    %303 = vmatprep.subr.bf16.mxu0 %v256
    %304 = vmatpush1.bf16.msra.mxu0 %v255
    %305 = vmatprep.subr.bf16.mxu0 %v259
    %306 = vmatpush1.bf16.msra.mxu0 %v258
    %307 = vmatprep.subr.bf16.mxu0 %v262
    %308 = vmatpush1.bf16.msra.mxu0 %v261
    %309 = vmatprep.subr.bf16.mxu0 %v265
    %310 = vmatpush1.bf16.msra.mxu0 %v264
    %311 = vmatprep.subr.bf16.mxu0 %v268
    %312 = vmatpush1.bf16.msra.mxu0 %v267
    %313 = vmatprep.subr.bf16.mxu0 %v271
    %314 = vmatpush1.bf16.msra.mxu0 %v270
    %315 = vmatprep.subr.bf16.mxu0 %v274
    %316 = vmatpush1.bf16.msra.mxu0 %v273
    %317 = vmatprep.subr.bf16.mxu0 %v277
    %318 = vmatpush1.bf16.msra.mxu0 %v276
    %319 = vmatprep.subr.bf16.mxu0 0
    %320 = vmatpush1.bf16.msra.mxu0 0
    %321 = vmatprep.subr.bf16.mxu0 0
    %322 = vmatpush1.bf16.msra.mxu0 0
    %323 = vmatprep.subr.bf16.mxu0 0
    %324 = vmatpush1.bf16.msra.mxu0 0
    %325 = vmatprep.subr.bf16.mxu0 0
    %326 = vmatpush1.bf16.msra.mxu0 0
    %327 = vmatprep.subr.bf16.mxu0 0
    %328 = vmatpush1.bf16.msra.mxu0 0
    %329 = vmatprep.subr.bf16.mxu0 0
    %330 = vmatpush1.bf16.msra.mxu0 0
    %331 = vmatprep.subr.bf16.mxu0 0
    %332 = vmatpush1.bf16.msra.mxu0 0
    %333 = vmatprep.subr.bf16.mxu0 0
    %334 = vmatpush1.bf16.msra.mxu0 0
    %335 = vmatprep.mubr.bf16.mxu0 0
    %336 = vmatmul.mubr.bf16.gmra.mrb[0].mxu0 %v122
    %v337 = vpop.f32.mrb[0].mxu0
    %v338 = vadd.f32 %v163, %v337
    %v339 = vpop.f32.mrb[0].mxu0
    %v340 = vadd.f32 %v167, %v339
    %v341 = vpop.f32.mrb[0].mxu0
    %v342 = vadd.f32 %v163, %v341
    %v343 = vpop.f32.mrb[0].mxu0
    %v344 = vadd.f32 %v167, %v343
    %345 = vmatprep.mubr.bf16.mxu0 0
    %346 = vmatmul.mubr.bf16.gmra.mrb[0].mxu0 %v123
    %v347 = vpop.f32.mrb[0].mxu0
    %v348 = vadd.f32 %v163, %v347
    %v349 = vpop.f32.mrb[0].mxu0
    %v350 = vadd.f32 %v167, %v349
    %v351 = vpop.f32.mrb[0].mxu0
    %v352 = vadd.f32 %v163, %v351
    %v353 = vpop.f32.mrb[0].mxu0
    %v354 = vadd.f32 %v167, %v353
    %355 = vmatprep.mubr.bf16.mxu0 0
    %356 = vmatmul.mubr.bf16.gmra.mrb[0].mxu0 %v124
    %v357 = vpop.f32.mrb[0].mxu0
    %v358 = vadd.f32 %v163, %v357
    %v359 = vpop.f32.mrb[0].mxu0
    %v360 = vadd.f32 %v167, %v359
    %v361 = vpop.f32.mrb[0].mxu0
    %v362 = vadd.f32 %v163, %v361
    %v363 = vpop.f32.mrb[0].mxu0
    %v364 = vadd.f32 %v167, %v363
    %365 = vmatprep.mubr.bf16.mxu0 0
    %366 = vmatmul.mubr.bf16.gmra.mrb[0].mxu0 %v125
    %v367 = vpop.f32.mrb[0].mxu0
    %v368 = vadd.f32 %v163, %v367
    %v369 = vpop.f32.mrb[0].mxu0
    %v370 = vadd.f32 %v167, %v369
    %v371 = vpop.f32.mrb[0].mxu0
    %v372 = vadd.f32 %v163, %v371
    %v373 = vpop.f32.mrb[0].mxu0
    %v374 = vadd.f32 %v167, %v373
    %375 = vdwg.mxu0
    %376 = vmatprep.subr.bf16.mxu0 0
    %377 = vmatpush1.bf16.msra.mxu0 %v257
    %378 = vmatprep.subr.bf16.mxu0 0
    %379 = vmatpush1.bf16.msra.mxu0 %v260
    %380 = vmatprep.subr.bf16.mxu0 0
    %381 = vmatpush1.bf16.msra.mxu0 %v263
    %382 = vmatprep.subr.bf16.mxu0 0
    %383 = vmatpush1.bf16.msra.mxu0 %v266
    %384 = vmatprep.subr.bf16.mxu0 0
    %385 = vmatpush1.bf16.msra.mxu0 %v269
    %386 = vmatprep.subr.bf16.mxu0 0
    %387 = vmatpush1.bf16.msra.mxu0 %v272
    %388 = vmatprep.subr.bf16.mxu0 0
    %389 = vmatpush1.bf16.msra.mxu0 %v275
    %390 = vmatprep.subr.bf16.mxu0 0
    %391 = vmatpush1.bf16.msra.mxu0 %v278
    %392 = vmatprep.subr.bf16.mxu0 0
    %393 = vmatpush1.bf16.msra.mxu0 0
    %394 = vmatprep.subr.bf16.mxu0 0
    %395 = vmatpush1.bf16.msra.mxu0 0
    %396 = vmatprep.subr.bf16.mxu0 0
    %397 = vmatpush1.bf16.msra.mxu0 0
    %398 = vmatprep.subr.bf16.mxu0 0
    %399 = vmatpush1.bf16.msra.mxu0 0
    %400 = vmatprep.subr.bf16.mxu0 0
    %401 = vmatpush1.bf16.msra.mxu0 0
    %402 = vmatprep.subr.bf16.mxu0 0
    %403 = vmatpush1.bf16.msra.mxu0 0
    %404 = vmatprep.subr.bf16.mxu0 0
    %405 = vmatpush1.bf16.msra.mxu0 0
    %406 = vmatprep.subr.bf16.mxu0 0
    %407 = vmatpush1.bf16.msra.mxu0 0
    %408 = vmatprep.mubr.bf16.mxu0 0
    %409 = vmatmul.mubr.bf16.gmra.mrb[0].mxu0 %v122
    %v410 = vpop.f32.mrb[0].mxu0
    %v411 = vadd.f32 %v171, %v410
    %v412 = vpop.f32.mrb[0].mxu0
    %v413 = vpop.f32.mrb[0].mxu0
    %v414 = vadd.f32 %v171, %v413
    %v415 = vpop.f32.mrb[0].mxu0
    %416 = vmatprep.mubr.bf16.mxu0 0
    %417 = vmatmul.mubr.bf16.gmra.mrb[0].mxu0 %v123
    %v418 = vpop.f32.mrb[0].mxu0
    %v419 = vadd.f32 %v171, %v418
    %v420 = vpop.f32.mrb[0].mxu0
    %v421 = vpop.f32.mrb[0].mxu0
    %v422 = vadd.f32 %v171, %v421
    %v423 = vpop.f32.mrb[0].mxu0
    %424 = vmatprep.mubr.bf16.mxu0 0
    %425 = vmatmul.mubr.bf16.gmra.mrb[0].mxu0 %v124
    %v426 = vpop.f32.mrb[0].mxu0
    %v427 = vadd.f32 %v171, %v426
    %v428 = vpop.f32.mrb[0].mxu0
    %v429 = vpop.f32.mrb[0].mxu0
    %v430 = vadd.f32 %v171, %v429
    %v431 = vpop.f32.mrb[0].mxu0
    %432 = vmatprep.mubr.bf16.mxu0 0
    %433 = vmatmul.mubr.bf16.gmra.mrb[0].mxu0 %v125
    %v434 = vpop.f32.mrb[0].mxu0
    %v435 = vadd.f32 %v171, %v434
    %v436 = vpop.f32.mrb[0].mxu0
    %v437 = vpop.f32.mrb[0].mxu0
    %v438 = vadd.f32 %v171, %v437
    %v439 = vpop.f32.mrb[0].mxu0
    %440 = vdwg.mxu0
    %v441 = vpack.c.bf16 %v342, %v338
    %v442 = vpack.c.bf16 %v344, %v340
    %v443 = vpack.c.bf16 %v414, %v411
    %v444 = vpack.c.bf16 %v352, %v348
    %v445 = vpack.c.bf16 %v354, %v350
    %v446 = vpack.c.bf16 %v422, %v419
    %v447 = vpack.c.bf16 %v362, %v358
    %v448 = vpack.c.bf16 %v364, %v360
    %v449 = vpack.c.bf16 %v430, %v427
    %v450 = vpack.c.bf16 %v372, %v368
    %v451 = vpack.c.bf16 %v374, %v370
    %v452 = vpack.c.bf16 %v438, %v435
    %457 = vrot.lane.b32.xlu0 %v441, 96
    %v458 = vpop.permute.xlu0 %457
    %459 = vrot.lane.b32.xlu0 %v444, 96
    %v460 = vpop.permute.xlu0 %459
    %461 = vrot.lane.b32.xlu0 %v447, 96
    %v462 = vpop.permute.xlu0 %461
    %463 = vrot.lane.b32.xlu0 %v450, 96
    %v464 = vpop.permute.xlu0 %463
    %465 = vrot.lane.b32.xlu0 %v441, 64
    %v466 = vpop.permute.xlu0 %465
    %467 = vrot.lane.b32.xlu0 %v444, 64
    %v468 = vpop.permute.xlu0 %467
    %469 = vrot.lane.b32.xlu0 %v447, 64
    %v470 = vpop.permute.xlu0 %469
    %471 = vrot.lane.b32.xlu0 %v450, 64
    %v472 = vpop.permute.xlu0 %471
    %473 = vrot.lane.b32.xlu0 %v441, 32
    %v474 = vpop.permute.xlu0 %473
    %475 = vrot.lane.b32.xlu0 %v444, 32
    %v476 = vpop.permute.xlu0 %475
    %477 = vrot.lane.b32.xlu0 %v447, 32
    %v478 = vpop.permute.xlu0 %477
    %479 = vrot.lane.b32.xlu0 %v450, 32
    %v480 = vpop.permute.xlu0 %479
    %485 = vrot.lane.b32.xlu0 %v442, 96
    %v486 = vpop.permute.xlu0 %485
    %487 = vrot.lane.b32.xlu0 %v445, 96
    %v488 = vpop.permute.xlu0 %487
    %489 = vrot.lane.b32.xlu0 %v448, 96
    %v490 = vpop.permute.xlu0 %489
    %491 = vrot.lane.b32.xlu0 %v451, 96
    %v492 = vpop.permute.xlu0 %491
    %493 = vrot.lane.b32.xlu0 %v442, 64
    %v494 = vpop.permute.xlu0 %493
    %495 = vrot.lane.b32.xlu0 %v445, 64
    %v496 = vpop.permute.xlu0 %495
    %497 = vrot.lane.b32.xlu0 %v448, 64
    %v498 = vpop.permute.xlu0 %497
    %499 = vrot.lane.b32.xlu0 %v451, 64
    %v500 = vpop.permute.xlu0 %499
    %501 = vrot.lane.b32.xlu0 %v442, 32
    %v502 = vpop.permute.xlu0 %501
    %503 = vrot.lane.b32.xlu0 %v445, 32
    %v504 = vpop.permute.xlu0 %503
    %505 = vrot.lane.b32.xlu0 %v448, 32
    %v506 = vpop.permute.xlu0 %505
    %507 = vrot.lane.b32.xlu0 %v451, 32
    %v508 = vpop.permute.xlu0 %507
    %513 = vrot.lane.b32.xlu0 %v443, 96
    %v514 = vpop.permute.xlu0 %513
    %515 = vrot.lane.b32.xlu0 %v446, 96
    %v516 = vpop.permute.xlu0 %515
    %517 = vrot.lane.b32.xlu0 %v449, 96
    %v518 = vpop.permute.xlu0 %517
    %519 = vrot.lane.b32.xlu0 %v452, 96
    %v520 = vpop.permute.xlu0 %519
    %525 = vrot.lane.b32.xlu0 %v443, 64
    %v526 = vpop.permute.xlu0 %525
    %527 = vrot.lane.b32.xlu0 %v446, 64
    %v528 = vpop.permute.xlu0 %527
    %529 = vrot.lane.b32.xlu0 %v449, 64
    %v530 = vpop.permute.xlu0 %529
    %531 = vrot.lane.b32.xlu0 %v452, 64
    %v532 = vpop.permute.xlu0 %531
    %537 = vrot.lane.b32.xlu0 %v443, 32
    %v538 = vpop.permute.xlu0 %537
    %539 = vrot.lane.b32.xlu0 %v446, 32
    %v540 = vpop.permute.xlu0 %539
    %541 = vrot.lane.b32.xlu0 %v449, 32
    %v542 = vpop.permute.xlu0 %541
    %543 = vrot.lane.b32.xlu0 %v452, 32
    %v544 = vpop.permute.xlu0 %543
    %vm549 = vcmask 261120
    %v551 = vsel %vm549, %v441, 0
    %v554 = vsel %vm549, %v442, 0
    %556 = vmatprep.subr.bf16.mxu0 0
    %557 = vmatpush1.bf16.xpose.msra.mxu0 %v554
    %558 = vmatprep.subr.bf16.mxu0 0
    %559 = vmatpush1.bf16.xpose.msra.mxu0 0
    %560 = vmatprep.subr.bf16.mxu0 0
    %561 = vmatpush1.bf16.xpose.msra.mxu0 0
    %562 = vmatprep.subr.bf16.mxu0 0
    %563 = vmatpush1.bf16.xpose.msra.mxu0 0
    %564 = vmatprep.subr.bf16.mxu0 0
    %565 = vmatpush1.bf16.xpose.msra.mxu0 0
    %566 = vmatprep.subr.bf16.mxu0 0
    %567 = vmatpush1.bf16.xpose.msra.mxu0 0
    %568 = vmatprep.subr.bf16.mxu0 0
    %569 = vmatpush1.bf16.xpose.msra.mxu0 0
    %570 = vmatprep.subr.bf16.mxu0 0
    %571 = vmatpush1.bf16.xpose.msra.mxu0 0
    %572 = vmatprep.subr.bf16.mxu0 0
    %573 = vmatpush1.bf16.xpose.msra.mxu0 0
    %574 = vmatprep.subr.bf16.mxu0 0
    %575 = vmatpush1.bf16.xpose.msra.mxu0 0
    %576 = vmatprep.subr.bf16.mxu0 0
    %577 = vmatpush1.bf16.xpose.msra.mxu0 0
    %578 = vmatprep.subr.bf16.mxu0 0
    %579 = vmatpush1.bf16.xpose.msra.mxu0 0
    %580 = vmatprep.subr.bf16.mxu0 0
    %581 = vmatpush1.bf16.xpose.msra.mxu0 0
    %582 = vmatprep.subr.bf16.mxu0 0
    %583 = vmatpush1.bf16.xpose.msra.mxu0 0
    %584 = vmatprep.subr.bf16.mxu0 0
    %585 = vmatpush1.bf16.xpose.msra.mxu0 0
    %586 = vmatprep.subr.bf16.mxu0 0
    %587 = vmatpush1.bf16.xpose.msra.mxu0 0
    %588 = vmatprep.mubr.bf16.mxu0 0
    %589 = vmatmul.mubr.bf16.gmra.mrb[0].mxu0 %v551
    %v590 = vpop.f32.mrb[0].mxu0
    %v591 = vadd.f32 0.0, %v590
    %v592 = vpop.f32.mrb[0].mxu0
    %v593 = vpop.f32.mrb[0].mxu0
    %v594 = vadd.f32 0.0, %v593
    %v595 = vpop.f32.mrb[0].mxu0
    %596 = vdwg.mxu0
    %v598 = vsel %vm549, %v444, 0
    %v601 = vsel %vm549, %v445, 0
    %603 = vmatprep.subr.bf16.mxu0 0
    %604 = vmatpush1.bf16.xpose.msra.mxu0 %v601
    %605 = vmatprep.subr.bf16.mxu0 0
    %606 = vmatpush1.bf16.xpose.msra.mxu0 0
    %607 = vmatprep.subr.bf16.mxu0 0
    %608 = vmatpush1.bf16.xpose.msra.mxu0 0
    %609 = vmatprep.subr.bf16.mxu0 0
    %610 = vmatpush1.bf16.xpose.msra.mxu0 0
    %611 = vmatprep.subr.bf16.mxu0 0
    %612 = vmatpush1.bf16.xpose.msra.mxu0 0
    %613 = vmatprep.subr.bf16.mxu0 0
    %614 = vmatpush1.bf16.xpose.msra.mxu0 0
    %615 = vmatprep.subr.bf16.mxu0 0
    %616 = vmatpush1.bf16.xpose.msra.mxu0 0
    %617 = vmatprep.subr.bf16.mxu0 0
    %618 = vmatpush1.bf16.xpose.msra.mxu0 0
    %619 = vmatprep.subr.bf16.mxu0 0
    %620 = vmatpush1.bf16.xpose.msra.mxu0 0
    %621 = vmatprep.subr.bf16.mxu0 0
    %622 = vmatpush1.bf16.xpose.msra.mxu0 0
    %623 = vmatprep.subr.bf16.mxu0 0
    %624 = vmatpush1.bf16.xpose.msra.mxu0 0
    %625 = vmatprep.subr.bf16.mxu0 0
    %626 = vmatpush1.bf16.xpose.msra.mxu0 0
    %627 = vmatprep.subr.bf16.mxu0 0
    %628 = vmatpush1.bf16.xpose.msra.mxu0 0
    %629 = vmatprep.subr.bf16.mxu0 0
    %630 = vmatpush1.bf16.xpose.msra.mxu0 0
    %631 = vmatprep.subr.bf16.mxu0 0
    %632 = vmatpush1.bf16.xpose.msra.mxu0 0
    %633 = vmatprep.subr.bf16.mxu0 0
    %634 = vmatpush1.bf16.xpose.msra.mxu0 0
    %635 = vmatprep.mubr.bf16.mxu0 0
    %636 = vmatmul.mubr.bf16.gmra.mrb[0].mxu0 %v598
    %v637 = vpop.f32.mrb[0].mxu0
    %v638 = vadd.f32 0.0, %v637
    %v639 = vpop.f32.mrb[0].mxu0
    %v640 = vpop.f32.mrb[0].mxu0
    %v641 = vadd.f32 0.0, %v640
    %v642 = vpop.f32.mrb[0].mxu0
    %643 = vdwg.mxu0
    %v645 = vsel %vm549, %v447, 0
    %v648 = vsel %vm549, %v448, 0
    %650 = vmatprep.subr.bf16.mxu0 0
    %651 = vmatpush1.bf16.xpose.msra.mxu0 %v648
    %652 = vmatprep.subr.bf16.mxu0 0
    %653 = vmatpush1.bf16.xpose.msra.mxu0 0
    %654 = vmatprep.subr.bf16.mxu0 0
    %655 = vmatpush1.bf16.xpose.msra.mxu0 0
    %656 = vmatprep.subr.bf16.mxu0 0
    %657 = vmatpush1.bf16.xpose.msra.mxu0 0
    %658 = vmatprep.subr.bf16.mxu0 0
    %659 = vmatpush1.bf16.xpose.msra.mxu0 0
    %660 = vmatprep.subr.bf16.mxu0 0
    %661 = vmatpush1.bf16.xpose.msra.mxu0 0
    %662 = vmatprep.subr.bf16.mxu0 0
    %663 = vmatpush1.bf16.xpose.msra.mxu0 0
    %664 = vmatprep.subr.bf16.mxu0 0
    %665 = vmatpush1.bf16.xpose.msra.mxu0 0
    %666 = vmatprep.subr.bf16.mxu0 0
    %667 = vmatpush1.bf16.xpose.msra.mxu0 0
    %668 = vmatprep.subr.bf16.mxu0 0
    %669 = vmatpush1.bf16.xpose.msra.mxu0 0
    %670 = vmatprep.subr.bf16.mxu0 0
    %671 = vmatpush1.bf16.xpose.msra.mxu0 0
    %672 = vmatprep.subr.bf16.mxu0 0
    %673 = vmatpush1.bf16.xpose.msra.mxu0 0
    %674 = vmatprep.subr.bf16.mxu0 0
    %675 = vmatpush1.bf16.xpose.msra.mxu0 0
    %676 = vmatprep.subr.bf16.mxu0 0
    %677 = vmatpush1.bf16.xpose.msra.mxu0 0
    %678 = vmatprep.subr.bf16.mxu0 0
    %679 = vmatpush1.bf16.xpose.msra.mxu0 0
    %680 = vmatprep.subr.bf16.mxu0 0
    %681 = vmatpush1.bf16.xpose.msra.mxu0 0
    %682 = vmatprep.mubr.bf16.mxu0 0
    %683 = vmatmul.mubr.bf16.gmra.mrb[0].mxu0 %v645
    %v684 = vpop.f32.mrb[0].mxu0
    %v685 = vadd.f32 0.0, %v684
    %v686 = vpop.f32.mrb[0].mxu0
    %v687 = vpop.f32.mrb[0].mxu0
    %v688 = vadd.f32 0.0, %v687
    %v689 = vpop.f32.mrb[0].mxu0
    %690 = vdwg.mxu0
    %v692 = vsel %vm549, %v450, 0
    %v695 = vsel %vm549, %v451, 0
    %697 = vmatprep.subr.bf16.mxu0 0
    %698 = vmatpush1.bf16.xpose.msra.mxu0 %v695
    %699 = vmatprep.subr.bf16.mxu0 0
    %700 = vmatpush1.bf16.xpose.msra.mxu0 0
    %701 = vmatprep.subr.bf16.mxu0 0
    %702 = vmatpush1.bf16.xpose.msra.mxu0 0
    %703 = vmatprep.subr.bf16.mxu0 0
    %704 = vmatpush1.bf16.xpose.msra.mxu0 0
    %705 = vmatprep.subr.bf16.mxu0 0
    %706 = vmatpush1.bf16.xpose.msra.mxu0 0
    %707 = vmatprep.subr.bf16.mxu0 0
    %708 = vmatpush1.bf16.xpose.msra.mxu0 0
    %709 = vmatprep.subr.bf16.mxu0 0
    %710 = vmatpush1.bf16.xpose.msra.mxu0 0
    %711 = vmatprep.subr.bf16.mxu0 0
    %712 = vmatpush1.bf16.xpose.msra.mxu0 0
    %713 = vmatprep.subr.bf16.mxu0 0
    %714 = vmatpush1.bf16.xpose.msra.mxu0 0
    %715 = vmatprep.subr.bf16.mxu0 0
    %716 = vmatpush1.bf16.xpose.msra.mxu0 0
    %717 = vmatprep.subr.bf16.mxu0 0
    %718 = vmatpush1.bf16.xpose.msra.mxu0 0
    %719 = vmatprep.subr.bf16.mxu0 0
    %720 = vmatpush1.bf16.xpose.msra.mxu0 0
    %721 = vmatprep.subr.bf16.mxu0 0
    %722 = vmatpush1.bf16.xpose.msra.mxu0 0
    %723 = vmatprep.subr.bf16.mxu0 0
    %724 = vmatpush1.bf16.xpose.msra.mxu0 0
    %725 = vmatprep.subr.bf16.mxu0 0
    %726 = vmatpush1.bf16.xpose.msra.mxu0 0
    %727 = vmatprep.subr.bf16.mxu0 0
    %728 = vmatpush1.bf16.xpose.msra.mxu0 0
    %729 = vmatprep.mubr.bf16.mxu0 0
    %730 = vmatmul.mubr.bf16.gmra.mrb[0].mxu0 %v692
    %v731 = vpop.f32.mrb[0].mxu0
    %v732 = vadd.f32 0.0, %v731
    %v733 = vpop.f32.mrb[0].mxu0
    %v734 = vpop.f32.mrb[0].mxu0
    %v735 = vadd.f32 0.0, %v734
    %v736 = vpop.f32.mrb[0].mxu0
    %737 = vdwg.mxu0
    %v739 = vsel %vm549, %v458, 0
    %v742 = vsel %vm549, %v486, 0
    %744 = vmatprep.subr.bf16.mxu0 0
    %745 = vmatpush1.bf16.xpose.msra.mxu0 %v742
    %746 = vmatprep.subr.bf16.mxu0 0
    %747 = vmatpush1.bf16.xpose.msra.mxu0 0
    %748 = vmatprep.subr.bf16.mxu0 0
    %749 = vmatpush1.bf16.xpose.msra.mxu0 0
    %750 = vmatprep.subr.bf16.mxu0 0
    %751 = vmatpush1.bf16.xpose.msra.mxu0 0
    %752 = vmatprep.subr.bf16.mxu0 0
    %753 = vmatpush1.bf16.xpose.msra.mxu0 0
    %754 = vmatprep.subr.bf16.mxu0 0
    %755 = vmatpush1.bf16.xpose.msra.mxu0 0
    %756 = vmatprep.subr.bf16.mxu0 0
    %757 = vmatpush1.bf16.xpose.msra.mxu0 0
    %758 = vmatprep.subr.bf16.mxu0 0
    %759 = vmatpush1.bf16.xpose.msra.mxu0 0
    %760 = vmatprep.subr.bf16.mxu0 0
    %761 = vmatpush1.bf16.xpose.msra.mxu0 0
    %762 = vmatprep.subr.bf16.mxu0 0
    %763 = vmatpush1.bf16.xpose.msra.mxu0 0
    %764 = vmatprep.subr.bf16.mxu0 0
    %765 = vmatpush1.bf16.xpose.msra.mxu0 0
    %766 = vmatprep.subr.bf16.mxu0 0
    %767 = vmatpush1.bf16.xpose.msra.mxu0 0
    %768 = vmatprep.subr.bf16.mxu0 0
    %769 = vmatpush1.bf16.xpose.msra.mxu0 0
    %770 = vmatprep.subr.bf16.mxu0 0
    %771 = vmatpush1.bf16.xpose.msra.mxu0 0
    %772 = vmatprep.subr.bf16.mxu0 0
    %773 = vmatpush1.bf16.xpose.msra.mxu0 0
    %774 = vmatprep.subr.bf16.mxu0 0
    %775 = vmatpush1.bf16.xpose.msra.mxu0 0
    %776 = vmatprep.mubr.bf16.mxu0 0
    %777 = vmatmul.mubr.bf16.gmra.mrb[0].mxu0 %v739
    %v778 = vpop.f32.mrb[0].mxu0
    %v779 = vadd.f32 0.0, %v778
    %v780 = vpop.f32.mrb[0].mxu0
    %v781 = vpop.f32.mrb[0].mxu0
    %v782 = vadd.f32 0.0, %v781
    %v783 = vpop.f32.mrb[0].mxu0
    %784 = vdwg.mxu0
    %v786 = vsel %vm549, %v460, 0
    %v789 = vsel %vm549, %v488, 0
    %791 = vmatprep.subr.bf16.mxu0 0
    %792 = vmatpush1.bf16.xpose.msra.mxu0 %v789
    %793 = vmatprep.subr.bf16.mxu0 0
    %794 = vmatpush1.bf16.xpose.msra.mxu0 0
    %795 = vmatprep.subr.bf16.mxu0 0
    %796 = vmatpush1.bf16.xpose.msra.mxu0 0
    %797 = vmatprep.subr.bf16.mxu0 0
    %798 = vmatpush1.bf16.xpose.msra.mxu0 0
    %799 = vmatprep.subr.bf16.mxu0 0
    %800 = vmatpush1.bf16.xpose.msra.mxu0 0
    %801 = vmatprep.subr.bf16.mxu0 0
    %802 = vmatpush1.bf16.xpose.msra.mxu0 0
    %803 = vmatprep.subr.bf16.mxu0 0
    %804 = vmatpush1.bf16.xpose.msra.mxu0 0
    %805 = vmatprep.subr.bf16.mxu0 0
    %806 = vmatpush1.bf16.xpose.msra.mxu0 0
    %807 = vmatprep.subr.bf16.mxu0 0
    %808 = vmatpush1.bf16.xpose.msra.mxu0 0
    %809 = vmatprep.subr.bf16.mxu0 0
    %810 = vmatpush1.bf16.xpose.msra.mxu0 0
    %811 = vmatprep.subr.bf16.mxu0 0
    %812 = vmatpush1.bf16.xpose.msra.mxu0 0
    %813 = vmatprep.subr.bf16.mxu0 0
    %814 = vmatpush1.bf16.xpose.msra.mxu0 0
    %815 = vmatprep.subr.bf16.mxu0 0
    %816 = vmatpush1.bf16.xpose.msra.mxu0 0
    %817 = vmatprep.subr.bf16.mxu0 0
    %818 = vmatpush1.bf16.xpose.msra.mxu0 0
    %819 = vmatprep.subr.bf16.mxu0 0
    %820 = vmatpush1.bf16.xpose.msra.mxu0 0
    %821 = vmatprep.subr.bf16.mxu0 0
    %822 = vmatpush1.bf16.xpose.msra.mxu0 0
    %823 = vmatprep.mubr.bf16.mxu0 0
    %824 = vmatmul.mubr.bf16.gmra.mrb[0].mxu0 %v786
    %v825 = vpop.f32.mrb[0].mxu0
    %v826 = vadd.f32 0.0, %v825
    %v827 = vpop.f32.mrb[0].mxu0
    %v828 = vpop.f32.mrb[0].mxu0
    %v829 = vadd.f32 0.0, %v828
    %v830 = vpop.f32.mrb[0].mxu0
    %831 = vdwg.mxu0
    %v833 = vsel %vm549, %v462, 0
    %v836 = vsel %vm549, %v490, 0
    %838 = vmatprep.subr.bf16.mxu0 0
    %839 = vmatpush1.bf16.xpose.msra.mxu0 %v836
    %840 = vmatprep.subr.bf16.mxu0 0
    %841 = vmatpush1.bf16.xpose.msra.mxu0 0
    %842 = vmatprep.subr.bf16.mxu0 0
    %843 = vmatpush1.bf16.xpose.msra.mxu0 0
    %844 = vmatprep.subr.bf16.mxu0 0
    %845 = vmatpush1.bf16.xpose.msra.mxu0 0
    %846 = vmatprep.subr.bf16.mxu0 0
    %847 = vmatpush1.bf16.xpose.msra.mxu0 0
    %848 = vmatprep.subr.bf16.mxu0 0
    %849 = vmatpush1.bf16.xpose.msra.mxu0 0
    %850 = vmatprep.subr.bf16.mxu0 0
    %851 = vmatpush1.bf16.xpose.msra.mxu0 0
    %852 = vmatprep.subr.bf16.mxu0 0
    %853 = vmatpush1.bf16.xpose.msra.mxu0 0
    %854 = vmatprep.subr.bf16.mxu0 0
    %855 = vmatpush1.bf16.xpose.msra.mxu0 0
    %856 = vmatprep.subr.bf16.mxu0 0
    %857 = vmatpush1.bf16.xpose.msra.mxu0 0
    %858 = vmatprep.subr.bf16.mxu0 0
    %859 = vmatpush1.bf16.xpose.msra.mxu0 0
    %860 = vmatprep.subr.bf16.mxu0 0
    %861 = vmatpush1.bf16.xpose.msra.mxu0 0
    %862 = vmatprep.subr.bf16.mxu0 0
    %863 = vmatpush1.bf16.xpose.msra.mxu0 0
    %864 = vmatprep.subr.bf16.mxu0 0
    %865 = vmatpush1.bf16.xpose.msra.mxu0 0
    %866 = vmatprep.subr.bf16.mxu0 0
    %867 = vmatpush1.bf16.xpose.msra.mxu0 0
    %868 = vmatprep.subr.bf16.mxu0 0
    %869 = vmatpush1.bf16.xpose.msra.mxu0 0
    %870 = vmatprep.mubr.bf16.mxu0 0
    %871 = vmatmul.mubr.bf16.gmra.mrb[0].mxu0 %v833
    %v872 = vpop.f32.mrb[0].mxu0
    %v873 = vadd.f32 0.0, %v872
    %v874 = vpop.f32.mrb[0].mxu0
    %v875 = vpop.f32.mrb[0].mxu0
    %v876 = vadd.f32 0.0, %v875
    %v877 = vpop.f32.mrb[0].mxu0
    %878 = vdwg.mxu0
    %v880 = vsel %vm549, %v464, 0
    %v883 = vsel %vm549, %v492, 0
    %885 = vmatprep.subr.bf16.mxu0 0
    %886 = vmatpush1.bf16.xpose.msra.mxu0 %v883
    %887 = vmatprep.subr.bf16.mxu0 0
    %888 = vmatpush1.bf16.xpose.msra.mxu0 0
    %889 = vmatprep.subr.bf16.mxu0 0
    %890 = vmatpush1.bf16.xpose.msra.mxu0 0
    %891 = vmatprep.subr.bf16.mxu0 0
    %892 = vmatpush1.bf16.xpose.msra.mxu0 0
    %893 = vmatprep.subr.bf16.mxu0 0
    %894 = vmatpush1.bf16.xpose.msra.mxu0 0
    %895 = vmatprep.subr.bf16.mxu0 0
    %896 = vmatpush1.bf16.xpose.msra.mxu0 0
    %897 = vmatprep.subr.bf16.mxu0 0
    %898 = vmatpush1.bf16.xpose.msra.mxu0 0
    %899 = vmatprep.subr.bf16.mxu0 0
    %900 = vmatpush1.bf16.xpose.msra.mxu0 0
    %901 = vmatprep.subr.bf16.mxu0 0
    %902 = vmatpush1.bf16.xpose.msra.mxu0 0
    %903 = vmatprep.subr.bf16.mxu0 0
    %904 = vmatpush1.bf16.xpose.msra.mxu0 0
    %905 = vmatprep.subr.bf16.mxu0 0
    %906 = vmatpush1.bf16.xpose.msra.mxu0 0
    %907 = vmatprep.subr.bf16.mxu0 0
    %908 = vmatpush1.bf16.xpose.msra.mxu0 0
    %909 = vmatprep.subr.bf16.mxu0 0
    %910 = vmatpush1.bf16.xpose.msra.mxu0 0
    %911 = vmatprep.subr.bf16.mxu0 0
    %912 = vmatpush1.bf16.xpose.msra.mxu0 0
    %913 = vmatprep.subr.bf16.mxu0 0
    %914 = vmatpush1.bf16.xpose.msra.mxu0 0
    %915 = vmatprep.subr.bf16.mxu0 0
    %916 = vmatpush1.bf16.xpose.msra.mxu0 0
    %917 = vmatprep.mubr.bf16.mxu0 0
    %918 = vmatmul.mubr.bf16.gmra.mrb[0].mxu0 %v880
    %v919 = vpop.f32.mrb[0].mxu0
    %v920 = vadd.f32 0.0, %v919
    %v921 = vpop.f32.mrb[0].mxu0
    %v922 = vpop.f32.mrb[0].mxu0
    %v923 = vadd.f32 0.0, %v922
    %v924 = vpop.f32.mrb[0].mxu0
    %925 = vdwg.mxu0
    %v927 = vsel %vm549, %v466, 0
    %v930 = vsel %vm549, %v494, 0
    %932 = vmatprep.subr.bf16.mxu0 0
    %933 = vmatpush1.bf16.xpose.msra.mxu0 %v930
    %934 = vmatprep.subr.bf16.mxu0 0
    %935 = vmatpush1.bf16.xpose.msra.mxu0 0
    %936 = vmatprep.subr.bf16.mxu0 0
    %937 = vmatpush1.bf16.xpose.msra.mxu0 0
    %938 = vmatprep.subr.bf16.mxu0 0
    %939 = vmatpush1.bf16.xpose.msra.mxu0 0
    %940 = vmatprep.subr.bf16.mxu0 0
    %941 = vmatpush1.bf16.xpose.msra.mxu0 0
    %942 = vmatprep.subr.bf16.mxu0 0
    %943 = vmatpush1.bf16.xpose.msra.mxu0 0
    %944 = vmatprep.subr.bf16.mxu0 0
    %945 = vmatpush1.bf16.xpose.msra.mxu0 0
    %946 = vmatprep.subr.bf16.mxu0 0
    %947 = vmatpush1.bf16.xpose.msra.mxu0 0
    %948 = vmatprep.subr.bf16.mxu0 0
    %949 = vmatpush1.bf16.xpose.msra.mxu0 0
    %950 = vmatprep.subr.bf16.mxu0 0
    %951 = vmatpush1.bf16.xpose.msra.mxu0 0
    %952 = vmatprep.subr.bf16.mxu0 0
    %953 = vmatpush1.bf16.xpose.msra.mxu0 0
    %954 = vmatprep.subr.bf16.mxu0 0
    %955 = vmatpush1.bf16.xpose.msra.mxu0 0
    %956 = vmatprep.subr.bf16.mxu0 0
    %957 = vmatpush1.bf16.xpose.msra.mxu0 0
    %958 = vmatprep.subr.bf16.mxu0 0
    %959 = vmatpush1.bf16.xpose.msra.mxu0 0
    %960 = vmatprep.subr.bf16.mxu0 0
    %961 = vmatpush1.bf16.xpose.msra.mxu0 0
    %962 = vmatprep.subr.bf16.mxu0 0
    %963 = vmatpush1.bf16.xpose.msra.mxu0 0
    %964 = vmatprep.mubr.bf16.mxu0 0
    %965 = vmatmul.mubr.bf16.gmra.mrb[0].mxu0 %v927
    %v966 = vpop.f32.mrb[0].mxu0
    %v967 = vadd.f32 0.0, %v966
    %v968 = vpop.f32.mrb[0].mxu0
    %v969 = vpop.f32.mrb[0].mxu0
    %v970 = vadd.f32 0.0, %v969
    %v971 = vpop.f32.mrb[0].mxu0
    %972 = vdwg.mxu0
    %v974 = vsel %vm549, %v468, 0
    %v977 = vsel %vm549, %v496, 0
    %979 = vmatprep.subr.bf16.mxu0 0
    %980 = vmatpush1.bf16.xpose.msra.mxu0 %v977
    %981 = vmatprep.subr.bf16.mxu0 0
    %982 = vmatpush1.bf16.xpose.msra.mxu0 0
    %983 = vmatprep.subr.bf16.mxu0 0
    %984 = vmatpush1.bf16.xpose.msra.mxu0 0
    %985 = vmatprep.subr.bf16.mxu0 0
    %986 = vmatpush1.bf16.xpose.msra.mxu0 0
    %987 = vmatprep.subr.bf16.mxu0 0
    %988 = vmatpush1.bf16.xpose.msra.mxu0 0
    %989 = vmatprep.subr.bf16.mxu0 0
    %990 = vmatpush1.bf16.xpose.msra.mxu0 0
    %991 = vmatprep.subr.bf16.mxu0 0
    %992 = vmatpush1.bf16.xpose.msra.mxu0 0
    %993 = vmatprep.subr.bf16.mxu0 0
    %994 = vmatpush1.bf16.xpose.msra.mxu0 0
    %995 = vmatprep.subr.bf16.mxu0 0
    %996 = vmatpush1.bf16.xpose.msra.mxu0 0
    %997 = vmatprep.subr.bf16.mxu0 0
    %998 = vmatpush1.bf16.xpose.msra.mxu0 0
    %999 = vmatprep.subr.bf16.mxu0 0
    %1000 = vmatpush1.bf16.xpose.msra.mxu0 0
    %1001 = vmatprep.subr.bf16.mxu0 0
    %1002 = vmatpush1.bf16.xpose.msra.mxu0 0
    %1003 = vmatprep.subr.bf16.mxu0 0
    %1004 = vmatpush1.bf16.xpose.msra.mxu0 0
    %1005 = vmatprep.subr.bf16.mxu0 0
    %1006 = vmatpush1.bf16.xpose.msra.mxu0 0
    %1007 = vmatprep.subr.bf16.mxu0 0
    %1008 = vmatpush1.bf16.xpose.msra.mxu0 0
    %1009 = vmatprep.subr.bf16.mxu0 0
    %1010 = vmatpush1.bf16.xpose.msra.mxu0 0
    %1011 = vmatprep.mubr.bf16.mxu0 0
    %1012 = vmatmul.mubr.bf16.gmra.mrb[0].mxu0 %v974
    %v1013 = vpop.f32.mrb[0].mxu0
    %v1014 = vadd.f32 0.0, %v1013
    %v1015 = vpop.f32.mrb[0].mxu0
    %v1016 = vpop.f32.mrb[0].mxu0
    %v1017 = vadd.f32 0.0, %v1016
    %v1018 = vpop.f32.mrb[0].mxu0
    %1019 = vdwg.mxu0
    %v1021 = vsel %vm549, %v470, 0
    %v1024 = vsel %vm549, %v498, 0
    %1026 = vmatprep.subr.bf16.mxu0 0
    %1027 = vmatpush1.bf16.xpose.msra.mxu0 %v1024
    %1028 = vmatprep.subr.bf16.mxu0 0
    %1029 = vmatpush1.bf16.xpose.msra.mxu0 0
    %1030 = vmatprep.subr.bf16.mxu0 0
    %1031 = vmatpush1.bf16.xpose.msra.mxu0 0
    %1032 = vmatprep.subr.bf16.mxu0 0
    %1033 = vmatpush1.bf16.xpose.msra.mxu0 0
    %1034 = vmatprep.subr.bf16.mxu0 0
    %1035 = vmatpush1.bf16.xpose.msra.mxu0 0
    %1036 = vmatprep.subr.bf16.mxu0 0
    %1037 = vmatpush1.bf16.xpose.msra.mxu0 0
    %1038 = vmatprep.subr.bf16.mxu0 0
    %1039 = vmatpush1.bf16.xpose.msra.mxu0 0
    %1040 = vmatprep.subr.bf16.mxu0 0
    %1041 = vmatpush1.bf16.xpose.msra.mxu0 0
    %1042 = vmatprep.subr.bf16.mxu0 0
    %1043 = vmatpush1.bf16.xpose.msra.mxu0 0
    %1044 = vmatprep.subr.bf16.mxu0 0
    %1045 = vmatpush1.bf16.xpose.msra.mxu0 0
    %1046 = vmatprep.subr.bf16.mxu0 0
    %1047 = vmatpush1.bf16.xpose.msra.mxu0 0
    %1048 = vmatprep.subr.bf16.mxu0 0
    %1049 = vmatpush1.bf16.xpose.msra.mxu0 0
    %1050 = vmatprep.subr.bf16.mxu0 0
    %1051 = vmatpush1.bf16.xpose.msra.mxu0 0
    %1052 = vmatprep.subr.bf16.mxu0 0
    %1053 = vmatpush1.bf16.xpose.msra.mxu0 0
    %1054 = vmatprep.subr.bf16.mxu0 0
    %1055 = vmatpush1.bf16.xpose.msra.mxu0 0
    %1056 = vmatprep.subr.bf16.mxu0 0
    %1057 = vmatpush1.bf16.xpose.msra.mxu0 0
    %1058 = vmatprep.mubr.bf16.mxu0 0
    %1059 = vmatmul.mubr.bf16.gmra.mrb[0].mxu0 %v1021
    %v1060 = vpop.f32.mrb[0].mxu0
    %v1061 = vadd.f32 0.0, %v1060
    %v1062 = vpop.f32.mrb[0].mxu0
    %v1063 = vpop.f32.mrb[0].mxu0
    %v1064 = vadd.f32 0.0, %v1063
    %v1065 = vpop.f32.mrb[0].mxu0
    %1066 = vdwg.mxu0
    %v1068 = vsel %vm549, %v472, 0
    %v1071 = vsel %vm549, %v500, 0
    %1073 = vmatprep.subr.bf16.mxu0 0
    %1074 = vmatpush1.bf16.xpose.msra.mxu0 %v1071
    %1075 = vmatprep.subr.bf16.mxu0 0
    %1076 = vmatpush1.bf16.xpose.msra.mxu0 0
    %1077 = vmatprep.subr.bf16.mxu0 0
    %1078 = vmatpush1.bf16.xpose.msra.mxu0 0
    %1079 = vmatprep.subr.bf16.mxu0 0
    %1080 = vmatpush1.bf16.xpose.msra.mxu0 0
    %1081 = vmatprep.subr.bf16.mxu0 0
    %1082 = vmatpush1.bf16.xpose.msra.mxu0 0
    %1083 = vmatprep.subr.bf16.mxu0 0
    %1084 = vmatpush1.bf16.xpose.msra.mxu0 0
    %1085 = vmatprep.subr.bf16.mxu0 0
    %1086 = vmatpush1.bf16.xpose.msra.mxu0 0
    %1087 = vmatprep.subr.bf16.mxu0 0
    %1088 = vmatpush1.bf16.xpose.msra.mxu0 0
    %1089 = vmatprep.subr.bf16.mxu0 0
    %1090 = vmatpush1.bf16.xpose.msra.mxu0 0
    %1091 = vmatprep.subr.bf16.mxu0 0
    %1092 = vmatpush1.bf16.xpose.msra.mxu0 0
    %1093 = vmatprep.subr.bf16.mxu0 0
    %1094 = vmatpush1.bf16.xpose.msra.mxu0 0
    %1095 = vmatprep.subr.bf16.mxu0 0
    %1096 = vmatpush1.bf16.xpose.msra.mxu0 0
    %1097 = vmatprep.subr.bf16.mxu0 0
    %1098 = vmatpush1.bf16.xpose.msra.mxu0 0
    %1099 = vmatprep.subr.bf16.mxu0 0
    %1100 = vmatpush1.bf16.xpose.msra.mxu0 0
    %1101 = vmatprep.subr.bf16.mxu0 0
    %1102 = vmatpush1.bf16.xpose.msra.mxu0 0
    %1103 = vmatprep.subr.bf16.mxu0 0
    %1104 = vmatpush1.bf16.xpose.msra.mxu0 0
    %1105 = vmatprep.mubr.bf16.mxu0 0
    %1106 = vmatmul.mubr.bf16.gmra.mrb[0].mxu0 %v1068
    %v1107 = vpop.f32.mrb[0].mxu0
    %v1108 = vadd.f32 0.0, %v1107
    %v1109 = vpop.f32.mrb[0].mxu0
    %v1110 = vpop.f32.mrb[0].mxu0
    %v1111 = vadd.f32 0.0, %v1110
    %v1112 = vpop.f32.mrb[0].mxu0
    %1113 = vdwg.mxu0
    %v1115 = vsel %vm549, %v474, 0
    %v1118 = vsel %vm549, %v502, 0
    %1120 = vmatprep.subr.bf16.mxu0 0
    %1121 = vmatpush1.bf16.xpose.msra.mxu0 %v1118
    %1122 = vmatprep.subr.bf16.mxu0 0
    %1123 = vmatpush1.bf16.xpose.msra.mxu0 0
    %1124 = vmatprep.subr.bf16.mxu0 0
    %1125 = vmatpush1.bf16.xpose.msra.mxu0 0
    %1126 = vmatprep.subr.bf16.mxu0 0
    %1127 = vmatpush1.bf16.xpose.msra.mxu0 0
    %1128 = vmatprep.subr.bf16.mxu0 0
    %1129 = vmatpush1.bf16.xpose.msra.mxu0 0
    %1130 = vmatprep.subr.bf16.mxu0 0
    %1131 = vmatpush1.bf16.xpose.msra.mxu0 0
    %1132 = vmatprep.subr.bf16.mxu0 0
    %1133 = vmatpush1.bf16.xpose.msra.mxu0 0
    %1134 = vmatprep.subr.bf16.mxu0 0
    %1135 = vmatpush1.bf16.xpose.msra.mxu0 0
    %1136 = vmatprep.subr.bf16.mxu0 0
    %1137 = vmatpush1.bf16.xpose.msra.mxu0 0
    %1138 = vmatprep.subr.bf16.mxu0 0
    %1139 = vmatpush1.bf16.xpose.msra.mxu0 0
    %1140 = vmatprep.subr.bf16.mxu0 0
    %1141 = vmatpush1.bf16.xpose.msra.mxu0 0
    %1142 = vmatprep.subr.bf16.mxu0 0
    %1143 = vmatpush1.bf16.xpose.msra.mxu0 0
    %1144 = vmatprep.subr.bf16.mxu0 0
    %1145 = vmatpush1.bf16.xpose.msra.mxu0 0
    %1146 = vmatprep.subr.bf16.mxu0 0
    %1147 = vmatpush1.bf16.xpose.msra.mxu0 0
    %1148 = vmatprep.subr.bf16.mxu0 0
    %1149 = vmatpush1.bf16.xpose.msra.mxu0 0
    %1150 = vmatprep.subr.bf16.mxu0 0
    %1151 = vmatpush1.bf16.xpose.msra.mxu0 0
    %1152 = vmatprep.mubr.bf16.mxu0 0
    %1153 = vmatmul.mubr.bf16.gmra.mrb[0].mxu0 %v1115
    %v1154 = vpop.f32.mrb[0].mxu0
    %v1155 = vadd.f32 0.0, %v1154
    %v1156 = vpop.f32.mrb[0].mxu0
    %v1157 = vpop.f32.mrb[0].mxu0
    %v1158 = vadd.f32 0.0, %v1157
    %v1159 = vpop.f32.mrb[0].mxu0
    %1160 = vdwg.mxu0
    %v1162 = vsel %vm549, %v476, 0
    %v1165 = vsel %vm549, %v504, 0
    %1167 = vmatprep.subr.bf16.mxu0 0
    %1168 = vmatpush1.bf16.xpose.msra.mxu0 %v1165
    %1169 = vmatprep.subr.bf16.mxu0 0
    %1170 = vmatpush1.bf16.xpose.msra.mxu0 0
    %1171 = vmatprep.subr.bf16.mxu0 0
    %1172 = vmatpush1.bf16.xpose.msra.mxu0 0
    %1173 = vmatprep.subr.bf16.mxu0 0
    %1174 = vmatpush1.bf16.xpose.msra.mxu0 0
    %1175 = vmatprep.subr.bf16.mxu0 0
    %1176 = vmatpush1.bf16.xpose.msra.mxu0 0
    %1177 = vmatprep.subr.bf16.mxu0 0
    %1178 = vmatpush1.bf16.xpose.msra.mxu0 0
    %1179 = vmatprep.subr.bf16.mxu0 0
    %1180 = vmatpush1.bf16.xpose.msra.mxu0 0
    %1181 = vmatprep.subr.bf16.mxu0 0
    %1182 = vmatpush1.bf16.xpose.msra.mxu0 0
    %1183 = vmatprep.subr.bf16.mxu0 0
    %1184 = vmatpush1.bf16.xpose.msra.mxu0 0
    %1185 = vmatprep.subr.bf16.mxu0 0
    %1186 = vmatpush1.bf16.xpose.msra.mxu0 0
    %1187 = vmatprep.subr.bf16.mxu0 0
    %1188 = vmatpush1.bf16.xpose.msra.mxu0 0
    %1189 = vmatprep.subr.bf16.mxu0 0
    %1190 = vmatpush1.bf16.xpose.msra.mxu0 0
    %1191 = vmatprep.subr.bf16.mxu0 0
    %1192 = vmatpush1.bf16.xpose.msra.mxu0 0
    %1193 = vmatprep.subr.bf16.mxu0 0
    %1194 = vmatpush1.bf16.xpose.msra.mxu0 0
    %1195 = vmatprep.subr.bf16.mxu0 0
    %1196 = vmatpush1.bf16.xpose.msra.mxu0 0
    %1197 = vmatprep.subr.bf16.mxu0 0
    %1198 = vmatpush1.bf16.xpose.msra.mxu0 0
    %1199 = vmatprep.mubr.bf16.mxu0 0
    %1200 = vmatmul.mubr.bf16.gmra.mrb[0].mxu0 %v1162
    %v1201 = vpop.f32.mrb[0].mxu0
    %v1202 = vadd.f32 0.0, %v1201
    %v1203 = vpop.f32.mrb[0].mxu0
    %v1204 = vpop.f32.mrb[0].mxu0
    %v1205 = vadd.f32 0.0, %v1204
    %v1206 = vpop.f32.mrb[0].mxu0
    %1207 = vdwg.mxu0
    %v1209 = vsel %vm549, %v478, 0
    %v1212 = vsel %vm549, %v506, 0
    %1214 = vmatprep.subr.bf16.mxu0 0
    %1215 = vmatpush1.bf16.xpose.msra.mxu0 %v1212
    %1216 = vmatprep.subr.bf16.mxu0 0
    %1217 = vmatpush1.bf16.xpose.msra.mxu0 0
    %1218 = vmatprep.subr.bf16.mxu0 0
    %1219 = vmatpush1.bf16.xpose.msra.mxu0 0
    %1220 = vmatprep.subr.bf16.mxu0 0
    %1221 = vmatpush1.bf16.xpose.msra.mxu0 0
    %1222 = vmatprep.subr.bf16.mxu0 0
    %1223 = vmatpush1.bf16.xpose.msra.mxu0 0
    %1224 = vmatprep.subr.bf16.mxu0 0
    %1225 = vmatpush1.bf16.xpose.msra.mxu0 0
    %1226 = vmatprep.subr.bf16.mxu0 0
    %1227 = vmatpush1.bf16.xpose.msra.mxu0 0
    %1228 = vmatprep.subr.bf16.mxu0 0
    %1229 = vmatpush1.bf16.xpose.msra.mxu0 0
    %1230 = vmatprep.subr.bf16.mxu0 0
    %1231 = vmatpush1.bf16.xpose.msra.mxu0 0
    %1232 = vmatprep.subr.bf16.mxu0 0
    %1233 = vmatpush1.bf16.xpose.msra.mxu0 0
    %1234 = vmatprep.subr.bf16.mxu0 0
    %1235 = vmatpush1.bf16.xpose.msra.mxu0 0
    %1236 = vmatprep.subr.bf16.mxu0 0
    %1237 = vmatpush1.bf16.xpose.msra.mxu0 0
    %1238 = vmatprep.subr.bf16.mxu0 0
    %1239 = vmatpush1.bf16.xpose.msra.mxu0 0
    %1240 = vmatprep.subr.bf16.mxu0 0
    %1241 = vmatpush1.bf16.xpose.msra.mxu0 0
    %1242 = vmatprep.subr.bf16.mxu0 0
    %1243 = vmatpush1.bf16.xpose.msra.mxu0 0
    %1244 = vmatprep.subr.bf16.mxu0 0
    %1245 = vmatpush1.bf16.xpose.msra.mxu0 0
    %1246 = vmatprep.mubr.bf16.mxu0 0
    %1247 = vmatmul.mubr.bf16.gmra.mrb[0].mxu0 %v1209
    %v1248 = vpop.f32.mrb[0].mxu0
    %v1249 = vadd.f32 0.0, %v1248
    %v1250 = vpop.f32.mrb[0].mxu0
    %v1251 = vpop.f32.mrb[0].mxu0
    %v1252 = vadd.f32 0.0, %v1251
    %v1253 = vpop.f32.mrb[0].mxu0
    %1254 = vdwg.mxu0
    %v1256 = vsel %vm549, %v480, 0
    %v1259 = vsel %vm549, %v508, 0
    %1261 = vmatprep.subr.bf16.mxu0 0
    %1262 = vmatpush1.bf16.xpose.msra.mxu0 %v1259
    %1263 = vmatprep.subr.bf16.mxu0 0
    %1264 = vmatpush1.bf16.xpose.msra.mxu0 0
    %1265 = vmatprep.subr.bf16.mxu0 0
    %1266 = vmatpush1.bf16.xpose.msra.mxu0 0
    %1267 = vmatprep.subr.bf16.mxu0 0
    %1268 = vmatpush1.bf16.xpose.msra.mxu0 0
    %1269 = vmatprep.subr.bf16.mxu0 0
    %1270 = vmatpush1.bf16.xpose.msra.mxu0 0
    %1271 = vmatprep.subr.bf16.mxu0 0
    %1272 = vmatpush1.bf16.xpose.msra.mxu0 0
    %1273 = vmatprep.subr.bf16.mxu0 0
    %1274 = vmatpush1.bf16.xpose.msra.mxu0 0
    %1275 = vmatprep.subr.bf16.mxu0 0
    %1276 = vmatpush1.bf16.xpose.msra.mxu0 0
    %1277 = vmatprep.subr.bf16.mxu0 0
    %1278 = vmatpush1.bf16.xpose.msra.mxu0 0
    %1279 = vmatprep.subr.bf16.mxu0 0
    %1280 = vmatpush1.bf16.xpose.msra.mxu0 0
    %1281 = vmatprep.subr.bf16.mxu0 0
    %1282 = vmatpush1.bf16.xpose.msra.mxu0 0
    %1283 = vmatprep.subr.bf16.mxu0 0
    %1284 = vmatpush1.bf16.xpose.msra.mxu0 0
    %1285 = vmatprep.subr.bf16.mxu0 0
    %1286 = vmatpush1.bf16.xpose.msra.mxu0 0
    %1287 = vmatprep.subr.bf16.mxu0 0
    %1288 = vmatpush1.bf16.xpose.msra.mxu0 0
    %1289 = vmatprep.subr.bf16.mxu0 0
    %1290 = vmatpush1.bf16.xpose.msra.mxu0 0
    %1291 = vmatprep.subr.bf16.mxu0 0
    %1292 = vmatpush1.bf16.xpose.msra.mxu0 0
    %1293 = vmatprep.mubr.bf16.mxu0 0
    %1294 = vmatmul.mubr.bf16.gmra.mrb[0].mxu0 %v1256
    %v1295 = vpop.f32.mrb[0].mxu0
    %v1296 = vadd.f32 0.0, %v1295
    %v1297 = vpop.f32.mrb[0].mxu0
    %v1298 = vpop.f32.mrb[0].mxu0
    %v1299 = vadd.f32 0.0, %v1298
    %v1300 = vpop.f32.mrb[0].mxu0
    %1301 = vdwg.mxu0
    %vm1302 = vcmask 130048
    %v1303 = vsel %vm1302, %v591, -inf
    %1304 = vmax.xlane.f32.xlu0 %v1303
    %v1305 = vpop.xlane.xlu0 %1304
    %v1306 = vsel %vm1302, %v594, -inf
    %1307 = vmax.xlane.f32.xlu0 %v1306
    %v1308 = vpop.xlane.xlu0 %1307
    %v1309 = vsel %vm1302, %v638, -inf
    %1310 = vmax.xlane.f32.xlu0 %v1309
    %v1311 = vpop.xlane.xlu0 %1310
    %v1312 = vsel %vm1302, %v641, -inf
    %1313 = vmax.xlane.f32.xlu0 %v1312
    %v1314 = vpop.xlane.xlu0 %1313
    %v1315 = vsel %vm1302, %v685, -inf
    %1316 = vmax.xlane.f32.xlu0 %v1315
    %v1317 = vpop.xlane.xlu0 %1316
    %v1318 = vsel %vm1302, %v688, -inf
    %1319 = vmax.xlane.f32.xlu0 %v1318
    %v1320 = vpop.xlane.xlu0 %1319
    %v1321 = vsel %vm1302, %v732, -inf
    %1322 = vmax.xlane.f32.xlu0 %v1321
    %v1323 = vpop.xlane.xlu0 %1322
    %v1324 = vsel %vm1302, %v735, -inf
    %1325 = vmax.xlane.f32.xlu0 %v1324
    %v1326 = vpop.xlane.xlu0 %1325
    %v1327 = vsel %vm1302, %v779, -inf
    %1328 = vmax.xlane.f32.xlu0 %v1327
    %v1329 = vpop.xlane.xlu0 %1328
    %v1330 = vsel %vm1302, %v782, -inf
    %1331 = vmax.xlane.f32.xlu0 %v1330
    %v1332 = vpop.xlane.xlu0 %1331
    %v1333 = vsel %vm1302, %v826, -inf
    %1334 = vmax.xlane.f32.xlu0 %v1333
    %v1335 = vpop.xlane.xlu0 %1334
    %v1336 = vsel %vm1302, %v829, -inf
    %1337 = vmax.xlane.f32.xlu0 %v1336
    %v1338 = vpop.xlane.xlu0 %1337
    %v1339 = vsel %vm1302, %v873, -inf
    %1340 = vmax.xlane.f32.xlu0 %v1339
    %v1341 = vpop.xlane.xlu0 %1340
    %v1342 = vsel %vm1302, %v876, -inf
    %1343 = vmax.xlane.f32.xlu0 %v1342
    %v1344 = vpop.xlane.xlu0 %1343
    %v1345 = vsel %vm1302, %v920, -inf
    %1346 = vmax.xlane.f32.xlu0 %v1345
    %v1347 = vpop.xlane.xlu0 %1346
    %v1348 = vsel %vm1302, %v923, -inf
    %1349 = vmax.xlane.f32.xlu0 %v1348
    %v1350 = vpop.xlane.xlu0 %1349
    %v1351 = vsel %vm1302, %v967, -inf
    %1352 = vmax.xlane.f32.xlu0 %v1351
    %v1353 = vpop.xlane.xlu0 %1352
    %v1354 = vsel %vm1302, %v970, -inf
    %1355 = vmax.xlane.f32.xlu0 %v1354
    %v1356 = vpop.xlane.xlu0 %1355
    %v1357 = vsel %vm1302, %v1014, -inf
    %1358 = vmax.xlane.f32.xlu0 %v1357
    %v1359 = vpop.xlane.xlu0 %1358
    %v1360 = vsel %vm1302, %v1017, -inf
    %1361 = vmax.xlane.f32.xlu0 %v1360
    %v1362 = vpop.xlane.xlu0 %1361
    %v1363 = vsel %vm1302, %v1061, -inf
    %1364 = vmax.xlane.f32.xlu0 %v1363
    %v1365 = vpop.xlane.xlu0 %1364
    %v1366 = vsel %vm1302, %v1064, -inf
    %1367 = vmax.xlane.f32.xlu0 %v1366
    %v1368 = vpop.xlane.xlu0 %1367
    %v1369 = vsel %vm1302, %v1108, -inf
    %1370 = vmax.xlane.f32.xlu0 %v1369
    %v1371 = vpop.xlane.xlu0 %1370
    %v1372 = vsel %vm1302, %v1111, -inf
    %1373 = vmax.xlane.f32.xlu0 %v1372
    %v1374 = vpop.xlane.xlu0 %1373
    %v1375 = vsel %vm1302, %v1155, -inf
    %1376 = vmax.xlane.f32.xlu0 %v1375
    %v1377 = vpop.xlane.xlu0 %1376
    %v1378 = vsel %vm1302, %v1158, -inf
    %1379 = vmax.xlane.f32.xlu0 %v1378
    %v1380 = vpop.xlane.xlu0 %1379
    %v1381 = vsel %vm1302, %v1202, -inf
    %1382 = vmax.xlane.f32.xlu0 %v1381
    %v1383 = vpop.xlane.xlu0 %1382
    %v1384 = vsel %vm1302, %v1205, -inf
    %1385 = vmax.xlane.f32.xlu0 %v1384
    %v1386 = vpop.xlane.xlu0 %1385
    %v1387 = vsel %vm1302, %v1249, -inf
    %1388 = vmax.xlane.f32.xlu0 %v1387
    %v1389 = vpop.xlane.xlu0 %1388
    %v1390 = vsel %vm1302, %v1252, -inf
    %1391 = vmax.xlane.f32.xlu0 %v1390
    %v1392 = vpop.xlane.xlu0 %1391
    %v1393 = vsel %vm1302, %v1296, -inf
    %1394 = vmax.xlane.f32.xlu0 %v1393
    %v1395 = vpop.xlane.xlu0 %1394
    %v1396 = vsel %vm1302, %v1299, -inf
    %1397 = vmax.xlane.f32.xlu0 %v1396
    %v1398 = vpop.xlane.xlu0 %1397
    %v1399 = vsub.f32 %v591, %v1305
    %v1400 = vsub.f32 %v594, %v1308
    %v1401 = vsub.f32 %v638, %v1311
    %v1402 = vsub.f32 %v641, %v1314
    %v1403 = vsub.f32 %v685, %v1317
    %v1404 = vsub.f32 %v688, %v1320
    %v1405 = vsub.f32 %v732, %v1323
    %v1406 = vsub.f32 %v735, %v1326
    %v1407 = vsub.f32 %v779, %v1329
    %v1408 = vsub.f32 %v782, %v1332
    %v1409 = vsub.f32 %v826, %v1335
    %v1410 = vsub.f32 %v829, %v1338
    %v1411 = vsub.f32 %v873, %v1341
    %v1412 = vsub.f32 %v876, %v1344
    %v1413 = vsub.f32 %v920, %v1347
    %v1414 = vsub.f32 %v923, %v1350
    %v1415 = vsub.f32 %v967, %v1353
    %v1416 = vsub.f32 %v970, %v1356
    %v1417 = vsub.f32 %v1014, %v1359
    %v1418 = vsub.f32 %v1017, %v1362
    %v1419 = vsub.f32 %v1061, %v1365
    %v1420 = vsub.f32 %v1064, %v1368
    %v1421 = vsub.f32 %v1108, %v1371
    %v1422 = vsub.f32 %v1111, %v1374
    %v1423 = vsub.f32 %v1155, %v1377
    %v1424 = vsub.f32 %v1158, %v1380
    %v1425 = vsub.f32 %v1202, %v1383
    %v1426 = vsub.f32 %v1205, %v1386
    %v1427 = vsub.f32 %v1249, %v1389
    %v1428 = vsub.f32 %v1252, %v1392
    %v1429 = vsub.f32 %v1296, %v1395
    %v1430 = vsub.f32 %v1299, %v1398
    %v1431 = vmul.f32 %v1399, 1.442695
    %v1432 = vpow.pop %v1431
    %v1433 = vmul.f32 %v1400, 1.442695
    %v1434 = vpow.pop %v1433
    %v1435 = vmul.f32 %v1401, 1.442695
    %v1436 = vpow.pop %v1435
    %v1437 = vmul.f32 %v1402, 1.442695
    %v1438 = vpow.pop %v1437
    %v1439 = vmul.f32 %v1403, 1.442695
    %v1440 = vpow.pop %v1439
    %v1441 = vmul.f32 %v1404, 1.442695
    %v1442 = vpow.pop %v1441
    %v1443 = vmul.f32 %v1405, 1.442695
    %v1444 = vpow.pop %v1443
    %v1445 = vmul.f32 %v1406, 1.442695
    %v1446 = vpow.pop %v1445
    %v1447 = vmul.f32 %v1407, 1.442695
    %v1448 = vpow.pop %v1447
    %v1449 = vmul.f32 %v1408, 1.442695
    %v1450 = vpow.pop %v1449
    %v1451 = vmul.f32 %v1409, 1.442695
    %v1452 = vpow.pop %v1451
    %v1453 = vmul.f32 %v1410, 1.442695
    %v1454 = vpow.pop %v1453
    %v1455 = vmul.f32 %v1411, 1.442695
    %v1456 = vpow.pop %v1455
    %v1457 = vmul.f32 %v1412, 1.442695
    %v1458 = vpow.pop %v1457
    %v1459 = vmul.f32 %v1413, 1.442695
    %v1460 = vpow.pop %v1459
    %v1461 = vmul.f32 %v1414, 1.442695
    %v1462 = vpow.pop %v1461
    %v1463 = vmul.f32 %v1415, 1.442695
    %v1464 = vpow.pop %v1463
    %v1465 = vmul.f32 %v1416, 1.442695
    %v1466 = vpow.pop %v1465
    %v1467 = vmul.f32 %v1417, 1.442695
    %v1468 = vpow.pop %v1467
    %v1469 = vmul.f32 %v1418, 1.442695
    %v1470 = vpow.pop %v1469
    %v1471 = vmul.f32 %v1419, 1.442695
    %v1472 = vpow.pop %v1471
    %v1473 = vmul.f32 %v1420, 1.442695
    %v1474 = vpow.pop %v1473
    %v1475 = vmul.f32 %v1421, 1.442695
    %v1476 = vpow.pop %v1475
    %v1477 = vmul.f32 %v1422, 1.442695
    %v1478 = vpow.pop %v1477
    %v1479 = vmul.f32 %v1423, 1.442695
    %v1480 = vpow.pop %v1479
    %v1481 = vmul.f32 %v1424, 1.442695
    %v1482 = vpow.pop %v1481
    %v1483 = vmul.f32 %v1425, 1.442695
    %v1484 = vpow.pop %v1483
    %v1485 = vmul.f32 %v1426, 1.442695
    %v1486 = vpow.pop %v1485
    %v1487 = vmul.f32 %v1427, 1.442695
    %v1488 = vpow.pop %v1487
    %v1489 = vmul.f32 %v1428, 1.442695
    %v1490 = vpow.pop %v1489
    %v1491 = vmul.f32 %v1429, 1.442695
    %v1492 = vpow.pop %v1491
    %v1493 = vmul.f32 %v1430, 1.442695
    %v1494 = vpow.pop %v1493
    %v1495 = vsel %vm1302, %v1432, 0.0
    %1496 = vadd.xlane.f32.xlu0 %v1495
    %v1497 = vpop.xlane.xlu0 %1496
    %v1498 = vsel %vm1302, %v1434, 0.0
    %1499 = vadd.xlane.f32.xlu0 %v1498
    %v1500 = vpop.xlane.xlu0 %1499
    %v1501 = vsel %vm1302, %v1436, 0.0
    %1502 = vadd.xlane.f32.xlu0 %v1501
    %v1503 = vpop.xlane.xlu0 %1502
    %v1504 = vsel %vm1302, %v1438, 0.0
    %1505 = vadd.xlane.f32.xlu0 %v1504
    %v1506 = vpop.xlane.xlu0 %1505
    %v1507 = vsel %vm1302, %v1440, 0.0
    %1508 = vadd.xlane.f32.xlu0 %v1507
    %v1509 = vpop.xlane.xlu0 %1508
    %v1510 = vsel %vm1302, %v1442, 0.0
    %1511 = vadd.xlane.f32.xlu0 %v1510
    %v1512 = vpop.xlane.xlu0 %1511
    %v1513 = vsel %vm1302, %v1444, 0.0
    %1514 = vadd.xlane.f32.xlu0 %v1513
    %v1515 = vpop.xlane.xlu0 %1514
    %v1516 = vsel %vm1302, %v1446, 0.0
    %1517 = vadd.xlane.f32.xlu0 %v1516
    %v1518 = vpop.xlane.xlu0 %1517
    %v1519 = vsel %vm1302, %v1448, 0.0
    %1520 = vadd.xlane.f32.xlu0 %v1519
    %v1521 = vpop.xlane.xlu0 %1520
    %v1522 = vsel %vm1302, %v1450, 0.0
    %1523 = vadd.xlane.f32.xlu0 %v1522
    %v1524 = vpop.xlane.xlu0 %1523
    %v1525 = vsel %vm1302, %v1452, 0.0
    %1526 = vadd.xlane.f32.xlu0 %v1525
    %v1527 = vpop.xlane.xlu0 %1526
    %v1528 = vsel %vm1302, %v1454, 0.0
    %1529 = vadd.xlane.f32.xlu0 %v1528
    %v1530 = vpop.xlane.xlu0 %1529
    %v1531 = vsel %vm1302, %v1456, 0.0
    %1532 = vadd.xlane.f32.xlu0 %v1531
    %v1533 = vpop.xlane.xlu0 %1532
    %v1534 = vsel %vm1302, %v1458, 0.0
    %1535 = vadd.xlane.f32.xlu0 %v1534
    %v1536 = vpop.xlane.xlu0 %1535
    %v1537 = vsel %vm1302, %v1460, 0.0
    %1538 = vadd.xlane.f32.xlu0 %v1537
    %v1539 = vpop.xlane.xlu0 %1538
    %v1540 = vsel %vm1302, %v1462, 0.0
    %1541 = vadd.xlane.f32.xlu0 %v1540
    %v1542 = vpop.xlane.xlu0 %1541
    %v1543 = vsel %vm1302, %v1464, 0.0
    %1544 = vadd.xlane.f32.xlu0 %v1543
    %v1545 = vpop.xlane.xlu0 %1544
    %v1546 = vsel %vm1302, %v1466, 0.0
    %1547 = vadd.xlane.f32.xlu0 %v1546
    %v1548 = vpop.xlane.xlu0 %1547
    %v1549 = vsel %vm1302, %v1468, 0.0
    %1550 = vadd.xlane.f32.xlu0 %v1549
    %v1551 = vpop.xlane.xlu0 %1550
    %v1552 = vsel %vm1302, %v1470, 0.0
    %1553 = vadd.xlane.f32.xlu0 %v1552
    %v1554 = vpop.xlane.xlu0 %1553
    %v1555 = vsel %vm1302, %v1472, 0.0
    %1556 = vadd.xlane.f32.xlu0 %v1555
    %v1557 = vpop.xlane.xlu0 %1556
    %v1558 = vsel %vm1302, %v1474, 0.0
    %1559 = vadd.xlane.f32.xlu0 %v1558
    %v1560 = vpop.xlane.xlu0 %1559
    %v1561 = vsel %vm1302, %v1476, 0.0
    %1562 = vadd.xlane.f32.xlu0 %v1561
    %v1563 = vpop.xlane.xlu0 %1562
    %v1564 = vsel %vm1302, %v1478, 0.0
    %1565 = vadd.xlane.f32.xlu0 %v1564
    %v1566 = vpop.xlane.xlu0 %1565
    %v1567 = vsel %vm1302, %v1480, 0.0
    %1568 = vadd.xlane.f32.xlu0 %v1567
    %v1569 = vpop.xlane.xlu0 %1568
    %v1570 = vsel %vm1302, %v1482, 0.0
    %1571 = vadd.xlane.f32.xlu0 %v1570
    %v1572 = vpop.xlane.xlu0 %1571
    %v1573 = vsel %vm1302, %v1484, 0.0
    %1574 = vadd.xlane.f32.xlu0 %v1573
    %v1575 = vpop.xlane.xlu0 %1574
    %v1576 = vsel %vm1302, %v1486, 0.0
    %1577 = vadd.xlane.f32.xlu0 %v1576
    %v1578 = vpop.xlane.xlu0 %1577
    %v1579 = vsel %vm1302, %v1488, 0.0
    %1580 = vadd.xlane.f32.xlu0 %v1579
    %v1581 = vpop.xlane.xlu0 %1580
    %v1582 = vsel %vm1302, %v1490, 0.0
    %1583 = vadd.xlane.f32.xlu0 %v1582
    %v1584 = vpop.xlane.xlu0 %1583
    %v1585 = vsel %vm1302, %v1492, 0.0
    %1586 = vadd.xlane.f32.xlu0 %v1585
    %v1587 = vpop.xlane.xlu0 %1586
    %v1588 = vsel %vm1302, %v1494, 0.0
    %1589 = vadd.xlane.f32.xlu0 %v1588
    %v1590 = vpop.xlane.xlu0 %1589
    %v1591 = vrcp.pop %v1497
    %v1592 = vrcp.pop %v1500
    %v1593 = vrcp.pop %v1503
    %v1594 = vrcp.pop %v1506
    %v1595 = vrcp.pop %v1509
    %v1596 = vrcp.pop %v1512
    %v1597 = vrcp.pop %v1515
    %v1598 = vrcp.pop %v1518
    %v1599 = vrcp.pop %v1521
    %v1600 = vrcp.pop %v1524
    %v1601 = vrcp.pop %v1527
    %v1602 = vrcp.pop %v1530
    %v1603 = vrcp.pop %v1533
    %v1604 = vrcp.pop %v1536
    %v1605 = vrcp.pop %v1539
    %v1606 = vrcp.pop %v1542
    %v1607 = vrcp.pop %v1545
    %v1608 = vrcp.pop %v1548
    %v1609 = vrcp.pop %v1551
    %v1610 = vrcp.pop %v1554
    %v1611 = vrcp.pop %v1557
    %v1612 = vrcp.pop %v1560
    %v1613 = vrcp.pop %v1563
    %v1614 = vrcp.pop %v1566
    %v1615 = vrcp.pop %v1569
    %v1616 = vrcp.pop %v1572
    %v1617 = vrcp.pop %v1575
    %v1618 = vrcp.pop %v1578
    %v1619 = vrcp.pop %v1581
    %v1620 = vrcp.pop %v1584
    %v1621 = vrcp.pop %v1587
    %v1622 = vrcp.pop %v1590
    %v1623 = vmul.f32 %v1432, %v1591
    %v1624 = vmul.f32 %v1434, %v1592
    %v1625 = vmul.f32 %v1436, %v1593
    %v1626 = vmul.f32 %v1438, %v1594
    %v1627 = vmul.f32 %v1440, %v1595
    %v1628 = vmul.f32 %v1442, %v1596
    %v1629 = vmul.f32 %v1444, %v1597
    %v1630 = vmul.f32 %v1446, %v1598
    %v1631 = vmul.f32 %v1448, %v1599
    %v1632 = vmul.f32 %v1450, %v1600
    %v1633 = vmul.f32 %v1452, %v1601
    %v1634 = vmul.f32 %v1454, %v1602
    %v1635 = vmul.f32 %v1456, %v1603
    %v1636 = vmul.f32 %v1458, %v1604
    %v1637 = vmul.f32 %v1460, %v1605
    %v1638 = vmul.f32 %v1462, %v1606
    %v1639 = vmul.f32 %v1464, %v1607
    %v1640 = vmul.f32 %v1466, %v1608
    %v1641 = vmul.f32 %v1468, %v1609
    %v1642 = vmul.f32 %v1470, %v1610
    %v1643 = vmul.f32 %v1472, %v1611
    %v1644 = vmul.f32 %v1474, %v1612
    %v1645 = vmul.f32 %v1476, %v1613
    %v1646 = vmul.f32 %v1478, %v1614
    %v1647 = vmul.f32 %v1480, %v1615
    %v1648 = vmul.f32 %v1482, %v1616
    %v1649 = vmul.f32 %v1484, %v1617
    %v1650 = vmul.f32 %v1486, %v1618
    %v1651 = vmul.f32 %v1488, %v1619
    %v1652 = vmul.f32 %v1490, %v1620
    %v1653 = vmul.f32 %v1492, %v1621
    %v1654 = vmul.f32 %v1494, %v1622
    %v1655 = vpack.c.bf16 %v1624, %v1623
    %v1656 = vpack.c.bf16 %v1626, %v1625
    %v1657 = vpack.c.bf16 %v1628, %v1627
    %v1658 = vpack.c.bf16 %v1630, %v1629
    %v1659 = vpack.c.bf16 %v1632, %v1631
    %v1660 = vpack.c.bf16 %v1634, %v1633
    %v1661 = vpack.c.bf16 %v1636, %v1635
    %v1662 = vpack.c.bf16 %v1638, %v1637
    %v1663 = vpack.c.bf16 %v1640, %v1639
    %v1664 = vpack.c.bf16 %v1642, %v1641
    %v1665 = vpack.c.bf16 %v1644, %v1643
    %v1666 = vpack.c.bf16 %v1646, %v1645
    %v1667 = vpack.c.bf16 %v1648, %v1647
    %v1668 = vpack.c.bf16 %v1650, %v1649
    %v1669 = vpack.c.bf16 %v1652, %v1651
    %v1670 = vpack.c.bf16 %v1654, %v1653
    %v1672 = vsel %vm1302, %v1655, 0
    %1674 = vmatprep.subr.bf16.mxu0 0
    %1675 = vmatpush1.bf16.msra.mxu0 %v443
    %1676 = vmatprep.subr.bf16.mxu0 0
    %1677 = vmatpush1.bf16.msra.mxu0 0
    %1678 = vmatprep.subr.bf16.mxu0 0
    %1679 = vmatpush1.bf16.msra.mxu0 0
    %1680 = vmatprep.subr.bf16.mxu0 0
    %1681 = vmatpush1.bf16.msra.mxu0 0
    %1682 = vmatprep.subr.bf16.mxu0 0
    %1683 = vmatpush1.bf16.msra.mxu0 0
    %1684 = vmatprep.subr.bf16.mxu0 0
    %1685 = vmatpush1.bf16.msra.mxu0 0
    %1686 = vmatprep.subr.bf16.mxu0 0
    %1687 = vmatpush1.bf16.msra.mxu0 0
    %1688 = vmatprep.subr.bf16.mxu0 0
    %1689 = vmatpush1.bf16.msra.mxu0 0
    %1690 = vmatprep.subr.bf16.mxu0 0
    %1691 = vmatpush1.bf16.msra.mxu0 0
    %1692 = vmatprep.subr.bf16.mxu0 0
    %1693 = vmatpush1.bf16.msra.mxu0 0
    %1694 = vmatprep.subr.bf16.mxu0 0
    %1695 = vmatpush1.bf16.msra.mxu0 0
    %1696 = vmatprep.subr.bf16.mxu0 0
    %1697 = vmatpush1.bf16.msra.mxu0 0
    %1698 = vmatprep.subr.bf16.mxu0 0
    %1699 = vmatpush1.bf16.msra.mxu0 0
    %1700 = vmatprep.subr.bf16.mxu0 0
    %1701 = vmatpush1.bf16.msra.mxu0 0
    %1702 = vmatprep.subr.bf16.mxu0 0
    %1703 = vmatpush1.bf16.msra.mxu0 0
    %1704 = vmatprep.subr.bf16.mxu0 0
    %1705 = vmatpush1.bf16.msra.mxu0 0
    %1706 = vmatprep.mubr.bf16.mxu0 0
    %1707 = vmatmul.mubr.bf16.gmra.mrb[0].mxu0 %v1672
    %v1708 = vpop.f32.mrb[0].mxu0
    %v1709 = vadd.f32 0.0, %v1708
    %v1710 = vpop.f32.mrb[0].mxu0
    %v1711 = vpop.f32.mrb[0].mxu0
    %v1712 = vadd.f32 0.0, %v1711
    %v1713 = vpop.f32.mrb[0].mxu0
    %1714 = vdwg.mxu0
    %v1716 = vsel %vm1302, %v1656, 0
    %1718 = vmatprep.subr.bf16.mxu0 0
    %1719 = vmatpush1.bf16.msra.mxu0 %v446
    %1720 = vmatprep.subr.bf16.mxu0 0
    %1721 = vmatpush1.bf16.msra.mxu0 0
    %1722 = vmatprep.subr.bf16.mxu0 0
    %1723 = vmatpush1.bf16.msra.mxu0 0
    %1724 = vmatprep.subr.bf16.mxu0 0
    %1725 = vmatpush1.bf16.msra.mxu0 0
    %1726 = vmatprep.subr.bf16.mxu0 0
    %1727 = vmatpush1.bf16.msra.mxu0 0
    %1728 = vmatprep.subr.bf16.mxu0 0
    %1729 = vmatpush1.bf16.msra.mxu0 0
    %1730 = vmatprep.subr.bf16.mxu0 0
    %1731 = vmatpush1.bf16.msra.mxu0 0
    %1732 = vmatprep.subr.bf16.mxu0 0
    %1733 = vmatpush1.bf16.msra.mxu0 0
    %1734 = vmatprep.subr.bf16.mxu0 0
    %1735 = vmatpush1.bf16.msra.mxu0 0
    %1736 = vmatprep.subr.bf16.mxu0 0
    %1737 = vmatpush1.bf16.msra.mxu0 0
    %1738 = vmatprep.subr.bf16.mxu0 0
    %1739 = vmatpush1.bf16.msra.mxu0 0
    %1740 = vmatprep.subr.bf16.mxu0 0
    %1741 = vmatpush1.bf16.msra.mxu0 0
    %1742 = vmatprep.subr.bf16.mxu0 0
    %1743 = vmatpush1.bf16.msra.mxu0 0
    %1744 = vmatprep.subr.bf16.mxu0 0
    %1745 = vmatpush1.bf16.msra.mxu0 0
    %1746 = vmatprep.subr.bf16.mxu0 0
    %1747 = vmatpush1.bf16.msra.mxu0 0
    %1748 = vmatprep.subr.bf16.mxu0 0
    %1749 = vmatpush1.bf16.msra.mxu0 0
    %1750 = vmatprep.mubr.bf16.mxu0 0
    %1751 = vmatmul.mubr.bf16.gmra.mrb[0].mxu0 %v1716
    %v1752 = vpop.f32.mrb[0].mxu0
    %v1753 = vadd.f32 0.0, %v1752
    %v1754 = vpop.f32.mrb[0].mxu0
    %v1755 = vpop.f32.mrb[0].mxu0
    %v1756 = vadd.f32 0.0, %v1755
    %v1757 = vpop.f32.mrb[0].mxu0
    %1758 = vdwg.mxu0
    %v1760 = vsel %vm1302, %v1657, 0
    %1762 = vmatprep.subr.bf16.mxu0 0
    %1763 = vmatpush1.bf16.msra.mxu0 %v449
    %1764 = vmatprep.subr.bf16.mxu0 0
    %1765 = vmatpush1.bf16.msra.mxu0 0
    %1766 = vmatprep.subr.bf16.mxu0 0
    %1767 = vmatpush1.bf16.msra.mxu0 0
    %1768 = vmatprep.subr.bf16.mxu0 0
    %1769 = vmatpush1.bf16.msra.mxu0 0
    %1770 = vmatprep.subr.bf16.mxu0 0
    %1771 = vmatpush1.bf16.msra.mxu0 0
    %1772 = vmatprep.subr.bf16.mxu0 0
    %1773 = vmatpush1.bf16.msra.mxu0 0
    %1774 = vmatprep.subr.bf16.mxu0 0
    %1775 = vmatpush1.bf16.msra.mxu0 0
    %1776 = vmatprep.subr.bf16.mxu0 0
    %1777 = vmatpush1.bf16.msra.mxu0 0
    %1778 = vmatprep.subr.bf16.mxu0 0
    %1779 = vmatpush1.bf16.msra.mxu0 0
    %1780 = vmatprep.subr.bf16.mxu0 0
    %1781 = vmatpush1.bf16.msra.mxu0 0
    %1782 = vmatprep.subr.bf16.mxu0 0
    %1783 = vmatpush1.bf16.msra.mxu0 0
    %1784 = vmatprep.subr.bf16.mxu0 0
    %1785 = vmatpush1.bf16.msra.mxu0 0
    %1786 = vmatprep.subr.bf16.mxu0 0
    %1787 = vmatpush1.bf16.msra.mxu0 0
    %1788 = vmatprep.subr.bf16.mxu0 0
    %1789 = vmatpush1.bf16.msra.mxu0 0
    %1790 = vmatprep.subr.bf16.mxu0 0
    %1791 = vmatpush1.bf16.msra.mxu0 0
    %1792 = vmatprep.subr.bf16.mxu0 0
    %1793 = vmatpush1.bf16.msra.mxu0 0
    %1794 = vmatprep.mubr.bf16.mxu0 0
    %1795 = vmatmul.mubr.bf16.gmra.mrb[0].mxu0 %v1760
    %v1796 = vpop.f32.mrb[0].mxu0
    %v1797 = vadd.f32 0.0, %v1796
    %v1798 = vpop.f32.mrb[0].mxu0
    %v1799 = vpop.f32.mrb[0].mxu0
    %v1800 = vadd.f32 0.0, %v1799
    %v1801 = vpop.f32.mrb[0].mxu0
    %1802 = vdwg.mxu0
    %v1804 = vsel %vm1302, %v1658, 0
    %1806 = vmatprep.subr.bf16.mxu0 0
    %1807 = vmatpush1.bf16.msra.mxu0 %v452
    %1808 = vmatprep.subr.bf16.mxu0 0
    %1809 = vmatpush1.bf16.msra.mxu0 0
    %1810 = vmatprep.subr.bf16.mxu0 0
    %1811 = vmatpush1.bf16.msra.mxu0 0
    %1812 = vmatprep.subr.bf16.mxu0 0
    %1813 = vmatpush1.bf16.msra.mxu0 0
    %1814 = vmatprep.subr.bf16.mxu0 0
    %1815 = vmatpush1.bf16.msra.mxu0 0
    %1816 = vmatprep.subr.bf16.mxu0 0
    %1817 = vmatpush1.bf16.msra.mxu0 0
    %1818 = vmatprep.subr.bf16.mxu0 0
    %1819 = vmatpush1.bf16.msra.mxu0 0
    %1820 = vmatprep.subr.bf16.mxu0 0
    %1821 = vmatpush1.bf16.msra.mxu0 0
    %1822 = vmatprep.subr.bf16.mxu0 0
    %1823 = vmatpush1.bf16.msra.mxu0 0
    %1824 = vmatprep.subr.bf16.mxu0 0
    %1825 = vmatpush1.bf16.msra.mxu0 0
    %1826 = vmatprep.subr.bf16.mxu0 0
    %1827 = vmatpush1.bf16.msra.mxu0 0
    %1828 = vmatprep.subr.bf16.mxu0 0
    %1829 = vmatpush1.bf16.msra.mxu0 0
    %1830 = vmatprep.subr.bf16.mxu0 0
    %1831 = vmatpush1.bf16.msra.mxu0 0
    %1832 = vmatprep.subr.bf16.mxu0 0
    %1833 = vmatpush1.bf16.msra.mxu0 0
    %1834 = vmatprep.subr.bf16.mxu0 0
    %1835 = vmatpush1.bf16.msra.mxu0 0
    %1836 = vmatprep.subr.bf16.mxu0 0
    %1837 = vmatpush1.bf16.msra.mxu0 0
    %1838 = vmatprep.mubr.bf16.mxu0 0
    %1839 = vmatmul.mubr.bf16.gmra.mrb[0].mxu0 %v1804
    %v1840 = vpop.f32.mrb[0].mxu0
    %v1841 = vadd.f32 0.0, %v1840
    %v1842 = vpop.f32.mrb[0].mxu0
    %v1843 = vpop.f32.mrb[0].mxu0
    %v1844 = vadd.f32 0.0, %v1843
    %v1845 = vpop.f32.mrb[0].mxu0
    %1846 = vdwg.mxu0
    %v1848 = vsel %vm1302, %v1659, 0
    %1850 = vmatprep.subr.bf16.mxu0 0
    %1851 = vmatpush1.bf16.msra.mxu0 %v514
    %1852 = vmatprep.subr.bf16.mxu0 0
    %1853 = vmatpush1.bf16.msra.mxu0 0
    %1854 = vmatprep.subr.bf16.mxu0 0
    %1855 = vmatpush1.bf16.msra.mxu0 0
    %1856 = vmatprep.subr.bf16.mxu0 0
    %1857 = vmatpush1.bf16.msra.mxu0 0
    %1858 = vmatprep.subr.bf16.mxu0 0
    %1859 = vmatpush1.bf16.msra.mxu0 0
    %1860 = vmatprep.subr.bf16.mxu0 0
    %1861 = vmatpush1.bf16.msra.mxu0 0
    %1862 = vmatprep.subr.bf16.mxu0 0
    %1863 = vmatpush1.bf16.msra.mxu0 0
    %1864 = vmatprep.subr.bf16.mxu0 0
    %1865 = vmatpush1.bf16.msra.mxu0 0
    %1866 = vmatprep.subr.bf16.mxu0 0
    %1867 = vmatpush1.bf16.msra.mxu0 0
    %1868 = vmatprep.subr.bf16.mxu0 0
    %1869 = vmatpush1.bf16.msra.mxu0 0
    %1870 = vmatprep.subr.bf16.mxu0 0
    %1871 = vmatpush1.bf16.msra.mxu0 0
    %1872 = vmatprep.subr.bf16.mxu0 0
    %1873 = vmatpush1.bf16.msra.mxu0 0
    %1874 = vmatprep.subr.bf16.mxu0 0
    %1875 = vmatpush1.bf16.msra.mxu0 0
    %1876 = vmatprep.subr.bf16.mxu0 0
    %1877 = vmatpush1.bf16.msra.mxu0 0
    %1878 = vmatprep.subr.bf16.mxu0 0
    %1879 = vmatpush1.bf16.msra.mxu0 0
    %1880 = vmatprep.subr.bf16.mxu0 0
    %1881 = vmatpush1.bf16.msra.mxu0 0
    %1882 = vmatprep.mubr.bf16.mxu0 0
    %1883 = vmatmul.mubr.bf16.gmra.mrb[0].mxu0 %v1848
    %v1884 = vpop.f32.mrb[0].mxu0
    %v1885 = vadd.f32 0.0, %v1884
    %v1886 = vpop.f32.mrb[0].mxu0
    %v1887 = vpop.f32.mrb[0].mxu0
    %v1888 = vadd.f32 0.0, %v1887
    %v1889 = vpop.f32.mrb[0].mxu0
    %1890 = vdwg.mxu0
    %v1892 = vsel %vm1302, %v1660, 0
    %1894 = vmatprep.subr.bf16.mxu0 0
    %1895 = vmatpush1.bf16.msra.mxu0 %v516
    %1896 = vmatprep.subr.bf16.mxu0 0
    %1897 = vmatpush1.bf16.msra.mxu0 0
    %1898 = vmatprep.subr.bf16.mxu0 0
    %1899 = vmatpush1.bf16.msra.mxu0 0
    %1900 = vmatprep.subr.bf16.mxu0 0
    %1901 = vmatpush1.bf16.msra.mxu0 0
    %1902 = vmatprep.subr.bf16.mxu0 0
    %1903 = vmatpush1.bf16.msra.mxu0 0
    %1904 = vmatprep.subr.bf16.mxu0 0
    %1905 = vmatpush1.bf16.msra.mxu0 0
    %1906 = vmatprep.subr.bf16.mxu0 0
    %1907 = vmatpush1.bf16.msra.mxu0 0
    %1908 = vmatprep.subr.bf16.mxu0 0
    %1909 = vmatpush1.bf16.msra.mxu0 0
    %1910 = vmatprep.subr.bf16.mxu0 0
    %1911 = vmatpush1.bf16.msra.mxu0 0
    %1912 = vmatprep.subr.bf16.mxu0 0
    %1913 = vmatpush1.bf16.msra.mxu0 0
    %1914 = vmatprep.subr.bf16.mxu0 0
    %1915 = vmatpush1.bf16.msra.mxu0 0
    %1916 = vmatprep.subr.bf16.mxu0 0
    %1917 = vmatpush1.bf16.msra.mxu0 0
    %1918 = vmatprep.subr.bf16.mxu0 0
    %1919 = vmatpush1.bf16.msra.mxu0 0
    %1920 = vmatprep.subr.bf16.mxu0 0
    %1921 = vmatpush1.bf16.msra.mxu0 0
    %1922 = vmatprep.subr.bf16.mxu0 0
    %1923 = vmatpush1.bf16.msra.mxu0 0
    %1924 = vmatprep.subr.bf16.mxu0 0
    %1925 = vmatpush1.bf16.msra.mxu0 0
    %1926 = vmatprep.mubr.bf16.mxu0 0
    %1927 = vmatmul.mubr.bf16.gmra.mrb[0].mxu0 %v1892
    %v1928 = vpop.f32.mrb[0].mxu0
    %v1929 = vadd.f32 0.0, %v1928
    %v1930 = vpop.f32.mrb[0].mxu0
    %v1931 = vpop.f32.mrb[0].mxu0
    %v1932 = vadd.f32 0.0, %v1931
    %v1933 = vpop.f32.mrb[0].mxu0
    %1934 = vdwg.mxu0
    %v1936 = vsel %vm1302, %v1661, 0
    %1938 = vmatprep.subr.bf16.mxu0 0
    %1939 = vmatpush1.bf16.msra.mxu0 %v518
    %1940 = vmatprep.subr.bf16.mxu0 0
    %1941 = vmatpush1.bf16.msra.mxu0 0
    %1942 = vmatprep.subr.bf16.mxu0 0
    %1943 = vmatpush1.bf16.msra.mxu0 0
    %1944 = vmatprep.subr.bf16.mxu0 0
    %1945 = vmatpush1.bf16.msra.mxu0 0
    %1946 = vmatprep.subr.bf16.mxu0 0
    %1947 = vmatpush1.bf16.msra.mxu0 0
    %1948 = vmatprep.subr.bf16.mxu0 0
    %1949 = vmatpush1.bf16.msra.mxu0 0
    %1950 = vmatprep.subr.bf16.mxu0 0
    %1951 = vmatpush1.bf16.msra.mxu0 0
    %1952 = vmatprep.subr.bf16.mxu0 0
    %1953 = vmatpush1.bf16.msra.mxu0 0
    %1954 = vmatprep.subr.bf16.mxu0 0
    %1955 = vmatpush1.bf16.msra.mxu0 0
    %1956 = vmatprep.subr.bf16.mxu0 0
    %1957 = vmatpush1.bf16.msra.mxu0 0
    %1958 = vmatprep.subr.bf16.mxu0 0
    %1959 = vmatpush1.bf16.msra.mxu0 0
    %1960 = vmatprep.subr.bf16.mxu0 0
    %1961 = vmatpush1.bf16.msra.mxu0 0
    %1962 = vmatprep.subr.bf16.mxu0 0
    %1963 = vmatpush1.bf16.msra.mxu0 0
    %1964 = vmatprep.subr.bf16.mxu0 0
    %1965 = vmatpush1.bf16.msra.mxu0 0
    %1966 = vmatprep.subr.bf16.mxu0 0
    %1967 = vmatpush1.bf16.msra.mxu0 0
    %1968 = vmatprep.subr.bf16.mxu0 0
    %1969 = vmatpush1.bf16.msra.mxu0 0
    %1970 = vmatprep.mubr.bf16.mxu0 0
    %1971 = vmatmul.mubr.bf16.gmra.mrb[0].mxu0 %v1936
    %v1972 = vpop.f32.mrb[0].mxu0
    %v1973 = vadd.f32 0.0, %v1972
    %v1974 = vpop.f32.mrb[0].mxu0
    %v1975 = vpop.f32.mrb[0].mxu0
    %v1976 = vadd.f32 0.0, %v1975
    %v1977 = vpop.f32.mrb[0].mxu0
    %1978 = vdwg.mxu0
    %v1980 = vsel %vm1302, %v1662, 0
    %1982 = vmatprep.subr.bf16.mxu0 0
    %1983 = vmatpush1.bf16.msra.mxu0 %v520
    %1984 = vmatprep.subr.bf16.mxu0 0
    %1985 = vmatpush1.bf16.msra.mxu0 0
    %1986 = vmatprep.subr.bf16.mxu0 0
    %1987 = vmatpush1.bf16.msra.mxu0 0
    %1988 = vmatprep.subr.bf16.mxu0 0
    %1989 = vmatpush1.bf16.msra.mxu0 0
    %1990 = vmatprep.subr.bf16.mxu0 0
    %1991 = vmatpush1.bf16.msra.mxu0 0
    %1992 = vmatprep.subr.bf16.mxu0 0
    %1993 = vmatpush1.bf16.msra.mxu0 0
    %1994 = vmatprep.subr.bf16.mxu0 0
    %1995 = vmatpush1.bf16.msra.mxu0 0
    %1996 = vmatprep.subr.bf16.mxu0 0
    %1997 = vmatpush1.bf16.msra.mxu0 0
    %1998 = vmatprep.subr.bf16.mxu0 0
    %1999 = vmatpush1.bf16.msra.mxu0 0
    %2000 = vmatprep.subr.bf16.mxu0 0
    %2001 = vmatpush1.bf16.msra.mxu0 0
    %2002 = vmatprep.subr.bf16.mxu0 0
    %2003 = vmatpush1.bf16.msra.mxu0 0
    %2004 = vmatprep.subr.bf16.mxu0 0
    %2005 = vmatpush1.bf16.msra.mxu0 0
    %2006 = vmatprep.subr.bf16.mxu0 0
    %2007 = vmatpush1.bf16.msra.mxu0 0
    %2008 = vmatprep.subr.bf16.mxu0 0
    %2009 = vmatpush1.bf16.msra.mxu0 0
    %2010 = vmatprep.subr.bf16.mxu0 0
    %2011 = vmatpush1.bf16.msra.mxu0 0
    %2012 = vmatprep.subr.bf16.mxu0 0
    %2013 = vmatpush1.bf16.msra.mxu0 0
    %2014 = vmatprep.mubr.bf16.mxu0 0
    %2015 = vmatmul.mubr.bf16.gmra.mrb[0].mxu0 %v1980
    %v2016 = vpop.f32.mrb[0].mxu0
    %v2017 = vadd.f32 0.0, %v2016
    %v2018 = vpop.f32.mrb[0].mxu0
    %v2019 = vpop.f32.mrb[0].mxu0
    %v2020 = vadd.f32 0.0, %v2019
    %v2021 = vpop.f32.mrb[0].mxu0
    %2022 = vdwg.mxu0
    %v2024 = vsel %vm1302, %v1663, 0
    %2026 = vmatprep.subr.bf16.mxu0 0
    %2027 = vmatpush1.bf16.msra.mxu0 %v526
    %2028 = vmatprep.subr.bf16.mxu0 0
    %2029 = vmatpush1.bf16.msra.mxu0 0
    %2030 = vmatprep.subr.bf16.mxu0 0
    %2031 = vmatpush1.bf16.msra.mxu0 0
    %2032 = vmatprep.subr.bf16.mxu0 0
    %2033 = vmatpush1.bf16.msra.mxu0 0
    %2034 = vmatprep.subr.bf16.mxu0 0
    %2035 = vmatpush1.bf16.msra.mxu0 0
    %2036 = vmatprep.subr.bf16.mxu0 0
    %2037 = vmatpush1.bf16.msra.mxu0 0
    %2038 = vmatprep.subr.bf16.mxu0 0
    %2039 = vmatpush1.bf16.msra.mxu0 0
    %2040 = vmatprep.subr.bf16.mxu0 0
    %2041 = vmatpush1.bf16.msra.mxu0 0
    %2042 = vmatprep.subr.bf16.mxu0 0
    %2043 = vmatpush1.bf16.msra.mxu0 0
    %2044 = vmatprep.subr.bf16.mxu0 0
    %2045 = vmatpush1.bf16.msra.mxu0 0
    %2046 = vmatprep.subr.bf16.mxu0 0
    %2047 = vmatpush1.bf16.msra.mxu0 0
    %2048 = vmatprep.subr.bf16.mxu0 0
    %2049 = vmatpush1.bf16.msra.mxu0 0
    %2050 = vmatprep.subr.bf16.mxu0 0
    %2051 = vmatpush1.bf16.msra.mxu0 0
    %2052 = vmatprep.subr.bf16.mxu0 0
    %2053 = vmatpush1.bf16.msra.mxu0 0
    %2054 = vmatprep.subr.bf16.mxu0 0
    %2055 = vmatpush1.bf16.msra.mxu0 0
    %2056 = vmatprep.subr.bf16.mxu0 0
    %2057 = vmatpush1.bf16.msra.mxu0 0
    %2058 = vmatprep.mubr.bf16.mxu0 0
    %2059 = vmatmul.mubr.bf16.gmra.mrb[0].mxu0 %v2024
    %v2060 = vpop.f32.mrb[0].mxu0
    %v2061 = vadd.f32 0.0, %v2060
    %v2062 = vpop.f32.mrb[0].mxu0
    %v2063 = vpop.f32.mrb[0].mxu0
    %v2064 = vadd.f32 0.0, %v2063
    %v2065 = vpop.f32.mrb[0].mxu0
    %2066 = vdwg.mxu0
    %v2068 = vsel %vm1302, %v1664, 0
    %2070 = vmatprep.subr.bf16.mxu0 0
    %2071 = vmatpush1.bf16.msra.mxu0 %v528
    %2072 = vmatprep.subr.bf16.mxu0 0
    %2073 = vmatpush1.bf16.msra.mxu0 0
    %2074 = vmatprep.subr.bf16.mxu0 0
    %2075 = vmatpush1.bf16.msra.mxu0 0
    %2076 = vmatprep.subr.bf16.mxu0 0
    %2077 = vmatpush1.bf16.msra.mxu0 0
    %2078 = vmatprep.subr.bf16.mxu0 0
    %2079 = vmatpush1.bf16.msra.mxu0 0
    %2080 = vmatprep.subr.bf16.mxu0 0
    %2081 = vmatpush1.bf16.msra.mxu0 0
    %2082 = vmatprep.subr.bf16.mxu0 0
    %2083 = vmatpush1.bf16.msra.mxu0 0
    %2084 = vmatprep.subr.bf16.mxu0 0
    %2085 = vmatpush1.bf16.msra.mxu0 0
    %2086 = vmatprep.subr.bf16.mxu0 0
    %2087 = vmatpush1.bf16.msra.mxu0 0
    %2088 = vmatprep.subr.bf16.mxu0 0
    %2089 = vmatpush1.bf16.msra.mxu0 0
    %2090 = vmatprep.subr.bf16.mxu0 0
    %2091 = vmatpush1.bf16.msra.mxu0 0
    %2092 = vmatprep.subr.bf16.mxu0 0
    %2093 = vmatpush1.bf16.msra.mxu0 0
    %2094 = vmatprep.subr.bf16.mxu0 0
    %2095 = vmatpush1.bf16.msra.mxu0 0
    %2096 = vmatprep.subr.bf16.mxu0 0
    %2097 = vmatpush1.bf16.msra.mxu0 0
    %2098 = vmatprep.subr.bf16.mxu0 0
    %2099 = vmatpush1.bf16.msra.mxu0 0
    %2100 = vmatprep.subr.bf16.mxu0 0
    %2101 = vmatpush1.bf16.msra.mxu0 0
    %2102 = vmatprep.mubr.bf16.mxu0 0
    %2103 = vmatmul.mubr.bf16.gmra.mrb[0].mxu0 %v2068
    %v2104 = vpop.f32.mrb[0].mxu0
    %v2105 = vadd.f32 0.0, %v2104
    %v2106 = vpop.f32.mrb[0].mxu0
    %v2107 = vpop.f32.mrb[0].mxu0
    %v2108 = vadd.f32 0.0, %v2107
    %v2109 = vpop.f32.mrb[0].mxu0
    %2110 = vdwg.mxu0
    %v2112 = vsel %vm1302, %v1665, 0
    %2114 = vmatprep.subr.bf16.mxu0 0
    %2115 = vmatpush1.bf16.msra.mxu0 %v530
    %2116 = vmatprep.subr.bf16.mxu0 0
    %2117 = vmatpush1.bf16.msra.mxu0 0
    %2118 = vmatprep.subr.bf16.mxu0 0
    %2119 = vmatpush1.bf16.msra.mxu0 0
    %2120 = vmatprep.subr.bf16.mxu0 0
    %2121 = vmatpush1.bf16.msra.mxu0 0
    %2122 = vmatprep.subr.bf16.mxu0 0
    %2123 = vmatpush1.bf16.msra.mxu0 0
    %2124 = vmatprep.subr.bf16.mxu0 0
    %2125 = vmatpush1.bf16.msra.mxu0 0
    %2126 = vmatprep.subr.bf16.mxu0 0
    %2127 = vmatpush1.bf16.msra.mxu0 0
    %2128 = vmatprep.subr.bf16.mxu0 0
    %2129 = vmatpush1.bf16.msra.mxu0 0
    %2130 = vmatprep.subr.bf16.mxu0 0
    %2131 = vmatpush1.bf16.msra.mxu0 0
    %2132 = vmatprep.subr.bf16.mxu0 0
    %2133 = vmatpush1.bf16.msra.mxu0 0
    %2134 = vmatprep.subr.bf16.mxu0 0
    %2135 = vmatpush1.bf16.msra.mxu0 0
    %2136 = vmatprep.subr.bf16.mxu0 0
    %2137 = vmatpush1.bf16.msra.mxu0 0
    %2138 = vmatprep.subr.bf16.mxu0 0
    %2139 = vmatpush1.bf16.msra.mxu0 0
    %2140 = vmatprep.subr.bf16.mxu0 0
    %2141 = vmatpush1.bf16.msra.mxu0 0
    %2142 = vmatprep.subr.bf16.mxu0 0
    %2143 = vmatpush1.bf16.msra.mxu0 0
    %2144 = vmatprep.subr.bf16.mxu0 0
    %2145 = vmatpush1.bf16.msra.mxu0 0
    %2146 = vmatprep.mubr.bf16.mxu0 0
    %2147 = vmatmul.mubr.bf16.gmra.mrb[0].mxu0 %v2112
    %v2148 = vpop.f32.mrb[0].mxu0
    %v2149 = vadd.f32 0.0, %v2148
    %v2150 = vpop.f32.mrb[0].mxu0
    %v2151 = vpop.f32.mrb[0].mxu0
    %v2152 = vadd.f32 0.0, %v2151
    %v2153 = vpop.f32.mrb[0].mxu0
    %2154 = vdwg.mxu0
    %v2156 = vsel %vm1302, %v1666, 0
    %2158 = vmatprep.subr.bf16.mxu0 0
    %2159 = vmatpush1.bf16.msra.mxu0 %v532
    %2160 = vmatprep.subr.bf16.mxu0 0
    %2161 = vmatpush1.bf16.msra.mxu0 0
    %2162 = vmatprep.subr.bf16.mxu0 0
    %2163 = vmatpush1.bf16.msra.mxu0 0
    %2164 = vmatprep.subr.bf16.mxu0 0
    %2165 = vmatpush1.bf16.msra.mxu0 0
    %2166 = vmatprep.subr.bf16.mxu0 0
    %2167 = vmatpush1.bf16.msra.mxu0 0
    %2168 = vmatprep.subr.bf16.mxu0 0
    %2169 = vmatpush1.bf16.msra.mxu0 0
    %2170 = vmatprep.subr.bf16.mxu0 0
    %2171 = vmatpush1.bf16.msra.mxu0 0
    %2172 = vmatprep.subr.bf16.mxu0 0
    %2173 = vmatpush1.bf16.msra.mxu0 0
    %2174 = vmatprep.subr.bf16.mxu0 0
    %2175 = vmatpush1.bf16.msra.mxu0 0
    %2176 = vmatprep.subr.bf16.mxu0 0
    %2177 = vmatpush1.bf16.msra.mxu0 0
    %2178 = vmatprep.subr.bf16.mxu0 0
    %2179 = vmatpush1.bf16.msra.mxu0 0
    %2180 = vmatprep.subr.bf16.mxu0 0
    %2181 = vmatpush1.bf16.msra.mxu0 0
    %2182 = vmatprep.subr.bf16.mxu0 0
    %2183 = vmatpush1.bf16.msra.mxu0 0
    %2184 = vmatprep.subr.bf16.mxu0 0
    %2185 = vmatpush1.bf16.msra.mxu0 0
    %2186 = vmatprep.subr.bf16.mxu0 0
    %2187 = vmatpush1.bf16.msra.mxu0 0
    %2188 = vmatprep.subr.bf16.mxu0 0
    %2189 = vmatpush1.bf16.msra.mxu0 0
    %2190 = vmatprep.mubr.bf16.mxu0 0
    %2191 = vmatmul.mubr.bf16.gmra.mrb[0].mxu0 %v2156
    %v2192 = vpop.f32.mrb[0].mxu0
    %v2193 = vadd.f32 0.0, %v2192
    %v2194 = vpop.f32.mrb[0].mxu0
    %v2195 = vpop.f32.mrb[0].mxu0
    %v2196 = vadd.f32 0.0, %v2195
    %v2197 = vpop.f32.mrb[0].mxu0
    %2198 = vdwg.mxu0
    %v2200 = vsel %vm1302, %v1667, 0
    %2202 = vmatprep.subr.bf16.mxu0 0
    %2203 = vmatpush1.bf16.msra.mxu0 %v538
    %2204 = vmatprep.subr.bf16.mxu0 0
    %2205 = vmatpush1.bf16.msra.mxu0 0
    %2206 = vmatprep.subr.bf16.mxu0 0
    %2207 = vmatpush1.bf16.msra.mxu0 0
    %2208 = vmatprep.subr.bf16.mxu0 0
    %2209 = vmatpush1.bf16.msra.mxu0 0
    %2210 = vmatprep.subr.bf16.mxu0 0
    %2211 = vmatpush1.bf16.msra.mxu0 0
    %2212 = vmatprep.subr.bf16.mxu0 0
    %2213 = vmatpush1.bf16.msra.mxu0 0
    %2214 = vmatprep.subr.bf16.mxu0 0
    %2215 = vmatpush1.bf16.msra.mxu0 0
    %2216 = vmatprep.subr.bf16.mxu0 0
    %2217 = vmatpush1.bf16.msra.mxu0 0
    %2218 = vmatprep.subr.bf16.mxu0 0
    %2219 = vmatpush1.bf16.msra.mxu0 0
    %2220 = vmatprep.subr.bf16.mxu0 0
    %2221 = vmatpush1.bf16.msra.mxu0 0
    %2222 = vmatprep.subr.bf16.mxu0 0
    %2223 = vmatpush1.bf16.msra.mxu0 0
    %2224 = vmatprep.subr.bf16.mxu0 0
    %2225 = vmatpush1.bf16.msra.mxu0 0
    %2226 = vmatprep.subr.bf16.mxu0 0
    %2227 = vmatpush1.bf16.msra.mxu0 0
    %2228 = vmatprep.subr.bf16.mxu0 0
    %2229 = vmatpush1.bf16.msra.mxu0 0
    %2230 = vmatprep.subr.bf16.mxu0 0
    %2231 = vmatpush1.bf16.msra.mxu0 0
    %2232 = vmatprep.subr.bf16.mxu0 0
    %2233 = vmatpush1.bf16.msra.mxu0 0
    %2234 = vmatprep.mubr.bf16.mxu0 0
    %2235 = vmatmul.mubr.bf16.gmra.mrb[0].mxu0 %v2200
    %v2236 = vpop.f32.mrb[0].mxu0
    %v2237 = vadd.f32 0.0, %v2236
    %v2238 = vpop.f32.mrb[0].mxu0
    %v2239 = vpop.f32.mrb[0].mxu0
    %v2240 = vadd.f32 0.0, %v2239
    %v2241 = vpop.f32.mrb[0].mxu0
    %2242 = vdwg.mxu0
    %v2244 = vsel %vm1302, %v1668, 0
    %2246 = vmatprep.subr.bf16.mxu0 0
    %2247 = vmatpush1.bf16.msra.mxu0 %v540
    %2248 = vmatprep.subr.bf16.mxu0 0
    %2249 = vmatpush1.bf16.msra.mxu0 0
    %2250 = vmatprep.subr.bf16.mxu0 0
    %2251 = vmatpush1.bf16.msra.mxu0 0
    %2252 = vmatprep.subr.bf16.mxu0 0
    %2253 = vmatpush1.bf16.msra.mxu0 0
    %2254 = vmatprep.subr.bf16.mxu0 0
    %2255 = vmatpush1.bf16.msra.mxu0 0
    %2256 = vmatprep.subr.bf16.mxu0 0
    %2257 = vmatpush1.bf16.msra.mxu0 0
    %2258 = vmatprep.subr.bf16.mxu0 0
    %2259 = vmatpush1.bf16.msra.mxu0 0
    %2260 = vmatprep.subr.bf16.mxu0 0
    %2261 = vmatpush1.bf16.msra.mxu0 0
    %2262 = vmatprep.subr.bf16.mxu0 0
    %2263 = vmatpush1.bf16.msra.mxu0 0
    %2264 = vmatprep.subr.bf16.mxu0 0
    %2265 = vmatpush1.bf16.msra.mxu0 0
    %2266 = vmatprep.subr.bf16.mxu0 0
    %2267 = vmatpush1.bf16.msra.mxu0 0
    %2268 = vmatprep.subr.bf16.mxu0 0
    %2269 = vmatpush1.bf16.msra.mxu0 0
    %2270 = vmatprep.subr.bf16.mxu0 0
    %2271 = vmatpush1.bf16.msra.mxu0 0
    %2272 = vmatprep.subr.bf16.mxu0 0
    %2273 = vmatpush1.bf16.msra.mxu0 0
    %2274 = vmatprep.subr.bf16.mxu0 0
    %2275 = vmatpush1.bf16.msra.mxu0 0
    %2276 = vmatprep.subr.bf16.mxu0 0
    %2277 = vmatpush1.bf16.msra.mxu0 0
    %2278 = vmatprep.mubr.bf16.mxu0 0
    %2279 = vmatmul.mubr.bf16.gmra.mrb[0].mxu0 %v2244
    %v2280 = vpop.f32.mrb[0].mxu0
    %v2281 = vadd.f32 0.0, %v2280
    %v2282 = vpop.f32.mrb[0].mxu0
    %v2283 = vpop.f32.mrb[0].mxu0
    %v2284 = vadd.f32 0.0, %v2283
    %v2285 = vpop.f32.mrb[0].mxu0
    %2286 = vdwg.mxu0
    %v2288 = vsel %vm1302, %v1669, 0
    %2290 = vmatprep.subr.bf16.mxu0 0
    %2291 = vmatpush1.bf16.msra.mxu0 %v542
    %2292 = vmatprep.subr.bf16.mxu0 0
    %2293 = vmatpush1.bf16.msra.mxu0 0
    %2294 = vmatprep.subr.bf16.mxu0 0
    %2295 = vmatpush1.bf16.msra.mxu0 0
    %2296 = vmatprep.subr.bf16.mxu0 0
    %2297 = vmatpush1.bf16.msra.mxu0 0
    %2298 = vmatprep.subr.bf16.mxu0 0
    %2299 = vmatpush1.bf16.msra.mxu0 0
    %2300 = vmatprep.subr.bf16.mxu0 0
    %2301 = vmatpush1.bf16.msra.mxu0 0
    %2302 = vmatprep.subr.bf16.mxu0 0
    %2303 = vmatpush1.bf16.msra.mxu0 0
    %2304 = vmatprep.subr.bf16.mxu0 0
    %2305 = vmatpush1.bf16.msra.mxu0 0
    %2306 = vmatprep.subr.bf16.mxu0 0
    %2307 = vmatpush1.bf16.msra.mxu0 0
    %2308 = vmatprep.subr.bf16.mxu0 0
    %2309 = vmatpush1.bf16.msra.mxu0 0
    %2310 = vmatprep.subr.bf16.mxu0 0
    %2311 = vmatpush1.bf16.msra.mxu0 0
    %2312 = vmatprep.subr.bf16.mxu0 0
    %2313 = vmatpush1.bf16.msra.mxu0 0
    %2314 = vmatprep.subr.bf16.mxu0 0
    %2315 = vmatpush1.bf16.msra.mxu0 0
    %2316 = vmatprep.subr.bf16.mxu0 0
    %2317 = vmatpush1.bf16.msra.mxu0 0
    %2318 = vmatprep.subr.bf16.mxu0 0
    %2319 = vmatpush1.bf16.msra.mxu0 0
    %2320 = vmatprep.subr.bf16.mxu0 0
    %2321 = vmatpush1.bf16.msra.mxu0 0
    %2322 = vmatprep.mubr.bf16.mxu0 0
    %2323 = vmatmul.mubr.bf16.gmra.mrb[0].mxu0 %v2288
    %v2324 = vpop.f32.mrb[0].mxu0
    %v2325 = vadd.f32 0.0, %v2324
    %v2326 = vpop.f32.mrb[0].mxu0
    %v2327 = vpop.f32.mrb[0].mxu0
    %v2328 = vadd.f32 0.0, %v2327
    %v2329 = vpop.f32.mrb[0].mxu0
    %2330 = vdwg.mxu0
    %v2332 = vsel %vm1302, %v1670, 0
    %2334 = vmatprep.subr.bf16.mxu0 0
    %2335 = vmatpush1.bf16.msra.mxu0 %v544
    %2336 = vmatprep.subr.bf16.mxu0 0
    %2337 = vmatpush1.bf16.msra.mxu0 0
    %2338 = vmatprep.subr.bf16.mxu0 0
    %2339 = vmatpush1.bf16.msra.mxu0 0
    %2340 = vmatprep.subr.bf16.mxu0 0
    %2341 = vmatpush1.bf16.msra.mxu0 0
    %2342 = vmatprep.subr.bf16.mxu0 0
    %2343 = vmatpush1.bf16.msra.mxu0 0
    %2344 = vmatprep.subr.bf16.mxu0 0
    %2345 = vmatpush1.bf16.msra.mxu0 0
    %2346 = vmatprep.subr.bf16.mxu0 0
    %2347 = vmatpush1.bf16.msra.mxu0 0
    %2348 = vmatprep.subr.bf16.mxu0 0
    %2349 = vmatpush1.bf16.msra.mxu0 0
    %2350 = vmatprep.subr.bf16.mxu0 0
    %2351 = vmatpush1.bf16.msra.mxu0 0
    %2352 = vmatprep.subr.bf16.mxu0 0
    %2353 = vmatpush1.bf16.msra.mxu0 0
    %2354 = vmatprep.subr.bf16.mxu0 0
    %2355 = vmatpush1.bf16.msra.mxu0 0
    %2356 = vmatprep.subr.bf16.mxu0 0
    %2357 = vmatpush1.bf16.msra.mxu0 0
    %2358 = vmatprep.subr.bf16.mxu0 0
    %2359 = vmatpush1.bf16.msra.mxu0 0
    %2360 = vmatprep.subr.bf16.mxu0 0
    %2361 = vmatpush1.bf16.msra.mxu0 0
    %2362 = vmatprep.subr.bf16.mxu0 0
    %2363 = vmatpush1.bf16.msra.mxu0 0
    %2364 = vmatprep.subr.bf16.mxu0 0
    %2365 = vmatpush1.bf16.msra.mxu0 0
    %2366 = vmatprep.mubr.bf16.mxu0 0
    %2367 = vmatmul.mubr.bf16.gmra.mrb[0].mxu0 %v2332
    %v2368 = vpop.f32.mrb[0].mxu0
    %v2369 = vadd.f32 0.0, %v2368
    %v2370 = vpop.f32.mrb[0].mxu0
    %v2371 = vpop.f32.mrb[0].mxu0
    %v2372 = vadd.f32 0.0, %v2371
    %v2373 = vpop.f32.mrb[0].mxu0
    %2374 = vdwg.mxu0
    %v2375 = vpack.c.bf16 %v1712, %v1709
    %v2376 = vpack.c.bf16 %v1756, %v1753
    %v2377 = vpack.c.bf16 %v1800, %v1797
    %v2378 = vpack.c.bf16 %v1844, %v1841
    %v2379 = vpack.c.bf16 %v1888, %v1885
    %v2380 = vpack.c.bf16 %v1932, %v1929
    %v2381 = vpack.c.bf16 %v1976, %v1973
    %v2382 = vpack.c.bf16 %v2020, %v2017
    %v2383 = vpack.c.bf16 %v2064, %v2061
    %v2384 = vpack.c.bf16 %v2108, %v2105
    %v2385 = vpack.c.bf16 %v2152, %v2149
    %v2386 = vpack.c.bf16 %v2196, %v2193
    %v2387 = vpack.c.bf16 %v2240, %v2237
    %v2388 = vpack.c.bf16 %v2284, %v2281
    %v2389 = vpack.c.bf16 %v2328, %v2325
    %v2390 = vpack.c.bf16 %v2372, %v2369
    %v2391 = vld [vmem:[#allocation7] sm:$0xf]
    %v2392 = vld [vmem:[#allocation7 + $0x4] sm:$0xf]
    %v2393 = vld [vmem:[#allocation7 + $0x8] sm:$0xf]
    %v2394 = vld [vmem:[#allocation7 + $0xc] sm:$0xf]
    %v2395 = vld [vmem:[#allocation7 + $0x10] sm:$0xf]
    %v2396 = vld [vmem:[#allocation7 + $0x14] sm:$0xf]
    %v2397 = vld [vmem:[#allocation7 + $0x18] sm:$0xf]
    %v2398 = vld [vmem:[#allocation7 + $0x1c] sm:$0xf]
    %v2399 = vld [vmem:[#allocation7 + $0x20] sm:$0xf]
    %v2400 = vld [vmem:[#allocation7 + $0x24] sm:$0xf]
    %v2401 = vld [vmem:[#allocation7 + $0x28] sm:$0xf]
    %v2402 = vld [vmem:[#allocation7 + $0x2c] sm:$0xf]
    %v2403 = vld [vmem:[#allocation7 + $0x30] sm:$0xf]
    %v2404 = vld [vmem:[#allocation7 + $0x34] sm:$0xf]
    %v2405 = vld [vmem:[#allocation7 + $0x38] sm:$0xf]
    %v2406 = vld [vmem:[#allocation7 + $0x3c] sm:$0xf]
    %v2411 = vunpack.c.l.b16 %v2391
    %v2412 = vunpack.c.l.b16 %v2392
    %v2413 = vunpack.c.l.b16 %v2393
    %v2414 = vunpack.c.l.b16 %v2394
    %v2415 = vpack.c.b16 %v2412, %v2411
    %v2416 = vpack.c.b16 %v2414, %v2413
    %v2420 = vsel %vm549, %v2375, 0
    %v2423 = vsel %vm549, %v2376, 0
    %v2426 = vsel %vm549, %v2377, 0
    %v2429 = vsel %vm549, %v2378, 0
    %2431 = vmatprep.subr.bf16.mxu0 0
    %2432 = vmatpush1.bf16.msra.mxu0 %v2415
    %2433 = vmatprep.subr.bf16.mxu0 0
    %2434 = vmatpush1.bf16.msra.mxu0 %v2416
    %2435 = vmatprep.subr.bf16.mxu0 0
    %2436 = vmatpush1.bf16.msra.mxu0 0
    %2437 = vmatprep.subr.bf16.mxu0 0
    %2438 = vmatpush1.bf16.msra.mxu0 0
    %2439 = vmatprep.subr.bf16.mxu0 0
    %2440 = vmatpush1.bf16.msra.mxu0 0
    %2441 = vmatprep.subr.bf16.mxu0 0
    %2442 = vmatpush1.bf16.msra.mxu0 0
    %2443 = vmatprep.subr.bf16.mxu0 0
    %2444 = vmatpush1.bf16.msra.mxu0 0
    %2445 = vmatprep.subr.bf16.mxu0 0
    %2446 = vmatpush1.bf16.msra.mxu0 0
    %2447 = vmatprep.subr.bf16.mxu0 0
    %2448 = vmatpush1.bf16.msra.mxu0 0
    %2449 = vmatprep.subr.bf16.mxu0 0
    %2450 = vmatpush1.bf16.msra.mxu0 0
    %2451 = vmatprep.subr.bf16.mxu0 0
    %2452 = vmatpush1.bf16.msra.mxu0 0
    %2453 = vmatprep.subr.bf16.mxu0 0
    %2454 = vmatpush1.bf16.msra.mxu0 0
    %2455 = vmatprep.subr.bf16.mxu0 0
    %2456 = vmatpush1.bf16.msra.mxu0 0
    %2457 = vmatprep.subr.bf16.mxu0 0
    %2458 = vmatpush1.bf16.msra.mxu0 0
    %2459 = vmatprep.subr.bf16.mxu0 0
    %2460 = vmatpush1.bf16.msra.mxu0 0
    %2461 = vmatprep.subr.bf16.mxu0 0
    %2462 = vmatpush1.bf16.msra.mxu0 0
    %2463 = vmatprep.mubr.bf16.mxu0 0
    %2464 = vmatmul.mubr.bf16.gmra.mrb[0].mxu0 %v2420
    %v2465 = vpop.f32.mrb[0].mxu0
    %v2466 = vadd.f32 0.0, %v2465
    %v2467 = vpop.f32.mrb[0].mxu0
    %v2468 = vpop.f32.mrb[0].mxu0
    %v2469 = vadd.f32 0.0, %v2468
    %v2470 = vpop.f32.mrb[0].mxu0
    %2471 = vmatprep.mubr.bf16.mxu0 0
    %2472 = vmatmul.mubr.bf16.gmra.mrb[0].mxu0 %v2423
    %v2473 = vpop.f32.mrb[0].mxu0
    %v2474 = vadd.f32 0.0, %v2473
    %v2475 = vpop.f32.mrb[0].mxu0
    %v2476 = vpop.f32.mrb[0].mxu0
    %v2477 = vadd.f32 0.0, %v2476
    %v2478 = vpop.f32.mrb[0].mxu0
    %2479 = vmatprep.mubr.bf16.mxu0 0
    %2480 = vmatmul.mubr.bf16.gmra.mrb[0].mxu0 %v2426
    %v2481 = vpop.f32.mrb[0].mxu0
    %v2482 = vadd.f32 0.0, %v2481
    %v2483 = vpop.f32.mrb[0].mxu0
    %v2484 = vpop.f32.mrb[0].mxu0
    %v2485 = vadd.f32 0.0, %v2484
    %v2486 = vpop.f32.mrb[0].mxu0
    %2487 = vmatprep.mubr.bf16.mxu0 0
    %2488 = vmatmul.mubr.bf16.gmra.mrb[0].mxu0 %v2429
    %v2489 = vpop.f32.mrb[0].mxu0
    %v2490 = vadd.f32 0.0, %v2489
    %v2491 = vpop.f32.mrb[0].mxu0
    %v2492 = vpop.f32.mrb[0].mxu0
    %v2493 = vadd.f32 0.0, %v2492
    %v2494 = vpop.f32.mrb[0].mxu0
    %2495 = vdwg.mxu0
    %v2500 = vunpack.c.l.b16 %v2395
    %v2501 = vunpack.c.l.b16 %v2396
    %v2502 = vunpack.c.l.b16 %v2397
    %v2503 = vunpack.c.l.b16 %v2398
    %v2504 = vpack.c.b16 %v2501, %v2500
    %v2505 = vpack.c.b16 %v2503, %v2502
    %v2509 = vsel %vm549, %v2379, 0
    %v2512 = vsel %vm549, %v2380, 0
    %v2515 = vsel %vm549, %v2381, 0
    %v2518 = vsel %vm549, %v2382, 0
    %2520 = vmatprep.subr.bf16.mxu0 0
    %2521 = vmatpush1.bf16.msra.mxu0 %v2504
    %2522 = vmatprep.subr.bf16.mxu0 0
    %2523 = vmatpush1.bf16.msra.mxu0 %v2505
    %2524 = vmatprep.subr.bf16.mxu0 0
    %2525 = vmatpush1.bf16.msra.mxu0 0
    %2526 = vmatprep.subr.bf16.mxu0 0
    %2527 = vmatpush1.bf16.msra.mxu0 0
    %2528 = vmatprep.subr.bf16.mxu0 0
    %2529 = vmatpush1.bf16.msra.mxu0 0
    %2530 = vmatprep.subr.bf16.mxu0 0
    %2531 = vmatpush1.bf16.msra.mxu0 0
    %2532 = vmatprep.subr.bf16.mxu0 0
    %2533 = vmatpush1.bf16.msra.mxu0 0
    %2534 = vmatprep.subr.bf16.mxu0 0
    %2535 = vmatpush1.bf16.msra.mxu0 0
    %2536 = vmatprep.subr.bf16.mxu0 0
    %2537 = vmatpush1.bf16.msra.mxu0 0
    %2538 = vmatprep.subr.bf16.mxu0 0
    %2539 = vmatpush1.bf16.msra.mxu0 0
    %2540 = vmatprep.subr.bf16.mxu0 0
    %2541 = vmatpush1.bf16.msra.mxu0 0
    %2542 = vmatprep.subr.bf16.mxu0 0
    %2543 = vmatpush1.bf16.msra.mxu0 0
    %2544 = vmatprep.subr.bf16.mxu0 0
    %2545 = vmatpush1.bf16.msra.mxu0 0
    %2546 = vmatprep.subr.bf16.mxu0 0
    %2547 = vmatpush1.bf16.msra.mxu0 0
    %2548 = vmatprep.subr.bf16.mxu0 0
    %2549 = vmatpush1.bf16.msra.mxu0 0
    %2550 = vmatprep.subr.bf16.mxu0 0
    %2551 = vmatpush1.bf16.msra.mxu0 0
    %2552 = vmatprep.mubr.bf16.mxu0 0
    %2553 = vmatmul.mubr.bf16.gmra.mrb[0].mxu0 %v2509
    %v2554 = vpop.f32.mrb[0].mxu0
    %v2555 = vadd.f32 0.0, %v2554
    %v2556 = vpop.f32.mrb[0].mxu0
    %v2557 = vpop.f32.mrb[0].mxu0
    %v2558 = vadd.f32 0.0, %v2557
    %v2559 = vpop.f32.mrb[0].mxu0
    %2560 = vmatprep.mubr.bf16.mxu0 0
    %2561 = vmatmul.mubr.bf16.gmra.mrb[0].mxu0 %v2512
    %v2562 = vpop.f32.mrb[0].mxu0
    %v2563 = vadd.f32 0.0, %v2562
    %v2564 = vpop.f32.mrb[0].mxu0
    %v2565 = vpop.f32.mrb[0].mxu0
    %v2566 = vadd.f32 0.0, %v2565
    %v2567 = vpop.f32.mrb[0].mxu0
    %2568 = vmatprep.mubr.bf16.mxu0 0
    %2569 = vmatmul.mubr.bf16.gmra.mrb[0].mxu0 %v2515
    %v2570 = vpop.f32.mrb[0].mxu0
    %v2571 = vadd.f32 0.0, %v2570
    %v2572 = vpop.f32.mrb[0].mxu0
    %v2573 = vpop.f32.mrb[0].mxu0
    %v2574 = vadd.f32 0.0, %v2573
    %v2575 = vpop.f32.mrb[0].mxu0
    %2576 = vmatprep.mubr.bf16.mxu0 0
    %2577 = vmatmul.mubr.bf16.gmra.mrb[0].mxu0 %v2518
    %v2578 = vpop.f32.mrb[0].mxu0
    %v2579 = vadd.f32 0.0, %v2578
    %v2580 = vpop.f32.mrb[0].mxu0
    %v2581 = vpop.f32.mrb[0].mxu0
    %v2582 = vadd.f32 0.0, %v2581
    %v2583 = vpop.f32.mrb[0].mxu0
    %2584 = vdwg.mxu0
    %v2589 = vunpack.c.l.b16 %v2399
    %v2590 = vunpack.c.l.b16 %v2400
    %v2591 = vunpack.c.l.b16 %v2401
    %v2592 = vunpack.c.l.b16 %v2402
    %v2593 = vpack.c.b16 %v2590, %v2589
    %v2594 = vpack.c.b16 %v2592, %v2591
    %v2598 = vsel %vm549, %v2383, 0
    %v2601 = vsel %vm549, %v2384, 0
    %v2604 = vsel %vm549, %v2385, 0
    %v2607 = vsel %vm549, %v2386, 0
    %2609 = vmatprep.subr.bf16.mxu0 0
    %2610 = vmatpush1.bf16.msra.mxu0 %v2593
    %2611 = vmatprep.subr.bf16.mxu0 0
    %2612 = vmatpush1.bf16.msra.mxu0 %v2594
    %2613 = vmatprep.subr.bf16.mxu0 0
    %2614 = vmatpush1.bf16.msra.mxu0 0
    %2615 = vmatprep.subr.bf16.mxu0 0
    %2616 = vmatpush1.bf16.msra.mxu0 0
    %2617 = vmatprep.subr.bf16.mxu0 0
    %2618 = vmatpush1.bf16.msra.mxu0 0
    %2619 = vmatprep.subr.bf16.mxu0 0
    %2620 = vmatpush1.bf16.msra.mxu0 0
    %2621 = vmatprep.subr.bf16.mxu0 0
    %2622 = vmatpush1.bf16.msra.mxu0 0
    %2623 = vmatprep.subr.bf16.mxu0 0
    %2624 = vmatpush1.bf16.msra.mxu0 0
    %2625 = vmatprep.subr.bf16.mxu0 0
    %2626 = vmatpush1.bf16.msra.mxu0 0
    %2627 = vmatprep.subr.bf16.mxu0 0
    %2628 = vmatpush1.bf16.msra.mxu0 0
    %2629 = vmatprep.subr.bf16.mxu0 0
    %2630 = vmatpush1.bf16.msra.mxu0 0
    %2631 = vmatprep.subr.bf16.mxu0 0
    %2632 = vmatpush1.bf16.msra.mxu0 0
    %2633 = vmatprep.subr.bf16.mxu0 0
    %2634 = vmatpush1.bf16.msra.mxu0 0
    %2635 = vmatprep.subr.bf16.mxu0 0
    %2636 = vmatpush1.bf16.msra.mxu0 0
    %2637 = vmatprep.subr.bf16.mxu0 0
    %2638 = vmatpush1.bf16.msra.mxu0 0
    %2639 = vmatprep.subr.bf16.mxu0 0
    %2640 = vmatpush1.bf16.msra.mxu0 0
    %2641 = vmatprep.mubr.bf16.mxu0 0
    %2642 = vmatmul.mubr.bf16.gmra.mrb[0].mxu0 %v2598
    %v2643 = vpop.f32.mrb[0].mxu0
    %v2644 = vadd.f32 0.0, %v2643
    %v2645 = vpop.f32.mrb[0].mxu0
    %v2646 = vpop.f32.mrb[0].mxu0
    %v2647 = vadd.f32 0.0, %v2646
    %v2648 = vpop.f32.mrb[0].mxu0
    %2649 = vmatprep.mubr.bf16.mxu0 0
    %2650 = vmatmul.mubr.bf16.gmra.mrb[0].mxu0 %v2601
    %v2651 = vpop.f32.mrb[0].mxu0
    %v2652 = vadd.f32 0.0, %v2651
    %v2653 = vpop.f32.mrb[0].mxu0
    %v2654 = vpop.f32.mrb[0].mxu0
    %v2655 = vadd.f32 0.0, %v2654
    %v2656 = vpop.f32.mrb[0].mxu0
    %2657 = vmatprep.mubr.bf16.mxu0 0
    %2658 = vmatmul.mubr.bf16.gmra.mrb[0].mxu0 %v2604
    %v2659 = vpop.f32.mrb[0].mxu0
    %v2660 = vadd.f32 0.0, %v2659
    %v2661 = vpop.f32.mrb[0].mxu0
    %v2662 = vpop.f32.mrb[0].mxu0
    %v2663 = vadd.f32 0.0, %v2662
    %v2664 = vpop.f32.mrb[0].mxu0
    %2665 = vmatprep.mubr.bf16.mxu0 0
    %2666 = vmatmul.mubr.bf16.gmra.mrb[0].mxu0 %v2607
    %v2667 = vpop.f32.mrb[0].mxu0
    %v2668 = vadd.f32 0.0, %v2667
    %v2669 = vpop.f32.mrb[0].mxu0
    %v2670 = vpop.f32.mrb[0].mxu0
    %v2671 = vadd.f32 0.0, %v2670
    %v2672 = vpop.f32.mrb[0].mxu0
    %2673 = vdwg.mxu0
    %v2678 = vunpack.c.l.b16 %v2403
    %v2679 = vunpack.c.l.b16 %v2404
    %v2680 = vunpack.c.l.b16 %v2405
    %v2681 = vunpack.c.l.b16 %v2406
    %v2682 = vpack.c.b16 %v2679, %v2678
    %v2683 = vpack.c.b16 %v2681, %v2680
    %v2687 = vsel %vm549, %v2387, 0
    %v2690 = vsel %vm549, %v2388, 0
    %v2693 = vsel %vm549, %v2389, 0
    %v2696 = vsel %vm549, %v2390, 0
    %2698 = vmatprep.subr.bf16.mxu0 0
    %2699 = vmatpush1.bf16.msra.mxu0 %v2682
    %2700 = vmatprep.subr.bf16.mxu0 0
    %2701 = vmatpush1.bf16.msra.mxu0 %v2683
    %2702 = vmatprep.subr.bf16.mxu0 0
    %2703 = vmatpush1.bf16.msra.mxu0 0
    %2704 = vmatprep.subr.bf16.mxu0 0
    %2705 = vmatpush1.bf16.msra.mxu0 0
    %2706 = vmatprep.subr.bf16.mxu0 0
    %2707 = vmatpush1.bf16.msra.mxu0 0
    %2708 = vmatprep.subr.bf16.mxu0 0
    %2709 = vmatpush1.bf16.msra.mxu0 0
    %2710 = vmatprep.subr.bf16.mxu0 0
    %2711 = vmatpush1.bf16.msra.mxu0 0
    %2712 = vmatprep.subr.bf16.mxu0 0
    %2713 = vmatpush1.bf16.msra.mxu0 0
    %2714 = vmatprep.subr.bf16.mxu0 0
    %2715 = vmatpush1.bf16.msra.mxu0 0
    %2716 = vmatprep.subr.bf16.mxu0 0
    %2717 = vmatpush1.bf16.msra.mxu0 0
    %2718 = vmatprep.subr.bf16.mxu0 0
    %2719 = vmatpush1.bf16.msra.mxu0 0
    %2720 = vmatprep.subr.bf16.mxu0 0
    %2721 = vmatpush1.bf16.msra.mxu0 0
    %2722 = vmatprep.subr.bf16.mxu0 0
    %2723 = vmatpush1.bf16.msra.mxu0 0
    %2724 = vmatprep.subr.bf16.mxu0 0
    %2725 = vmatpush1.bf16.msra.mxu0 0
    %2726 = vmatprep.subr.bf16.mxu0 0
    %2727 = vmatpush1.bf16.msra.mxu0 0
    %2728 = vmatprep.subr.bf16.mxu0 0
    %2729 = vmatpush1.bf16.msra.mxu0 0
    %2730 = vmatprep.mubr.bf16.mxu0 0
    %2731 = vmatmul.mubr.bf16.gmra.mrb[0].mxu0 %v2687
    %v2732 = vpop.f32.mrb[0].mxu0
    %v2733 = vadd.f32 0.0, %v2732
    %v2734 = vpop.f32.mrb[0].mxu0
    %v2735 = vpop.f32.mrb[0].mxu0
    %v2736 = vadd.f32 0.0, %v2735
    %v2737 = vpop.f32.mrb[0].mxu0
    %2738 = vmatprep.mubr.bf16.mxu0 0
    %2739 = vmatmul.mubr.bf16.gmra.mrb[0].mxu0 %v2690
    %v2740 = vpop.f32.mrb[0].mxu0
    %v2741 = vadd.f32 0.0, %v2740
    %v2742 = vpop.f32.mrb[0].mxu0
    %v2743 = vpop.f32.mrb[0].mxu0
    %v2744 = vadd.f32 0.0, %v2743
    %v2745 = vpop.f32.mrb[0].mxu0
    %2746 = vmatprep.mubr.bf16.mxu0 0
    %2747 = vmatmul.mubr.bf16.gmra.mrb[0].mxu0 %v2693
    %v2748 = vpop.f32.mrb[0].mxu0
    %v2749 = vadd.f32 0.0, %v2748
    %v2750 = vpop.f32.mrb[0].mxu0
    %v2751 = vpop.f32.mrb[0].mxu0
    %v2752 = vadd.f32 0.0, %v2751
    %v2753 = vpop.f32.mrb[0].mxu0
    %2754 = vmatprep.mubr.bf16.mxu0 0
    %2755 = vmatmul.mubr.bf16.gmra.mrb[0].mxu0 %v2696
    %v2756 = vpop.f32.mrb[0].mxu0
    %v2757 = vadd.f32 0.0, %v2756
    %v2758 = vpop.f32.mrb[0].mxu0
    %v2759 = vpop.f32.mrb[0].mxu0
    %v2760 = vadd.f32 0.0, %v2759
    %v2761 = vpop.f32.mrb[0].mxu0
    %2762 = vdwg.mxu0
    %v2763 = vadd.f32 %v2466, %v2555
    %v2764 = vadd.f32 %v2763, %v2644
    %v2765 = vadd.f32 %v2764, %v2733
    %v2766 = vadd.f32 %v2469, %v2558
    %v2767 = vadd.f32 %v2766, %v2647
    %v2768 = vadd.f32 %v2767, %v2736
    %v2769 = vadd.f32 %v2474, %v2563
    %v2770 = vadd.f32 %v2769, %v2652
    %v2771 = vadd.f32 %v2770, %v2741
    %v2772 = vadd.f32 %v2477, %v2566
    %v2773 = vadd.f32 %v2772, %v2655
    %v2774 = vadd.f32 %v2773, %v2744
    %v2775 = vadd.f32 %v2482, %v2571
    %v2776 = vadd.f32 %v2775, %v2660
    %v2777 = vadd.f32 %v2776, %v2749
    %v2778 = vadd.f32 %v2485, %v2574
    %v2779 = vadd.f32 %v2778, %v2663
    %v2780 = vadd.f32 %v2779, %v2752
    %v2781 = vadd.f32 %v2490, %v2579
    %v2782 = vadd.f32 %v2781, %v2668
    %v2783 = vadd.f32 %v2782, %v2757
    %v2784 = vadd.f32 %v2493, %v2582
    %v2785 = vadd.f32 %v2784, %v2671
    %v2786 = vadd.f32 %v2785, %v2760
    %v2787 = vld [vmem:[%s4] sm:$0x1]
    %v2789 = vlaneseq
    %v2790 = vshrl.u32 %v2789, 7
    %v2791 = vsub.s32 0, %v2790
    %v2792 = vrot.slane %v2787, %v2791
    %v2794 = vadd.f32 %v2765, %v2792
    %v2795 = vadd.f32 %v2768, %v2792
    %v2796 = vadd.f32 %v2771, %v2792
    %v2797 = vadd.f32 %v2774, %v2792
    %v2798 = vadd.f32 %v2777, %v2792
    %v2799 = vadd.f32 %v2780, %v2792
    %v2800 = vadd.f32 %v2783, %v2792
    %v2801 = vadd.f32 %v2786, %v2792
    %v2802 = vadd.f32 %v114, %v2794
    %v2803 = vadd.f32 %v115, %v2795
    %v2804 = vadd.f32 %v116, %v2796
    %v2805 = vadd.f32 %v117, %v2797
    %v2806 = vadd.f32 %v118, %v2798
    %v2807 = vadd.f32 %v119, %v2799
    %v2808 = vadd.f32 %v120, %v2800
    %v2809 = vadd.f32 %v121, %v2801
    %v2810 = vld [vmem:[%s5] sm:$0x1]
    %v2811 = vld [vmem:[%s6] sm:$0x1]
    %2812 = vadd.xlane.f32.xlu0 %v2802
    %v2813 = vpop.xlane.xlu0 %2812
    %2814 = vadd.xlane.f32.xlu0 %v2803
    %v2815 = vpop.xlane.xlu0 %2814
    %2816 = vadd.xlane.f32.xlu0 %v2804
    %v2817 = vpop.xlane.xlu0 %2816
    %2818 = vadd.xlane.f32.xlu0 %v2805
    %v2819 = vpop.xlane.xlu0 %2818
    %2820 = vadd.xlane.f32.xlu0 %v2806
    %v2821 = vpop.xlane.xlu0 %2820
    %2822 = vadd.xlane.f32.xlu0 %v2807
    %v2823 = vpop.xlane.xlu0 %2822
    %2824 = vadd.xlane.f32.xlu0 %v2808
    %v2825 = vpop.xlane.xlu0 %2824
    %2826 = vadd.xlane.f32.xlu0 %v2809
    %v2827 = vpop.xlane.xlu0 %2826
    %v2828 = vrcp.pop 128.0
    %v2829 = vmul.f32 %v2813, %v2828
    %v2830 = vmul.f32 %v2815, %v2828
    %v2831 = vmul.f32 %v2817, %v2828
    %v2832 = vmul.f32 %v2819, %v2828
    %v2833 = vmul.f32 %v2821, %v2828
    %v2834 = vmul.f32 %v2823, %v2828
    %v2835 = vmul.f32 %v2825, %v2828
    %v2836 = vmul.f32 %v2827, %v2828
    %v2837 = vsub.f32 %v2802, %v2829
    %v2838 = vsub.f32 %v2803, %v2830
    %v2839 = vsub.f32 %v2804, %v2831
    %v2840 = vsub.f32 %v2805, %v2832
    %v2841 = vsub.f32 %v2806, %v2833
    %v2842 = vsub.f32 %v2807, %v2834
    %v2843 = vsub.f32 %v2808, %v2835
    %v2844 = vsub.f32 %v2809, %v2836
    %v2845 = vmul.f32 %v2837, %v2837
    %v2846 = vmul.f32 %v2838, %v2838
    %v2847 = vmul.f32 %v2839, %v2839
    %v2848 = vmul.f32 %v2840, %v2840
    %v2849 = vmul.f32 %v2841, %v2841
    %v2850 = vmul.f32 %v2842, %v2842
    %v2851 = vmul.f32 %v2843, %v2843
    %v2852 = vmul.f32 %v2844, %v2844
    %2853 = vadd.xlane.f32.xlu0 %v2845
    %v2854 = vpop.xlane.xlu0 %2853
    %2855 = vadd.xlane.f32.xlu0 %v2846
    %v2856 = vpop.xlane.xlu0 %2855
    %2857 = vadd.xlane.f32.xlu0 %v2847
    %v2858 = vpop.xlane.xlu0 %2857
    %2859 = vadd.xlane.f32.xlu0 %v2848
    %v2860 = vpop.xlane.xlu0 %2859
    %2861 = vadd.xlane.f32.xlu0 %v2849
    %v2862 = vpop.xlane.xlu0 %2861
    %2863 = vadd.xlane.f32.xlu0 %v2850
    %v2864 = vpop.xlane.xlu0 %2863
    %2865 = vadd.xlane.f32.xlu0 %v2851
    %v2866 = vpop.xlane.xlu0 %2865
    %2867 = vadd.xlane.f32.xlu0 %v2852
    %v2868 = vpop.xlane.xlu0 %2867
    %v2869 = vmul.f32 %v2854, %v2828
    %v2870 = vmul.f32 %v2856, %v2828
    %v2871 = vmul.f32 %v2858, %v2828
    %v2872 = vmul.f32 %v2860, %v2828
    %v2873 = vmul.f32 %v2862, %v2828
    %v2874 = vmul.f32 %v2864, %v2828
    %v2875 = vmul.f32 %v2866, %v2828
    %v2876 = vmul.f32 %v2868, %v2828
    %v2877 = vadd.f32 %v2869, 1e-05
    %v2878 = vadd.f32 %v2870, 1e-05
    %v2879 = vadd.f32 %v2871, 1e-05
    %v2880 = vadd.f32 %v2872, 1e-05
    %v2881 = vadd.f32 %v2873, 1e-05
    %v2882 = vadd.f32 %v2874, 1e-05
    %v2883 = vadd.f32 %v2875, 1e-05
    %v2884 = vadd.f32 %v2876, 1e-05
    %v2885 = vrsqrt.pop %v2877
    %v2886 = vrsqrt.pop %v2878
    %v2887 = vrsqrt.pop %v2879
    %v2888 = vrsqrt.pop %v2880
    %v2889 = vrsqrt.pop %v2881
    %v2890 = vrsqrt.pop %v2882
    %v2891 = vrsqrt.pop %v2883
    %v2892 = vrsqrt.pop %v2884
    %v2893 = vmul.f32 %v2837, %v2885
    %v2894 = vmul.f32 %v2838, %v2886
    %v2895 = vmul.f32 %v2839, %v2887
    %v2896 = vmul.f32 %v2840, %v2888
    %v2897 = vmul.f32 %v2841, %v2889
    %v2898 = vmul.f32 %v2842, %v2890
    %v2899 = vmul.f32 %v2843, %v2891
    %v2900 = vmul.f32 %v2844, %v2892
    %v2902 = vlaneseq
    %v2903 = vshrl.u32 %v2902, 7
    %v2904 = vsub.s32 0, %v2903
    %v2905 = vrot.slane %v2810, %v2904
    %v2907 = vmul.f32 %v2893, %v2905
    %v2908 = vmul.f32 %v2894, %v2905
    %v2909 = vmul.f32 %v2895, %v2905
    %v2910 = vmul.f32 %v2896, %v2905
    %v2911 = vmul.f32 %v2897, %v2905
    %v2912 = vmul.f32 %v2898, %v2905
    %v2913 = vmul.f32 %v2899, %v2905
    %v2914 = vmul.f32 %v2900, %v2905
    %v2916 = vlaneseq
    %v2917 = vshrl.u32 %v2916, 7
    %v2918 = vsub.s32 0, %v2917
    %v2919 = vrot.slane %v2811, %v2918
    %v2921 = vadd.f32 %v2907, %v2919
    %v2922 = vadd.f32 %v2908, %v2919
    %v2923 = vadd.f32 %v2909, %v2919
    %v2924 = vadd.f32 %v2910, %v2919
    %v2925 = vadd.f32 %v2911, %v2919
    %v2926 = vadd.f32 %v2912, %v2919
    %v2927 = vadd.f32 %v2913, %v2919
    %v2928 = vadd.f32 %v2914, %v2919
    %v2929 = vpack.c.bf16 %v2922, %v2921
    %v2930 = vpack.c.bf16 %v2924, %v2923
    %v2931 = vpack.c.bf16 %v2926, %v2925
    %v2932 = vpack.c.bf16 %v2928, %v2927
    %v2933 = vld [vmem:[#allocation8] sm:$0xff]
    %v2934 = vld [vmem:[#allocation8 + $0x8] sm:$0xff]
    %v2935 = vld [vmem:[#allocation8 + $0x10] sm:$0xff]
    %v2936 = vld [vmem:[#allocation8 + $0x18] sm:$0xff]
    %v2937 = vld [vmem:[#allocation8 + $0x20] sm:$0xff]
    %v2938 = vld [vmem:[#allocation8 + $0x28] sm:$0xff]
    %v2939 = vld [vmem:[#allocation8 + $0x30] sm:$0xff]
    %v2940 = vld [vmem:[#allocation8 + $0x38] sm:$0xff]
    %v2941 = vld [vmem:[#allocation8 + $0x40] sm:$0xff]
    %v2942 = vld [vmem:[#allocation8 + $0x48] sm:$0xff]
    %v2943 = vld [vmem:[#allocation8 + $0x50] sm:$0xff]
    %v2944 = vld [vmem:[#allocation8 + $0x58] sm:$0xff]
    %v2945 = vld [vmem:[#allocation8 + $0x60] sm:$0xff]
    %v2946 = vld [vmem:[#allocation8 + $0x68] sm:$0xff]
    %v2947 = vld [vmem:[#allocation8 + $0x70] sm:$0xff]
    %v2948 = vld [vmem:[#allocation8 + $0x78] sm:$0xff]
    %v2949 = vld [vmem:[%s8] sm:$0x3]
    %v2951 = vlaneseq
    %v2952 = vshrl.u32 %v2951, 7
    %v2953 = vsub.s32 0, %v2952
    %v2954 = vrot.slane %v2949, %v2953
    %v2955 = vlaneseq
    %v2956 = vshrl.u32 %v2955, 7
    %v2957 = vsub.s32 1, %v2956
    %v2958 = vrot.slane %v2949, %v2957
    %v2977 = vunpack.c.l.b16 %v2933
    %v2978 = vunpack.c.h.b16 %v2933
    %v2979 = vunpack.c.l.b16 %v2934
    %v2980 = vunpack.c.h.b16 %v2934
    %v2981 = vunpack.c.l.b16 %v2935
    %v2982 = vunpack.c.h.b16 %v2935
    %v2983 = vunpack.c.l.b16 %v2936
    %v2984 = vunpack.c.h.b16 %v2936
    %v2985 = vunpack.c.l.b16 %v2937
    %v2986 = vunpack.c.h.b16 %v2937
    %v2987 = vunpack.c.l.b16 %v2938
    %v2988 = vunpack.c.h.b16 %v2938
    %v2989 = vunpack.c.l.b16 %v2939
    %v2990 = vunpack.c.h.b16 %v2939
    %v2991 = vunpack.c.l.b16 %v2940
    %v2992 = vunpack.c.h.b16 %v2940
    %v2993 = vunpack.c.l.b16 %v2941
    %v2994 = vunpack.c.h.b16 %v2941
    %v2995 = vunpack.c.l.b16 %v2942
    %v2996 = vunpack.c.h.b16 %v2942
    %v2997 = vunpack.c.l.b16 %v2943
    %v2998 = vunpack.c.h.b16 %v2943
    %v2999 = vunpack.c.l.b16 %v2944
    %v3000 = vunpack.c.h.b16 %v2944
    %v3001 = vunpack.c.l.b16 %v2945
    %v3002 = vunpack.c.h.b16 %v2945
    %v3003 = vunpack.c.l.b16 %v2946
    %v3004 = vunpack.c.h.b16 %v2946
    %v3005 = vunpack.c.l.b16 %v2947
    %v3006 = vunpack.c.h.b16 %v2947
    %v3007 = vunpack.c.l.b16 %v2948
    %v3008 = vunpack.c.h.b16 %v2948
    %v3009 = vpack.c.b16 %v2979, %v2977
    %v3010 = vpack.c.b16 %v2980, %v2978
    %v3011 = vpack.c.b16 %v2983, %v2981
    %v3012 = vpack.c.b16 %v2984, %v2982
    %v3013 = vpack.c.b16 %v2987, %v2985
    %v3014 = vpack.c.b16 %v2988, %v2986
    %v3015 = vpack.c.b16 %v2991, %v2989
    %v3016 = vpack.c.b16 %v2992, %v2990
    %v3017 = vpack.c.b16 %v2995, %v2993
    %v3018 = vpack.c.b16 %v2996, %v2994
    %v3019 = vpack.c.b16 %v2999, %v2997
    %v3020 = vpack.c.b16 %v3000, %v2998
    %v3021 = vpack.c.b16 %v3003, %v3001
    %v3022 = vpack.c.b16 %v3004, %v3002
    %v3023 = vpack.c.b16 %v3007, %v3005
    %v3024 = vpack.c.b16 %v3008, %v3006
    %3041 = vmatprep.subr.bf16.mxu0 %v3010
    %3042 = vmatpush1.bf16.msra.mxu0 %v3009
    %3043 = vmatprep.subr.bf16.mxu0 %v3012
    %3044 = vmatpush1.bf16.msra.mxu0 %v3011
    %3045 = vmatprep.subr.bf16.mxu0 %v3014
    %3046 = vmatpush1.bf16.msra.mxu0 %v3013
    %3047 = vmatprep.subr.bf16.mxu0 %v3016
    %3048 = vmatpush1.bf16.msra.mxu0 %v3015
    %3049 = vmatprep.subr.bf16.mxu0 %v3018
    %3050 = vmatpush1.bf16.msra.mxu0 %v3017
    %3051 = vmatprep.subr.bf16.mxu0 %v3020
    %3052 = vmatpush1.bf16.msra.mxu0 %v3019
    %3053 = vmatprep.subr.bf16.mxu0 %v3022
    %3054 = vmatpush1.bf16.msra.mxu0 %v3021
    %3055 = vmatprep.subr.bf16.mxu0 %v3024
    %3056 = vmatpush1.bf16.msra.mxu0 %v3023
    %3057 = vmatprep.subr.bf16.mxu0 0
    %3058 = vmatpush1.bf16.msra.mxu0 0
    %3059 = vmatprep.subr.bf16.mxu0 0
    %3060 = vmatpush1.bf16.msra.mxu0 0
    %3061 = vmatprep.subr.bf16.mxu0 0
    %3062 = vmatpush1.bf16.msra.mxu0 0
    %3063 = vmatprep.subr.bf16.mxu0 0
    %3064 = vmatpush1.bf16.msra.mxu0 0
    %3065 = vmatprep.subr.bf16.mxu0 0
    %3066 = vmatpush1.bf16.msra.mxu0 0
    %3067 = vmatprep.subr.bf16.mxu0 0
    %3068 = vmatpush1.bf16.msra.mxu0 0
    %3069 = vmatprep.subr.bf16.mxu0 0
    %3070 = vmatpush1.bf16.msra.mxu0 0
    %3071 = vmatprep.subr.bf16.mxu0 0
    %3072 = vmatpush1.bf16.msra.mxu0 0
    %3073 = vmatprep.mubr.bf16.mxu0 0
    %3074 = vmatmul.mubr.bf16.gmra.mrb[0].mxu0 %v2929
    %v3075 = vpop.f32.mrb[0].mxu0
    %v3076 = vadd.f32 %v2954, %v3075
    %v3077 = vpop.f32.mrb[0].mxu0
    %v3078 = vadd.f32 %v2958, %v3077
    %v3079 = vpop.f32.mrb[0].mxu0
    %v3080 = vadd.f32 %v2954, %v3079
    %v3081 = vpop.f32.mrb[0].mxu0
    %v3082 = vadd.f32 %v2958, %v3081
    %3083 = vmatprep.mubr.bf16.mxu0 0
    %3084 = vmatmul.mubr.bf16.gmra.mrb[0].mxu0 %v2930
    %v3085 = vpop.f32.mrb[0].mxu0
    %v3086 = vadd.f32 %v2954, %v3085
    %v3087 = vpop.f32.mrb[0].mxu0
    %v3088 = vadd.f32 %v2958, %v3087
    %v3089 = vpop.f32.mrb[0].mxu0
    %v3090 = vadd.f32 %v2954, %v3089
    %v3091 = vpop.f32.mrb[0].mxu0
    %v3092 = vadd.f32 %v2958, %v3091
    %3093 = vmatprep.mubr.bf16.mxu0 0
    %3094 = vmatmul.mubr.bf16.gmra.mrb[0].mxu0 %v2931
    %v3095 = vpop.f32.mrb[0].mxu0
    %v3096 = vadd.f32 %v2954, %v3095
    %v3097 = vpop.f32.mrb[0].mxu0
    %v3098 = vadd.f32 %v2958, %v3097
    %v3099 = vpop.f32.mrb[0].mxu0
    %v3100 = vadd.f32 %v2954, %v3099
    %v3101 = vpop.f32.mrb[0].mxu0
    %v3102 = vadd.f32 %v2958, %v3101
    %3103 = vmatprep.mubr.bf16.mxu0 0
    %3104 = vmatmul.mubr.bf16.gmra.mrb[0].mxu0 %v2932
    %v3105 = vpop.f32.mrb[0].mxu0
    %v3106 = vadd.f32 %v2954, %v3105
    %v3107 = vpop.f32.mrb[0].mxu0
    %v3108 = vadd.f32 %v2958, %v3107
    %v3109 = vpop.f32.mrb[0].mxu0
    %v3110 = vadd.f32 %v2954, %v3109
    %v3111 = vpop.f32.mrb[0].mxu0
    %v3112 = vadd.f32 %v2958, %v3111
    %3113 = vdwg.mxu0
    %v3114 = vmax.f32 %v3076, 0.0
    %v3115 = vmax.f32 %v3078, 0.0
    %v3116 = vmax.f32 %v3080, 0.0
    %v3117 = vmax.f32 %v3082, 0.0
    %v3118 = vmax.f32 %v3086, 0.0
    %v3119 = vmax.f32 %v3088, 0.0
    %v3120 = vmax.f32 %v3090, 0.0
    %v3121 = vmax.f32 %v3092, 0.0
    %v3122 = vmax.f32 %v3096, 0.0
    %v3123 = vmax.f32 %v3098, 0.0
    %v3124 = vmax.f32 %v3100, 0.0
    %v3125 = vmax.f32 %v3102, 0.0
    %v3126 = vmax.f32 %v3106, 0.0
    %v3127 = vmax.f32 %v3108, 0.0
    %v3128 = vmax.f32 %v3110, 0.0
    %v3129 = vmax.f32 %v3112, 0.0
    %v3130 = vpack.c.bf16 %v3116, %v3114
    %v3131 = vpack.c.bf16 %v3117, %v3115
    %v3132 = vpack.c.bf16 %v3120, %v3118
    %v3133 = vpack.c.bf16 %v3121, %v3119
    %v3134 = vpack.c.bf16 %v3124, %v3122
    %v3135 = vpack.c.bf16 %v3125, %v3123
    %v3136 = vpack.c.bf16 %v3128, %v3126
    %v3137 = vpack.c.bf16 %v3129, %v3127
    %v3138 = vld [vmem:[#allocation10] sm:$0xf]
    %v3139 = vld [vmem:[#allocation10 + $0x4] sm:$0xf]
    %v3140 = vld [vmem:[#allocation10 + $0x8] sm:$0xf]
    %v3141 = vld [vmem:[#allocation10 + $0xc] sm:$0xf]
    %v3142 = vld [vmem:[#allocation10 + $0x10] sm:$0xf]
    %v3143 = vld [vmem:[#allocation10 + $0x14] sm:$0xf]
    %v3144 = vld [vmem:[#allocation10 + $0x18] sm:$0xf]
    %v3145 = vld [vmem:[#allocation10 + $0x1c] sm:$0xf]
    %v3146 = vld [vmem:[#allocation10 + $0x20] sm:$0xf]
    %v3147 = vld [vmem:[#allocation10 + $0x24] sm:$0xf]
    %v3148 = vld [vmem:[#allocation10 + $0x28] sm:$0xf]
    %v3149 = vld [vmem:[#allocation10 + $0x2c] sm:$0xf]
    %v3150 = vld [vmem:[#allocation10 + $0x30] sm:$0xf]
    %v3151 = vld [vmem:[#allocation10 + $0x34] sm:$0xf]
    %v3152 = vld [vmem:[#allocation10 + $0x38] sm:$0xf]
    %v3153 = vld [vmem:[#allocation10 + $0x3c] sm:$0xf]
    %v3154 = vld [vmem:[#allocation10 + $0x40] sm:$0xf]
    %v3155 = vld [vmem:[#allocation10 + $0x44] sm:$0xf]
    %v3156 = vld [vmem:[#allocation10 + $0x48] sm:$0xf]
    %v3157 = vld [vmem:[#allocation10 + $0x4c] sm:$0xf]
    %v3158 = vld [vmem:[#allocation10 + $0x50] sm:$0xf]
    %v3159 = vld [vmem:[#allocation10 + $0x54] sm:$0xf]
    %v3160 = vld [vmem:[#allocation10 + $0x58] sm:$0xf]
    %v3161 = vld [vmem:[#allocation10 + $0x5c] sm:$0xf]
    %v3162 = vld [vmem:[#allocation10 + $0x60] sm:$0xf]
    %v3163 = vld [vmem:[#allocation10 + $0x64] sm:$0xf]
    %v3164 = vld [vmem:[#allocation10 + $0x68] sm:$0xf]
    %v3165 = vld [vmem:[#allocation10 + $0x6c] sm:$0xf]
    %v3166 = vld [vmem:[#allocation10 + $0x70] sm:$0xf]
    %v3167 = vld [vmem:[#allocation10 + $0x74] sm:$0xf]
    %v3168 = vld [vmem:[#allocation10 + $0x78] sm:$0xf]
    %v3169 = vld [vmem:[#allocation10 + $0x7c] sm:$0xf]
    %v3170 = vld [vmem:[%s10] sm:$0x1]
    %v3172 = vlaneseq
    %v3173 = vshrl.u32 %v3172, 7
    %v3174 = vsub.s32 0, %v3173
    %v3175 = vrot.slane %v3170, %v3174
    %v3209 = vunpack.c.l.b16 %v3138
    %v3210 = vunpack.c.l.b16 %v3139
    %v3211 = vunpack.c.l.b16 %v3140
    %v3212 = vunpack.c.l.b16 %v3141
    %v3213 = vunpack.c.l.b16 %v3142
    %v3214 = vunpack.c.l.b16 %v3143
    %v3215 = vunpack.c.l.b16 %v3144
    %v3216 = vunpack.c.l.b16 %v3145
    %v3217 = vunpack.c.l.b16 %v3146
    %v3218 = vunpack.c.l.b16 %v3147
    %v3219 = vunpack.c.l.b16 %v3148
    %v3220 = vunpack.c.l.b16 %v3149
    %v3221 = vunpack.c.l.b16 %v3150
    %v3222 = vunpack.c.l.b16 %v3151
    %v3223 = vunpack.c.l.b16 %v3152
    %v3224 = vunpack.c.l.b16 %v3153
    %v3225 = vunpack.c.l.b16 %v3154
    %v3226 = vunpack.c.l.b16 %v3155
    %v3227 = vunpack.c.l.b16 %v3156
    %v3228 = vunpack.c.l.b16 %v3157
    %v3229 = vunpack.c.l.b16 %v3158
    %v3230 = vunpack.c.l.b16 %v3159
    %v3231 = vunpack.c.l.b16 %v3160
    %v3232 = vunpack.c.l.b16 %v3161
    %v3233 = vunpack.c.l.b16 %v3162
    %v3234 = vunpack.c.l.b16 %v3163
    %v3235 = vunpack.c.l.b16 %v3164
    %v3236 = vunpack.c.l.b16 %v3165
    %v3237 = vunpack.c.l.b16 %v3166
    %v3238 = vunpack.c.l.b16 %v3167
    %v3239 = vunpack.c.l.b16 %v3168
    %v3240 = vunpack.c.l.b16 %v3169
    %v3241 = vpack.c.b16 %v3210, %v3209
    %v3242 = vpack.c.b16 %v3212, %v3211
    %v3243 = vpack.c.b16 %v3214, %v3213
    %v3244 = vpack.c.b16 %v3216, %v3215
    %v3245 = vpack.c.b16 %v3218, %v3217
    %v3246 = vpack.c.b16 %v3220, %v3219
    %v3247 = vpack.c.b16 %v3222, %v3221
    %v3248 = vpack.c.b16 %v3224, %v3223
    %v3249 = vpack.c.b16 %v3226, %v3225
    %v3250 = vpack.c.b16 %v3228, %v3227
    %v3251 = vpack.c.b16 %v3230, %v3229
    %v3252 = vpack.c.b16 %v3232, %v3231
    %v3253 = vpack.c.b16 %v3234, %v3233
    %v3254 = vpack.c.b16 %v3236, %v3235
    %v3255 = vpack.c.b16 %v3238, %v3237
    %v3256 = vpack.c.b16 %v3240, %v3239
    %3273 = vmatprep.subr.bf16.mxu0 0
    %3274 = vmatpush1.bf16.msra.mxu0 %v3241
    %3275 = vmatprep.subr.bf16.mxu0 0
    %3276 = vmatpush1.bf16.msra.mxu0 %v3242
    %3277 = vmatprep.subr.bf16.mxu0 0
    %3278 = vmatpush1.bf16.msra.mxu0 %v3243
    %3279 = vmatprep.subr.bf16.mxu0 0
    %3280 = vmatpush1.bf16.msra.mxu0 %v3244
    %3281 = vmatprep.subr.bf16.mxu0 0
    %3282 = vmatpush1.bf16.msra.mxu0 %v3245
    %3283 = vmatprep.subr.bf16.mxu0 0
    %3284 = vmatpush1.bf16.msra.mxu0 %v3246
    %3285 = vmatprep.subr.bf16.mxu0 0
    %3286 = vmatpush1.bf16.msra.mxu0 %v3247
    %3287 = vmatprep.subr.bf16.mxu0 0
    %3288 = vmatpush1.bf16.msra.mxu0 %v3248
    %3289 = vmatprep.subr.bf16.mxu0 0
    %3290 = vmatpush1.bf16.msra.mxu0 %v3249
    %3291 = vmatprep.subr.bf16.mxu0 0
    %3292 = vmatpush1.bf16.msra.mxu0 %v3250
    %3293 = vmatprep.subr.bf16.mxu0 0
    %3294 = vmatpush1.bf16.msra.mxu0 %v3251
    %3295 = vmatprep.subr.bf16.mxu0 0
    %3296 = vmatpush1.bf16.msra.mxu0 %v3252
    %3297 = vmatprep.subr.bf16.mxu0 0
    %3298 = vmatpush1.bf16.msra.mxu0 %v3253
    %3299 = vmatprep.subr.bf16.mxu0 0
    %3300 = vmatpush1.bf16.msra.mxu0 %v3254
    %3301 = vmatprep.subr.bf16.mxu0 0
    %3302 = vmatpush1.bf16.msra.mxu0 %v3255
    %3303 = vmatprep.subr.bf16.mxu0 0
    %3304 = vmatpush1.bf16.msra.mxu0 %v3256
    %3305 = vmatprep.mubr.bf16.mxu0 %v3131
    %3306 = vmatmul.mubr.bf16.gmra.mrb[0].mxu0 %v3130
    %v3307 = vpop.f32.mrb[0].mxu0
    %v3308 = vadd.f32 %v3175, %v3307
    %v3309 = vpop.f32.mrb[0].mxu0
    %v3310 = vpop.f32.mrb[0].mxu0
    %v3311 = vadd.f32 %v3175, %v3310
    %v3312 = vpop.f32.mrb[0].mxu0
    %3313 = vmatprep.mubr.bf16.mxu0 %v3133
    %3314 = vmatmul.mubr.bf16.gmra.mrb[0].mxu0 %v3132
    %v3315 = vpop.f32.mrb[0].mxu0
    %v3316 = vadd.f32 %v3175, %v3315
    %v3317 = vpop.f32.mrb[0].mxu0
    %v3318 = vpop.f32.mrb[0].mxu0
    %v3319 = vadd.f32 %v3175, %v3318
    %v3320 = vpop.f32.mrb[0].mxu0
    %3321 = vmatprep.mubr.bf16.mxu0 %v3135
    %3322 = vmatmul.mubr.bf16.gmra.mrb[0].mxu0 %v3134
    %v3323 = vpop.f32.mrb[0].mxu0
    %v3324 = vadd.f32 %v3175, %v3323
    %v3325 = vpop.f32.mrb[0].mxu0
    %v3326 = vpop.f32.mrb[0].mxu0
    %v3327 = vadd.f32 %v3175, %v3326
    %v3328 = vpop.f32.mrb[0].mxu0
    %3329 = vmatprep.mubr.bf16.mxu0 %v3137
    %3330 = vmatmul.mubr.bf16.gmra.mrb[0].mxu0 %v3136
    %v3331 = vpop.f32.mrb[0].mxu0
    %v3332 = vadd.f32 %v3175, %v3331
    %v3333 = vpop.f32.mrb[0].mxu0
    %v3334 = vpop.f32.mrb[0].mxu0
    %v3335 = vadd.f32 %v3175, %v3334
    %v3336 = vpop.f32.mrb[0].mxu0
    %3337 = vdwg.mxu0
    %v3338 = vadd.f32 %v2921, %v3308
    %v3339 = vadd.f32 %v2922, %v3311
    %v3340 = vadd.f32 %v2923, %v3316
    %v3341 = vadd.f32 %v2924, %v3319
    %v3342 = vadd.f32 %v2925, %v3324
    %v3343 = vadd.f32 %v2926, %v3327
    %v3344 = vadd.f32 %v2927, %v3332
    %v3345 = vadd.f32 %v2928, %v3335
    %v3346 = vld [vmem:[%s11] sm:$0x1]
    %v3347 = vld [vmem:[%s12] sm:$0x1]
    %3348 = vadd.xlane.f32.xlu0 %v3338
    %v3349 = vpop.xlane.xlu0 %3348
    %3350 = vadd.xlane.f32.xlu0 %v3339
    %v3351 = vpop.xlane.xlu0 %3350
    %3352 = vadd.xlane.f32.xlu0 %v3340
    %v3353 = vpop.xlane.xlu0 %3352
    %3354 = vadd.xlane.f32.xlu0 %v3341
    %v3355 = vpop.xlane.xlu0 %3354
    %3356 = vadd.xlane.f32.xlu0 %v3342
    %v3357 = vpop.xlane.xlu0 %3356
    %3358 = vadd.xlane.f32.xlu0 %v3343
    %v3359 = vpop.xlane.xlu0 %3358
    %3360 = vadd.xlane.f32.xlu0 %v3344
    %v3361 = vpop.xlane.xlu0 %3360
    %3362 = vadd.xlane.f32.xlu0 %v3345
    %v3363 = vpop.xlane.xlu0 %3362
    %v3364 = vmul.f32 %v3349, %v2828
    %v3365 = vmul.f32 %v3351, %v2828
    %v3366 = vmul.f32 %v3353, %v2828
    %v3367 = vmul.f32 %v3355, %v2828
    %v3368 = vmul.f32 %v3357, %v2828
    %v3369 = vmul.f32 %v3359, %v2828
    %v3370 = vmul.f32 %v3361, %v2828
    %v3371 = vmul.f32 %v3363, %v2828
    %v3372 = vsub.f32 %v3338, %v3364
    %v3373 = vsub.f32 %v3339, %v3365
    %v3374 = vsub.f32 %v3340, %v3366
    %v3375 = vsub.f32 %v3341, %v3367
    %v3376 = vsub.f32 %v3342, %v3368
    %v3377 = vsub.f32 %v3343, %v3369
    %v3378 = vsub.f32 %v3344, %v3370
    %v3379 = vsub.f32 %v3345, %v3371
    %v3380 = vmul.f32 %v3372, %v3372
    %v3381 = vmul.f32 %v3373, %v3373
    %v3382 = vmul.f32 %v3374, %v3374
    %v3383 = vmul.f32 %v3375, %v3375
    %v3384 = vmul.f32 %v3376, %v3376
    %v3385 = vmul.f32 %v3377, %v3377
    %v3386 = vmul.f32 %v3378, %v3378
    %v3387 = vmul.f32 %v3379, %v3379
    %3388 = vadd.xlane.f32.xlu0 %v3380
    %v3389 = vpop.xlane.xlu0 %3388
    %3390 = vadd.xlane.f32.xlu0 %v3381
    %v3391 = vpop.xlane.xlu0 %3390
    %3392 = vadd.xlane.f32.xlu0 %v3382
    %v3393 = vpop.xlane.xlu0 %3392
    %3394 = vadd.xlane.f32.xlu0 %v3383
    %v3395 = vpop.xlane.xlu0 %3394
    %3396 = vadd.xlane.f32.xlu0 %v3384
    %v3397 = vpop.xlane.xlu0 %3396
    %3398 = vadd.xlane.f32.xlu0 %v3385
    %v3399 = vpop.xlane.xlu0 %3398
    %3400 = vadd.xlane.f32.xlu0 %v3386
    %v3401 = vpop.xlane.xlu0 %3400
    %3402 = vadd.xlane.f32.xlu0 %v3387
    %v3403 = vpop.xlane.xlu0 %3402
    %v3404 = vmul.f32 %v3389, %v2828
    %v3405 = vmul.f32 %v3391, %v2828
    %v3406 = vmul.f32 %v3393, %v2828
    %v3407 = vmul.f32 %v3395, %v2828
    %v3408 = vmul.f32 %v3397, %v2828
    %v3409 = vmul.f32 %v3399, %v2828
    %v3410 = vmul.f32 %v3401, %v2828
    %v3411 = vmul.f32 %v3403, %v2828
    %v3412 = vadd.f32 %v3404, 1e-05
    %v3413 = vadd.f32 %v3405, 1e-05
    %v3414 = vadd.f32 %v3406, 1e-05
    %v3415 = vadd.f32 %v3407, 1e-05
    %v3416 = vadd.f32 %v3408, 1e-05
    %v3417 = vadd.f32 %v3409, 1e-05
    %v3418 = vadd.f32 %v3410, 1e-05
    %v3419 = vadd.f32 %v3411, 1e-05
    %v3420 = vrsqrt.pop %v3412
    %v3421 = vrsqrt.pop %v3413
    %v3422 = vrsqrt.pop %v3414
    %v3423 = vrsqrt.pop %v3415
    %v3424 = vrsqrt.pop %v3416
    %v3425 = vrsqrt.pop %v3417
    %v3426 = vrsqrt.pop %v3418
    %v3427 = vrsqrt.pop %v3419
    %v3428 = vmul.f32 %v3372, %v3420
    %v3429 = vmul.f32 %v3373, %v3421
    %v3430 = vmul.f32 %v3374, %v3422
    %v3431 = vmul.f32 %v3375, %v3423
    %v3432 = vmul.f32 %v3376, %v3424
    %v3433 = vmul.f32 %v3377, %v3425
    %v3434 = vmul.f32 %v3378, %v3426
    %v3435 = vmul.f32 %v3379, %v3427
    %v3437 = vlaneseq
    %v3438 = vshrl.u32 %v3437, 7
    %v3439 = vsub.s32 0, %v3438
    %v3440 = vrot.slane %v3346, %v3439
    %v3442 = vmul.f32 %v3428, %v3440
    %v3443 = vmul.f32 %v3429, %v3440
    %v3444 = vmul.f32 %v3430, %v3440
    %v3445 = vmul.f32 %v3431, %v3440
    %v3446 = vmul.f32 %v3432, %v3440
    %v3447 = vmul.f32 %v3433, %v3440
    %v3448 = vmul.f32 %v3434, %v3440
    %v3449 = vmul.f32 %v3435, %v3440
    %v3451 = vlaneseq
    %v3452 = vshrl.u32 %v3451, 7
    %v3453 = vsub.s32 0, %v3452
    %v3454 = vrot.slane %v3347, %v3453
    %v3456 = vadd.f32 %v3442, %v3454
    %v3457 = vadd.f32 %v3443, %v3454
    %v3458 = vadd.f32 %v3444, %v3454
    %v3459 = vadd.f32 %v3445, %v3454
    %v3460 = vadd.f32 %v3446, %v3454
    %v3461 = vadd.f32 %v3447, %v3454
    %v3462 = vadd.f32 %v3448, %v3454
    %v3463 = vadd.f32 %v3449, %v3454
    %3464 = vst [vmem:[#allocation11] sm:$0xff] %v3456
    %3465 = vst [vmem:[#allocation11 + $0x8] sm:$0xff] %v3457
    %3466 = vst [vmem:[#allocation11 + $0x10] sm:$0xff] %v3458
    %3467 = vst [vmem:[#allocation11 + $0x18] sm:$0xff] %v3459
    %3468 = vst [vmem:[#allocation11 + $0x20] sm:$0xff] %v3460
    %3469 = vst [vmem:[#allocation11 + $0x28] sm:$0xff] %v3461
    %3470 = vst [vmem:[#allocation11 + $0x30] sm:$0xff] %v3462
    %3471 = vst [vmem:[#allocation11 + $0x38] sm:$0xff] %v3463
    // Predicated region
    $region74: #{tpu_custom_call.1} parent=1 // pred_check
      _
    $region75: #{tpu_custom_call.1} parent=1 // pred_check_branch
      %3473 = sbr.rel (0) target = $region77
    $region76: #{tpu_custom_call.1} parent=1 // pred_region
      %s3475 = ssub.s32 1024, 1024
      %3476 = vsyncadd [#allocation4], %s3475
      %s3477 = sshll.u32 [#allocation11], 4
      %s3478 = int_to_ptr.vmem [resolvable:$true] %s3477
      %3483 = dma.vmem_to_hbm [thread:$0]  %s3478, 1024, %s13, [#allocation4], 128, 128, 8
    $region77: #{tpu_custom_call.1} parent=1 // pred_fallthru
      _
    // Predicated region
    $region78: #{tpu_custom_call.1} parent=1 // pred_check
      _
    $region79: #{tpu_custom_call.1} parent=1 // pred_check_branch
      %3485 = sbr.rel (0) target = $region81
    $region80: #{tpu_custom_call.1} parent=1 // pred_region
      %3486 = dma.done [#allocation4], 1024
    $region81: #{tpu_custom_call.1} parent=1 // pred_fallthru
      _
    %3487 = vsyncpa [#allocation3], 1
    %3488 = vsyncpa [#allocation6], 1
    %3489 = vsyncpa [#allocation9], 1
    %3490 = vsyncpa [#allocation4], 1

</llo_original>
